<compile_context>
chip_gen: v7x
topology: tpu7x:2x2x1
jax: 0.10.0
libtpu: 0.0.40
codegen_flags: <defaults>
</compile_context>

<pallas_src>
import jax
import jax.numpy as jnp
from jax.experimental import pallas as pl
from jax.experimental.pallas import tpu as pltpu


# ---------------------------------------------------------------------------
# Pallas kernels
# ---------------------------------------------------------------------------

def matmul_relu_kernel(x_ref, w_ref, o_ref):
    # x_ref: (tm, K) im2col patches   w_ref: (K, Cout) pre-transposed weight
    acc = jnp.dot(x_ref[...], w_ref[...], preferred_element_type=jnp.float32)
    o_ref[...] = jnp.maximum(acc, 0.0).astype(o_ref.dtype)


def conv4_head_kernel(p_ref, w_ref, et_ref, fs_ref, pooled_ref, q_ref):
    # p_ref:  (bs*S, K)  conv4 im2col patches
    # w_ref:  (K, F)     conv4 weight, reshaped + pre-transposed on host
    # et_ref: (F, A)     action-embedding table, pre-transposed on host
    bs = pooled_ref.shape[0]
    s = fs_ref.shape[0] // bs                  # spatial positions per batch elem

    f = jnp.maximum(
        jnp.dot(p_ref[...], w_ref[...], preferred_element_type=jnp.float32),
        0.0)                                   # relu(conv4) -> (bs*S, F)
    fs_ref[...] = f.astype(fs_ref.dtype)

    if s == 1:                                 # static (trace-time) branch
        pooled = f
    else:
        pooled = jnp.mean(f.reshape(bs, s, -1), axis=1)
    pooled_ref[...] = pooled.astype(pooled_ref.dtype)

    q_ref[...] = jnp.dot(pooled, et_ref[...],
                         preferred_element_type=jnp.float32).astype(q_ref.dtype)


# ---------------------------------------------------------------------------
# pallas_call wrappers
# ---------------------------------------------------------------------------

def _pick_m_tile(m):
    # Collapse to one grid step for small problems (per-step overhead ~0.35us
    # dominates); only tile M when there is enough work to be worth splitting
    # across v7x's two TensorCores via a "parallel" grid axis.
    if m >= 1024:
        for tm in (512, 256, 128):
            if m % tm == 0:
                return tm
    return m


def matmul_relu(x, w_t):
    m, k = x.shape
    n = w_t.shape[1]
    tm = _pick_m_tile(m)
    return pl.pallas_call(
        matmul_relu_kernel,
        out_shape=jax.ShapeDtypeStruct((m, n), x.dtype),
        grid_spec=pltpu.PrefetchScalarGridSpec(
            num_scalar_prefetch=0,
            grid=(m // tm,),
            in_specs=[
                pl.BlockSpec((tm, k), lambda i: (i, 0)),   # patches tile
                pl.BlockSpec((k, n), lambda i: (0, 0)),    # weight (resident)
            ],
            out_specs=pl.BlockSpec((tm, n), lambda i: (i, 0)),
        ),
        compiler_params=pltpu.CompilerParams(
            dimension_semantics=("parallel",)),
    )(x, w_t)


def conv4_head(p4, w4_t, embed_t, bs):
    m, k = p4.shape
    f_dim = w4_t.shape[1]
    n_act = embed_t.shape[1]
    out_shape = (
        jax.ShapeDtypeStruct((m, f_dim), p4.dtype),    # fs (row-flattened)
        jax.ShapeDtypeStruct((bs, f_dim), p4.dtype),   # pooled_fs
        jax.ShapeDtypeStruct((bs, n_act), p4.dtype),   # q_vals
    )
    return pl.pallas_call(
        conv4_head_kernel,
        out_shape=out_shape,
        grid_spec=pltpu.PrefetchScalarGridSpec(
            num_scalar_prefetch=0,
            grid=(1,),
            in_specs=[
                pl.BlockSpec((m, k), lambda i: (0, 0)),
                pl.BlockSpec((k, f_dim), lambda i: (0, 0)),
                pl.BlockSpec((f_dim, n_act), lambda i: (0, 0)),
            ],
            out_specs=[
                pl.BlockSpec((m, f_dim), lambda i: (0, 0)),
                pl.BlockSpec((bs, f_dim), lambda i: (0, 0)),
                pl.BlockSpec((bs, n_act), lambda i: (0, 0)),
            ],
        ),
        compiler_params=pltpu.CompilerParams(
            dimension_semantics=("arbitrary",)),
    )(p4, w4_t, embed_t)


# ---------------------------------------------------------------------------
# Host-side layout plumbing (im2col) + network forward
# ---------------------------------------------------------------------------

def im2col(x, kh, kw, stride):
    """Strided-slice patch extraction: (B,C,H,W) -> (B*Ho*Wo, C*kh*kw).

    Pure layout plumbing; the conv FLOPs run inside the Pallas matmul kernel.
    """
    b, c, h, w = x.shape
    ho = (h - kh) // stride + 1
    wo = (w - kw) // stride + 1
    cols = []
    for dy in range(kh):
        for dx in range(kw):
            sl = jax.lax.slice(
                x,
                (0, 0, dy, dx),
                (b, c, dy + (ho - 1) * stride + 1, dx + (wo - 1) * stride + 1),
                (1, 1, stride, stride))                # (b, c, ho, wo)
            cols.append(sl)
    p = jnp.stack(cols, axis=2)                        # (b, c, kh*kw, ho, wo)
    p = p.transpose(0, 3, 4, 1, 2).reshape(b * ho * wo, c * kh * kw)
    return p, ho, wo


def conv2d_relu(x, w, stride):
    """Bias-free Conv2d + ReLU via im2col + fused Pallas matmul/ReLU kernel."""
    cout, cin, kh, kw = w.shape
    p, ho, wo = im2col(x, kh, kw, stride)
    w_t = w.reshape(cout, cin * kh * kw).T             # host pre-transpose (K, Cout)
    y = matmul_relu(p, w_t)                            # (B*Ho*Wo, Cout)
    b = x.shape[0]
    return y.reshape(b, ho, wo, cout).transpose(0, 3, 1, 2)


@jax.jit
def vectorized_action_q_forward(obs, w1, w2, w3, w4, embed):
    """Pallas forward of VectorizedActionQNetwork: (q_vals, pooled_fs, fs)."""
    bs = obs.shape[0]
    x = conv2d_relu(obs, w1, 4)
    x = conv2d_relu(x, w2, 2)
    x = conv2d_relu(x, w3, 1)

    cout4, cin4, kh4, kw4 = w4.shape
    p4, h4, w4o = im2col(x, kh4, kw4, 1)
    w4_t = w4.reshape(cout4, cin4 * kh4 * kw4).T       # (K4, enc_fdim)
    embed_t = embed.T                                  # (enc_fdim, n_actions)

    fs_flat, pooled_fs, q_vals = conv4_head(p4, w4_t, embed_t, bs)
    fs = fs_flat.reshape(bs, h4, w4o, cout4).transpose(0, 3, 1, 2)
    return q_vals, pooled_fs, fs


# ---------------------------------------------------------------------------
# Pure-JAX reference mirroring the PyTorch forward
# ---------------------------------------------------------------------------

def reference_forward(obs, w1, w2, w3, w4, embed):
    dn = ('NCHW', 'OIHW', 'NCHW')

    def conv(x, w, s):
        return jax.lax.conv_general_dilated(x, w, (s, s), 'VALID',
                                            dimension_numbers=dn)

    x = jax.nn.relu(conv(obs, w1, 4))
    x = jax.nn.relu(conv(x, w2, 2))
    x = jax.nn.relu(conv(x, w3, 1))
    fs = jax.nn.relu(conv(x, w4, 1))
    pooled = jnp.mean(fs, axis=(2, 3))                 # AdaptiveAvgPool2d((1,1))
    q = pooled @ embed.T                               # action_embeds(arange(A)).t()
    return q, pooled, fs


if __name__ == "__main__":
    input_ch = 4
    enc_hidden_ch = 16
    enc_fdim = 256
    n_actions = 6
    bs, H, W = 2, 84, 84   # 84x84 is the smallest square input the conv stack supports

    key = jax.random.PRNGKey(0)
    k_obs, k1, k2, k3, k4, k_e = jax.random.split(key, 6)

    def he(k, shape):
        fan_in = shape[1] * shape[2] * shape[3]
        return jax.random.normal(k, shape, jnp.float32) * jnp.sqrt(2.0 / fan_in)

    obs = jax.random.normal(k_obs, (bs, input_ch, H, W), jnp.float32)
    w1 = he(k1, (enc_hidden_ch, input_ch, 8, 8))
    w2 = he(k2, (enc_hidden_ch * 2, enc_hidden_ch, 4, 4))
    w3 = he(k3, (enc_hidden_ch * 2, enc_hidden_ch * 2, 3, 3))
    w4 = he(k4, (enc_fdim, enc_hidden_ch * 2, 7, 7))
    embed = jax.random.normal(k_e, (n_actions, enc_fdim), jnp.float32)

    q, pooled, fs = vectorized_action_q_forward(obs, w1, w2, w3, w4, embed)
    q = jax.block_until_ready(q)
    pooled = jax.block_until_ready(pooled)
    fs = jax.block_until_ready(fs)

    q_ref, pooled_ref, fs_ref = reference_forward(obs, w1, w2, w3, w4, embed)

    assert q.shape == (bs, n_actions)
    assert pooled.shape == (bs, enc_fdim)
    assert fs.shape == (bs, enc_fdim, 1, 1)
    assert jnp.allclose(q, q_ref, atol=1e-3, rtol=1e-3)
    assert jnp.allclose(pooled, pooled_ref, atol=1e-3, rtol=1e-3)
    assert jnp.allclose(fs, fs_ref, atol=1e-3, rtol=1e-3)

    print("KERNEL_OK")
</pallas_src>

<mosaic_0001>
module attributes {stable_mosaic.version = 11 : i64} {
  func.func @matmul_relu_kernel(%arg0: i32, %arg1: memref<800x256xf32, #tpu.memory_space<vmem>>, %arg2: memref<256x16xf32, #tpu.memory_space<vmem>>, %arg3: memref<800x16xf32, #tpu.memory_space<vmem>>) attributes {dimension_semantics = [#tpu.dimension_semantics<parallel>], iteration_bounds = array<i64: 1>, scalar_prefetch = 0 : i64, scratch_operands = 0 : i64, tpu.core_type = #tpu.core_type<tc>, window_params = [{transform_indices = @transform_0, window_bounds = array<i64: 800, 256>}, {pipeline_mode = #tpu.pipeline_mode<synchronous>, transform_indices = @transform_1, window_bounds = array<i64: 256, 16>}, {transform_indices = @transform_2, window_bounds = array<i64: 800, 16>}]} {
    %c0 = arith.constant 0 : index
    %c0_0 = arith.constant 0 : index
    %0 = vector.load %arg1[%c0, %c0_0] : memref<800x256xf32, #tpu.memory_space<vmem>>, vector<800x256xf32>
    %c0_1 = arith.constant 0 : index
    %c0_2 = arith.constant 0 : index
    %1 = vector.load %arg2[%c0_1, %c0_2] : memref<256x16xf32, #tpu.memory_space<vmem>>, vector<256x16xf32>
    %cst = arith.constant dense<0.000000e+00> : vector<800x16xf32>
    %2 = tpu.matmul %0, %1, %cst {dimension_numbers = #tpu.dot_dimension_numbers<[1], [0], [0], [1], [0, 0, 1, 1], [], []>} : vector<800x256xf32>, vector<256x16xf32>, vector<800x16xf32> -> vector<800x16xf32>
    %cst_3 = arith.constant 0.000000e+00 : f32
    %3 = vector.broadcast %cst_3 : f32 to vector<800x16xf32>
    %4 = arith.maximumf %2, %3 : vector<800x16xf32>
    %c0_4 = arith.constant 0 : index
    %c0_5 = arith.constant 0 : index
    %5 = vector.load %arg3[%c0_4, %c0_5] : memref<800x16xf32, #tpu.memory_space<vmem>>, vector<800x16xf32>
    tpu.vector_store %arg3[%c0_4, %c0_5], %4 {strides = array<i32>} : memref<800x16xf32, #tpu.memory_space<vmem>>, vector<800x16xf32>,
    return
  }
  func.func @transform_0(%arg0: i32) -> (i32, i32) {
    %c0_i32 = arith.constant 0 : i32
    %c0_i32_0 = arith.constant 0 : i32
    return %arg0, %c0_i32 : i32, i32
  }
  func.func @transform_1(%arg0: i32) -> (i32, i32) {
    %c0_i32 = arith.constant 0 : i32
    %c0_i32_0 = arith.constant 0 : i32
    %c0_i32_1 = arith.constant 0 : i32
    return %c0_i32, %c0_i32_0 : i32, i32
  }
  func.func @transform_2(%arg0: i32) -> (i32, i32) {
    %c0_i32 = arith.constant 0 : i32
    %c0_i32_0 = arith.constant 0 : i32
    return %arg0, %c0_i32 : i32, i32
  }
}

module attributes {stable_mosaic.version = 11 : i64} {
  func.func @matmul_relu_kernel(%arg0: i32, %arg1: memref<162x256xf32, #tpu.memory_space<vmem>>, %arg2: memref<256x32xf32, #tpu.memory_space<vmem>>, %arg3: memref<162x32xf32, #tpu.memory_space<vmem>>) attributes {dimension_semantics = [#tpu.dimension_semantics<parallel>], iteration_bounds = array<i64: 1>, scalar_prefetch = 0 : i64, scratch_operands = 0 : i64, tpu.core_type = #tpu.core_type<tc>, window_params = [{transform_indices = @transform_0, window_bounds = array<i64: 162, 256>}, {pipeline_mode = #tpu.pipeline_mode<synchronous>, transform_indices = @transform_1, window_bounds = array<i64: 256, 32>}, {transform_indices = @transform_2, window_bounds = array<i64: 162, 32>}]} {
    %c0 = arith.constant 0 : index
    %c0_0 = arith.constant 0 : index
    %0 = vector.load %arg1[%c0, %c0_0] : memref<162x256xf32, #tpu.memory_space<vmem>>, vector<162x256xf32>
    %c0_1 = arith.constant 0 : index
    %c0_2 = arith.constant 0 : index
    %1 = vector.load %arg2[%c0_1, %c0_2] : memref<256x32xf32, #tpu.memory_space<vmem>>, vector<256x32xf32>
    %cst = arith.constant dense<0.000000e+00> : vector<162x32xf32>
    %2 = tpu.matmul %0, %1, %cst {dimension_numbers = #tpu.dot_dimension_numbers<[1], [0], [0], [1], [0, 0, 1, 1], [], []>} : vector<162x256xf32>, vector<256x32xf32>, vector<162x32xf32> -> vector<162x32xf32>
    %cst_3 = arith.constant 0.000000e+00 : f32
    %3 = vector.broadcast %cst_3 : f32 to vector<162x32xf32>
    %4 = arith.maximumf %2, %3 : vector<162x32xf32>
    %c0_4 = arith.constant 0 : index
    %c0_5 = arith.constant 0 : index
    %5 = vector.load %arg3[%c0_4, %c0_5] : memref<162x32xf32, #tpu.memory_space<vmem>>, vector<162x32xf32>
    tpu.vector_store %arg3[%c0_4, %c0_5], %4 {strides = array<i32>} : memref<162x32xf32, #tpu.memory_space<vmem>>, vector<162x32xf32>,
    return
  }
  func.func @transform_0(%arg0: i32) -> (i32, i32) {
    %c0_i32 = arith.constant 0 : i32
    %c0_i32_0 = arith.constant 0 : i32
    return %arg0, %c0_i32 : i32, i32
  }
  func.func @transform_1(%arg0: i32) -> (i32, i32) {
    %c0_i32 = arith.constant 0 : i32
    %c0_i32_0 = arith.constant 0 : i32
    %c0_i32_1 = arith.constant 0 : i32
    return %c0_i32, %c0_i32_0 : i32, i32
  }
  func.func @transform_2(%arg0: i32) -> (i32, i32) {
    %c0_i32 = arith.constant 0 : i32
    %c0_i32_0 = arith.constant 0 : i32
    return %arg0, %c0_i32 : i32, i32
  }
}

module attributes {stable_mosaic.version = 11 : i64} {
  func.func @matmul_relu_kernel(%arg0: i32, %arg1: memref<98x288xf32, #tpu.memory_space<vmem>>, %arg2: memref<288x32xf32, #tpu.memory_space<vmem>>, %arg3: memref<98x32xf32, #tpu.memory_space<vmem>>) attributes {dimension_semantics = [#tpu.dimension_semantics<parallel>], iteration_bounds = array<i64: 1>, scalar_prefetch = 0 : i64, scratch_operands = 0 : i64, tpu.core_type = #tpu.core_type<tc>, window_params = [{transform_indices = @transform_0, window_bounds = array<i64: 98, 288>}, {pipeline_mode = #tpu.pipeline_mode<synchronous>, transform_indices = @transform_1, window_bounds = array<i64: 288, 32>}, {transform_indices = @transform_2, window_bounds = array<i64: 98, 32>}]} {
    %c0 = arith.constant 0 : index
    %c0_0 = arith.constant 0 : index
    %0 = vector.load %arg1[%c0, %c0_0] : memref<98x288xf32, #tpu.memory_space<vmem>>, vector<98x288xf32>
    %c0_1 = arith.constant 0 : index
    %c0_2 = arith.constant 0 : index
    %1 = vector.load %arg2[%c0_1, %c0_2] : memref<288x32xf32, #tpu.memory_space<vmem>>, vector<288x32xf32>
    %cst = arith.constant dense<0.000000e+00> : vector<98x32xf32>
    %2 = tpu.matmul %0, %1, %cst {dimension_numbers = #tpu.dot_dimension_numbers<[1], [0], [0], [1], [0, 0, 1, 1], [], []>} : vector<98x288xf32>, vector<288x32xf32>, vector<98x32xf32> -> vector<98x32xf32>
    %cst_3 = arith.constant 0.000000e+00 : f32
    %3 = vector.broadcast %cst_3 : f32 to vector<98x32xf32>
    %4 = arith.maximumf %2, %3 : vector<98x32xf32>
    %c0_4 = arith.constant 0 : index
    %c0_5 = arith.constant 0 : index
    %5 = vector.load %arg3[%c0_4, %c0_5] : memref<98x32xf32, #tpu.memory_space<vmem>>, vector<98x32xf32>
    tpu.vector_store %arg3[%c0_4, %c0_5], %4 {strides = array<i32>} : memref<98x32xf32, #tpu.memory_space<vmem>>, vector<98x32xf32>,
    return
  }
  func.func @transform_0(%arg0: i32) -> (i32, i32) {
    %c0_i32 = arith.constant 0 : i32
    %c0_i32_0 = arith.constant 0 : i32
    return %arg0, %c0_i32 : i32, i32
  }
  func.func @transform_1(%arg0: i32) -> (i32, i32) {
    %c0_i32 = arith.constant 0 : i32
    %c0_i32_0 = arith.constant 0 : i32
    %c0_i32_1 = arith.constant 0 : i32
    return %c0_i32, %c0_i32_0 : i32, i32
  }
  func.func @transform_2(%arg0: i32) -> (i32, i32) {
    %c0_i32 = arith.constant 0 : i32
    %c0_i32_0 = arith.constant 0 : i32
    return %arg0, %c0_i32 : i32, i32
  }
}

module attributes {stable_mosaic.version = 11 : i64} {
  func.func @conv4_head_kernel(%arg0: i32, %arg1: memref<2x1568xf32, #tpu.memory_space<vmem>>, %arg2: memref<1568x256xf32, #tpu.memory_space<vmem>>, %arg3: memref<256x6xf32, #tpu.memory_space<vmem>>, %arg4: memref<2x256xf32, #tpu.memory_space<vmem>>, %arg5: memref<2x256xf32, #tpu.memory_space<vmem>>, %arg6: memref<2x6xf32, #tpu.memory_space<vmem>>) attributes {dimension_semantics = [#tpu.dimension_semantics<arbitrary>], iteration_bounds = array<i64: 1>, scalar_prefetch = 0 : i64, scratch_operands = 0 : i64, tpu.core_type = #tpu.core_type<tc>, window_params = [{pipeline_mode = #tpu.pipeline_mode<synchronous>, transform_indices = @transform_0, window_bounds = array<i64: 2, 1568>}, {pipeline_mode = #tpu.pipeline_mode<synchronous>, transform_indices = @transform_1, window_bounds = array<i64: 1568, 256>}, {pipeline_mode = #tpu.pipeline_mode<synchronous>, transform_indices = @transform_2, window_bounds = array<i64: 256, 6>}, {pipeline_mode = #tpu.pipeline_mode<synchronous>, transform_indices = @transform_3, window_bounds = array<i64: 2, 256>}, {pipeline_mode = #tpu.pipeline_mode<synchronous>, transform_indices = @transform_4, window_bounds = array<i64: 2, 256>}, {pipeline_mode = #tpu.pipeline_mode<synchronous>, transform_indices = @transform_5, window_bounds = array<i64: 2, 6>}]} {
    %c0 = arith.constant 0 : index
    %c0_0 = arith.constant 0 : index
    %0 = vector.load %arg1[%c0, %c0_0] : memref<2x1568xf32, #tpu.memory_space<vmem>>, vector<2x1568xf32>
    %c0_1 = arith.constant 0 : index
    %c0_2 = arith.constant 0 : index
    %1 = vector.load %arg2[%c0_1, %c0_2] : memref<1568x256xf32, #tpu.memory_space<vmem>>, vector<1568x256xf32>
    %cst = arith.constant dense<0.000000e+00> : vector<2x256xf32>
    %2 = tpu.matmul %0, %1, %cst {dimension_numbers = #tpu.dot_dimension_numbers<[1], [0], [0], [1], [0, 0, 1, 1], [], []>} : vector<2x1568xf32>, vector<1568x256xf32>, vector<2x256xf32> -> vector<2x256xf32>
    %cst_3 = arith.constant 0.000000e+00 : f32
    %3 = vector.broadcast %cst_3 : f32 to vector<2x256xf32>
    %4 = arith.maximumf %2, %3 : vector<2x256xf32>
    %c0_4 = arith.constant 0 : index
    %c0_5 = arith.constant 0 : index
    %5 = vector.load %arg4[%c0_4, %c0_5] : memref<2x256xf32, #tpu.memory_space<vmem>>, vector<2x256xf32>
    tpu.vector_store %arg4[%c0_4, %c0_5], %4 {strides = array<i32>} : memref<2x256xf32, #tpu.memory_space<vmem>>, vector<2x256xf32>,
    %c0_6 = arith.constant 0 : index
    %c0_7 = arith.constant 0 : index
    %6 = vector.load %arg5[%c0_6, %c0_7] : memref<2x256xf32, #tpu.memory_space<vmem>>, vector<2x256xf32>
    tpu.vector_store %arg5[%c0_6, %c0_7], %4 {strides = array<i32>} : memref<2x256xf32, #tpu.memory_space<vmem>>, vector<2x256xf32>,
    %c0_8 = arith.constant 0 : index
    %c0_9 = arith.constant 0 : index
    %7 = vector.load %arg3[%c0_8, %c0_9] : memref<256x6xf32, #tpu.memory_space<vmem>>, vector<256x6xf32>
    %cst_10 = arith.constant dense<0.000000e+00> : vector<2x6xf32>
    %8 = tpu.matmul %4, %7, %cst_10 {dimension_numbers = #tpu.dot_dimension_numbers<[1], [0], [0], [1], [0, 0, 1, 1], [], []>} : vector<2x256xf32>, vector<256x6xf32>, vector<2x6xf32> -> vector<2x6xf32>
    %c0_11 = arith.constant 0 : index
    %c0_12 = arith.constant 0 : index
    %9 = vector.load %arg6[%c0_11, %c0_12] : memref<2x6xf32, #tpu.memory_space<vmem>>, vector<2x6xf32>
    tpu.vector_store %arg6[%c0_11, %c0_12], %8 {strides = array<i32>} : memref<2x6xf32, #tpu.memory_space<vmem>>, vector<2x6xf32>,
    return
  }
  func.func @transform_0(%arg0: i32) -> (i32, i32) {
    %c0_i32 = arith.constant 0 : i32
    %c0_i32_0 = arith.constant 0 : i32
    %c0_i32_1 = arith.constant 0 : i32
    return %c0_i32, %c0_i32_0 : i32, i32
  }
  func.func @transform_1(%arg0: i32) -> (i32, i32) {
    %c0_i32 = arith.constant 0 : i32
    %c0_i32_0 = arith.constant 0 : i32
    %c0_i32_1 = arith.constant 0 : i32
    return %c0_i32, %c0_i32_0 : i32, i32
  }
  func.func @transform_2(%arg0: i32) -> (i32, i32) {
    %c0_i32 = arith.constant 0 : i32
    %c0_i32_0 = arith.constant 0 : i32
    %c0_i32_1 = arith.constant 0 : i32
    return %c0_i32, %c0_i32_0 : i32, i32
  }
  func.func @transform_3(%arg0: i32) -> (i32, i32) {
    %c0_i32 = arith.constant 0 : i32
    %c0_i32_0 = arith.constant 0 : i32
    %c0_i32_1 = arith.constant 0 : i32
    return %c0_i32, %c0_i32_0 : i32, i32
  }
  func.func @transform_4(%arg0: i32) -> (i32, i32) {
    %c0_i32 = arith.constant 0 : i32
    %c0_i32_0 = arith.constant 0 : i32
    %c0_i32_1 = arith.constant 0 : i32
    return %c0_i32, %c0_i32_0 : i32, i32
  }
  func.func @transform_5(%arg0: i32) -> (i32, i32) {
    %c0_i32 = arith.constant 0 : i32
    %c0_i32_0 = arith.constant 0 : i32
    %c0_i32_1 = arith.constant 0 : i32
    return %c0_i32, %c0_i32_0 : i32, i32
  }
}

</mosaic_0001>

<llo_original>
// kernel: vectorized_action_q_forward.4
$region0: #{vectorized_action_q_forward.4}
  #allocation0 [shape = 'u32[]', space=smem, size = 0x4, offset = 0x4, fixed_abs, tag = 'smem constant byte address 0x4 - core index']
  #allocation1 [shape = 'u32[144,128]{1,0:T(1,128)}', space=vmem, size = 0x12000, scoped, tag = 'internal scratch']
  %s0 = inlined_call_operand.vmem [shape: f32[800,256], index: 0, kind: input, shape index: {}]
  %s1 = inlined_call_operand.vmem [shape: f32[256,16], index: 1, kind: input, shape index: {}]
  %s2 = inlined_call_operand.vmem [shape: f32[800,16], index: 2, kind: output, shape index: {}]
  %s3 = sld [smem:[#allocation0]]
  $region18: #{vectorized_action_q_forward.4} parent=0
    _
  %s5 = ssub.s32 1, %s3
  %s6 = scalar_select 0, %s5, %s3
  // Predicated region
  $region2: #{vectorized_action_q_forward.4} parent=0 // pred_check
    _
  $region3: #{vectorized_action_q_forward.4} parent=0 // pred_check_branch
    %8 = sbr.rel (0) target = $region5
  $region4: #{vectorized_action_q_forward.4} parent=0 // pred_region
    _
  $region5: #{vectorized_action_q_forward.4} parent=0 // pred_fallthru
    _
  // Predicated region
  $region6: #{vectorized_action_q_forward.4} parent=0 // pred_check
    _
  $region7: #{vectorized_action_q_forward.4} parent=0 // pred_check_branch
    %10 = sbr.rel (0) target = $region9
  $region8: #{vectorized_action_q_forward.4} parent=0 // pred_region
    _
  $region9: #{vectorized_action_q_forward.4} parent=0 // pred_fallthru
    _
  %v11 = vld [vmem:[%s0] sm:$0xff]
  %v12 = vld [vmem:[%s0 + $0x8] sm:$0xff]
  %v13 = vld [vmem:[%s0 + $0x10] sm:$0xff]
  %v14 = vld [vmem:[%s0 + $0x18] sm:$0xff]
  %v15 = vld [vmem:[%s0 + $0x20] sm:$0xff]
  %v16 = vld [vmem:[%s0 + $0x28] sm:$0xff]
  %v17 = vld [vmem:[%s0 + $0x30] sm:$0xff]
  %v18 = vld [vmem:[%s0 + $0x38] sm:$0xff]
  %v19 = vld [vmem:[%s0 + $0x40] sm:$0xff]
  %v20 = vld [vmem:[%s0 + $0x48] sm:$0xff]
  %v21 = vld [vmem:[%s0 + $0x50] sm:$0xff]
  %v22 = vld [vmem:[%s0 + $0x58] sm:$0xff]
  %v23 = vld [vmem:[%s0 + $0x60] sm:$0xff]
  %v24 = vld [vmem:[%s0 + $0x68] sm:$0xff]
  %v25 = vld [vmem:[%s0 + $0x70] sm:$0xff]
  %v26 = vld [vmem:[%s0 + $0x78] sm:$0xff]
  %v27 = vld [vmem:[%s0 + $0x80] sm:$0xff]
  %v28 = vld [vmem:[%s0 + $0x88] sm:$0xff]
  %v29 = vld [vmem:[%s0 + $0x90] sm:$0xff]
  %v30 = vld [vmem:[%s0 + $0x98] sm:$0xff]
  %v31 = vld [vmem:[%s0 + $0xa0] sm:$0xff]
  %v32 = vld [vmem:[%s0 + $0xa8] sm:$0xff]
  %v33 = vld [vmem:[%s0 + $0xb0] sm:$0xff]
  %v34 = vld [vmem:[%s0 + $0xb8] sm:$0xff]
  %v35 = vld [vmem:[%s0 + $0xc0] sm:$0xff]
  %v36 = vld [vmem:[%s0 + $0xc8] sm:$0xff]
  %v37 = vld [vmem:[%s0 + $0xd0] sm:$0xff]
  %v38 = vld [vmem:[%s0 + $0xd8] sm:$0xff]
  %v39 = vld [vmem:[%s0 + $0xe0] sm:$0xff]
  %v40 = vld [vmem:[%s0 + $0xe8] sm:$0xff]
  %v41 = vld [vmem:[%s0 + $0xf0] sm:$0xff]
  %v42 = vld [vmem:[%s0 + $0xf8] sm:$0xff]
  %v43 = vld [vmem:[%s0 + $0x100] sm:$0xff]
  %v44 = vld [vmem:[%s0 + $0x108] sm:$0xff]
  %v45 = vld [vmem:[%s0 + $0x110] sm:$0xff]
  %v46 = vld [vmem:[%s0 + $0x118] sm:$0xff]
  %v47 = vld [vmem:[%s0 + $0x120] sm:$0xff]
  %v48 = vld [vmem:[%s0 + $0x128] sm:$0xff]
  %v49 = vld [vmem:[%s0 + $0x130] sm:$0xff]
  %v50 = vld [vmem:[%s0 + $0x138] sm:$0xff]
  %v51 = vld [vmem:[%s0 + $0x140] sm:$0xff]
  %v52 = vld [vmem:[%s0 + $0x148] sm:$0xff]
  %v53 = vld [vmem:[%s0 + $0x150] sm:$0xff]
  %v54 = vld [vmem:[%s0 + $0x158] sm:$0xff]
  %v55 = vld [vmem:[%s0 + $0x160] sm:$0xff]
  %v56 = vld [vmem:[%s0 + $0x168] sm:$0xff]
  %v57 = vld [vmem:[%s0 + $0x170] sm:$0xff]
  %v58 = vld [vmem:[%s0 + $0x178] sm:$0xff]
  %v59 = vld [vmem:[%s0 + $0x180] sm:$0xff]
  %v60 = vld [vmem:[%s0 + $0x188] sm:$0xff]
  %v61 = vld [vmem:[%s0 + $0x190] sm:$0xff]
  %v62 = vld [vmem:[%s0 + $0x198] sm:$0xff]
  %v63 = vld [vmem:[%s0 + $0x1a0] sm:$0xff]
  %v64 = vld [vmem:[%s0 + $0x1a8] sm:$0xff]
  %v65 = vld [vmem:[%s0 + $0x1b0] sm:$0xff]
  %v66 = vld [vmem:[%s0 + $0x1b8] sm:$0xff]
  %v67 = vld [vmem:[%s0 + $0x1c0] sm:$0xff]
  %v68 = vld [vmem:[%s0 + $0x1c8] sm:$0xff]
  %v69 = vld [vmem:[%s0 + $0x1d0] sm:$0xff]
  %v70 = vld [vmem:[%s0 + $0x1d8] sm:$0xff]
  %v71 = vld [vmem:[%s0 + $0x1e0] sm:$0xff]
  %v72 = vld [vmem:[%s0 + $0x1e8] sm:$0xff]
  %v73 = vld [vmem:[%s0 + $0x1f0] sm:$0xff]
  %v74 = vld [vmem:[%s0 + $0x1f8] sm:$0xff]
  %v75 = vld [vmem:[%s0 + $0x200] sm:$0xff]
  %v76 = vld [vmem:[%s0 + $0x208] sm:$0xff]
  %v77 = vld [vmem:[%s0 + $0x210] sm:$0xff]
  %v78 = vld [vmem:[%s0 + $0x218] sm:$0xff]
  %v79 = vld [vmem:[%s0 + $0x220] sm:$0xff]
  %v80 = vld [vmem:[%s0 + $0x228] sm:$0xff]
  %v81 = vld [vmem:[%s0 + $0x230] sm:$0xff]
  %v82 = vld [vmem:[%s0 + $0x238] sm:$0xff]
  %v83 = vld [vmem:[%s0 + $0x240] sm:$0xff]
  %v84 = vld [vmem:[%s0 + $0x248] sm:$0xff]
  %v85 = vld [vmem:[%s0 + $0x250] sm:$0xff]
  %v86 = vld [vmem:[%s0 + $0x258] sm:$0xff]
  %v87 = vld [vmem:[%s0 + $0x260] sm:$0xff]
  %v88 = vld [vmem:[%s0 + $0x268] sm:$0xff]
  %v89 = vld [vmem:[%s0 + $0x270] sm:$0xff]
  %v90 = vld [vmem:[%s0 + $0x278] sm:$0xff]
  %v91 = vld [vmem:[%s0 + $0x280] sm:$0xff]
  %v92 = vld [vmem:[%s0 + $0x288] sm:$0xff]
  %v93 = vld [vmem:[%s0 + $0x290] sm:$0xff]
  %v94 = vld [vmem:[%s0 + $0x298] sm:$0xff]
  %v95 = vld [vmem:[%s0 + $0x2a0] sm:$0xff]
  %v96 = vld [vmem:[%s0 + $0x2a8] sm:$0xff]
  %v97 = vld [vmem:[%s0 + $0x2b0] sm:$0xff]
  %v98 = vld [vmem:[%s0 + $0x2b8] sm:$0xff]
  %v99 = vld [vmem:[%s0 + $0x2c0] sm:$0xff]
  %v100 = vld [vmem:[%s0 + $0x2c8] sm:$0xff]
  %v101 = vld [vmem:[%s0 + $0x2d0] sm:$0xff]
  %v102 = vld [vmem:[%s0 + $0x2d8] sm:$0xff]
  %v103 = vld [vmem:[%s0 + $0x2e0] sm:$0xff]
  %v104 = vld [vmem:[%s0 + $0x2e8] sm:$0xff]
  %v105 = vld [vmem:[%s0 + $0x2f0] sm:$0xff]
  %v106 = vld [vmem:[%s0 + $0x2f8] sm:$0xff]
  %v107 = vld [vmem:[%s0 + $0x300] sm:$0xff]
  %v108 = vld [vmem:[%s0 + $0x308] sm:$0xff]
  %v109 = vld [vmem:[%s0 + $0x310] sm:$0xff]
  %v110 = vld [vmem:[%s0 + $0x318] sm:$0xff]
  %v111 = vld [vmem:[%s0 + $0x320] sm:$0xff]
  %v112 = vld [vmem:[%s0 + $0x328] sm:$0xff]
  %v113 = vld [vmem:[%s0 + $0x330] sm:$0xff]
  %v114 = vld [vmem:[%s0 + $0x338] sm:$0xff]
  %v115 = vld [vmem:[%s0 + $0x340] sm:$0xff]
  %v116 = vld [vmem:[%s0 + $0x348] sm:$0xff]
  %v117 = vld [vmem:[%s0 + $0x350] sm:$0xff]
  %v118 = vld [vmem:[%s0 + $0x358] sm:$0xff]
  %v119 = vld [vmem:[%s0 + $0x360] sm:$0xff]
  %v120 = vld [vmem:[%s0 + $0x368] sm:$0xff]
  %v121 = vld [vmem:[%s0 + $0x370] sm:$0xff]
  %v122 = vld [vmem:[%s0 + $0x378] sm:$0xff]
  %v123 = vld [vmem:[%s0 + $0x380] sm:$0xff]
  %v124 = vld [vmem:[%s0 + $0x388] sm:$0xff]
  %v125 = vld [vmem:[%s0 + $0x390] sm:$0xff]
  %v126 = vld [vmem:[%s0 + $0x398] sm:$0xff]
  %v127 = vld [vmem:[%s0 + $0x3a0] sm:$0xff]
  %v128 = vld [vmem:[%s0 + $0x3a8] sm:$0xff]
  %v129 = vld [vmem:[%s0 + $0x3b0] sm:$0xff]
  %v130 = vld [vmem:[%s0 + $0x3b8] sm:$0xff]
  %v131 = vld [vmem:[%s0 + $0x3c0] sm:$0xff]
  %v132 = vld [vmem:[%s0 + $0x3c8] sm:$0xff]
  %v133 = vld [vmem:[%s0 + $0x3d0] sm:$0xff]
  %v134 = vld [vmem:[%s0 + $0x3d8] sm:$0xff]
  %v135 = vld [vmem:[%s0 + $0x3e0] sm:$0xff]
  %v136 = vld [vmem:[%s0 + $0x3e8] sm:$0xff]
  %v137 = vld [vmem:[%s0 + $0x3f0] sm:$0xff]
  %v138 = vld [vmem:[%s0 + $0x3f8] sm:$0xff]
  %v139 = vld [vmem:[%s0 + $0x400] sm:$0xff]
  %v140 = vld [vmem:[%s0 + $0x408] sm:$0xff]
  %v141 = vld [vmem:[%s0 + $0x410] sm:$0xff]
  %v142 = vld [vmem:[%s0 + $0x418] sm:$0xff]
  %v143 = vld [vmem:[%s0 + $0x420] sm:$0xff]
  %v144 = vld [vmem:[%s0 + $0x428] sm:$0xff]
  %v145 = vld [vmem:[%s0 + $0x430] sm:$0xff]
  %v146 = vld [vmem:[%s0 + $0x438] sm:$0xff]
  %v147 = vld [vmem:[%s0 + $0x440] sm:$0xff]
  %v148 = vld [vmem:[%s0 + $0x448] sm:$0xff]
  %v149 = vld [vmem:[%s0 + $0x450] sm:$0xff]
  %v150 = vld [vmem:[%s0 + $0x458] sm:$0xff]
  %v151 = vld [vmem:[%s0 + $0x460] sm:$0xff]
  %v152 = vld [vmem:[%s0 + $0x468] sm:$0xff]
  %v153 = vld [vmem:[%s0 + $0x470] sm:$0xff]
  %v154 = vld [vmem:[%s0 + $0x478] sm:$0xff]
  %v155 = vld [vmem:[%s0 + $0x480] sm:$0xff]
  %v156 = vld [vmem:[%s0 + $0x488] sm:$0xff]
  %v157 = vld [vmem:[%s0 + $0x490] sm:$0xff]
  %v158 = vld [vmem:[%s0 + $0x498] sm:$0xff]
  %v159 = vld [vmem:[%s0 + $0x4a0] sm:$0xff]
  %v160 = vld [vmem:[%s0 + $0x4a8] sm:$0xff]
  %v161 = vld [vmem:[%s0 + $0x4b0] sm:$0xff]
  %v162 = vld [vmem:[%s0 + $0x4b8] sm:$0xff]
  %v163 = vld [vmem:[%s0 + $0x4c0] sm:$0xff]
  %v164 = vld [vmem:[%s0 + $0x4c8] sm:$0xff]
  %v165 = vld [vmem:[%s0 + $0x4d0] sm:$0xff]
  %v166 = vld [vmem:[%s0 + $0x4d8] sm:$0xff]
  %v167 = vld [vmem:[%s0 + $0x4e0] sm:$0xff]
  %v168 = vld [vmem:[%s0 + $0x4e8] sm:$0xff]
  %v169 = vld [vmem:[%s0 + $0x4f0] sm:$0xff]
  %v170 = vld [vmem:[%s0 + $0x4f8] sm:$0xff]
  %v171 = vld [vmem:[%s0 + $0x500] sm:$0xff]
  %v172 = vld [vmem:[%s0 + $0x508] sm:$0xff]
  %v173 = vld [vmem:[%s0 + $0x510] sm:$0xff]
  %v174 = vld [vmem:[%s0 + $0x518] sm:$0xff]
  %v175 = vld [vmem:[%s0 + $0x520] sm:$0xff]
  %v176 = vld [vmem:[%s0 + $0x528] sm:$0xff]
  %v177 = vld [vmem:[%s0 + $0x530] sm:$0xff]
  %v178 = vld [vmem:[%s0 + $0x538] sm:$0xff]
  %v179 = vld [vmem:[%s0 + $0x540] sm:$0xff]
  %v180 = vld [vmem:[%s0 + $0x548] sm:$0xff]
  %v181 = vld [vmem:[%s0 + $0x550] sm:$0xff]
  %v182 = vld [vmem:[%s0 + $0x558] sm:$0xff]
  %v183 = vld [vmem:[%s0 + $0x560] sm:$0xff]
  %v184 = vld [vmem:[%s0 + $0x568] sm:$0xff]
  %v185 = vld [vmem:[%s0 + $0x570] sm:$0xff]
  %v186 = vld [vmem:[%s0 + $0x578] sm:$0xff]
  %v187 = vld [vmem:[%s0 + $0x580] sm:$0xff]
  %v188 = vld [vmem:[%s0 + $0x588] sm:$0xff]
  %v189 = vld [vmem:[%s0 + $0x590] sm:$0xff]
  %v190 = vld [vmem:[%s0 + $0x598] sm:$0xff]
  %v191 = vld [vmem:[%s0 + $0x5a0] sm:$0xff]
  %v192 = vld [vmem:[%s0 + $0x5a8] sm:$0xff]
  %v193 = vld [vmem:[%s0 + $0x5b0] sm:$0xff]
  %v194 = vld [vmem:[%s0 + $0x5b8] sm:$0xff]
  %v195 = vld [vmem:[%s0 + $0x5c0] sm:$0xff]
  %v196 = vld [vmem:[%s0 + $0x5c8] sm:$0xff]
  %v197 = vld [vmem:[%s0 + $0x5d0] sm:$0xff]
  %v198 = vld [vmem:[%s0 + $0x5d8] sm:$0xff]
  %v199 = vld [vmem:[%s0 + $0x5e0] sm:$0xff]
  %v200 = vld [vmem:[%s0 + $0x5e8] sm:$0xff]
  %v201 = vld [vmem:[%s0 + $0x5f0] sm:$0xff]
  %v202 = vld [vmem:[%s0 + $0x5f8] sm:$0xff]
  %v203 = vld [vmem:[%s0 + $0x600] sm:$0xff]
  %v204 = vld [vmem:[%s0 + $0x608] sm:$0xff]
  %v205 = vld [vmem:[%s0 + $0x610] sm:$0xff]
  %v206 = vld [vmem:[%s0 + $0x618] sm:$0xff]
  %v207 = vld [vmem:[%s0 + $0x620] sm:$0xff]
  %v208 = vld [vmem:[%s0 + $0x628] sm:$0xff]
  %v209 = vld [vmem:[%s0 + $0x630] sm:$0xff]
  %v210 = vld [vmem:[%s0 + $0x638] sm:$0xff]
  %v211 = vld [vmem:[%s1] sm:$0xff]
  %v212 = vld [vmem:[%s1 + $0x8] sm:$0xff]
  %v213 = vld [vmem:[%s1 + $0x10] sm:$0xff]
  %v214 = vld [vmem:[%s1 + $0x18] sm:$0xff]
  %v215 = vld [vmem:[%s1 + $0x20] sm:$0xff]
  %v216 = vld [vmem:[%s1 + $0x28] sm:$0xff]
  %v217 = vld [vmem:[%s1 + $0x30] sm:$0xff]
  %v218 = vld [vmem:[%s1 + $0x38] sm:$0xff]
  %v219 = vld [vmem:[%s1 + $0x40] sm:$0xff]
  %v220 = vld [vmem:[%s1 + $0x48] sm:$0xff]
  %v221 = vld [vmem:[%s1 + $0x50] sm:$0xff]
  %v222 = vld [vmem:[%s1 + $0x58] sm:$0xff]
  %v223 = vld [vmem:[%s1 + $0x60] sm:$0xff]
  %v224 = vld [vmem:[%s1 + $0x68] sm:$0xff]
  %v225 = vld [vmem:[%s1 + $0x70] sm:$0xff]
  %v226 = vld [vmem:[%s1 + $0x78] sm:$0xff]
  %v227 = vld [vmem:[%s1 + $0x80] sm:$0xff]
  %v228 = vld [vmem:[%s1 + $0x88] sm:$0xff]
  %v229 = vld [vmem:[%s1 + $0x90] sm:$0xff]
  %v230 = vld [vmem:[%s1 + $0x98] sm:$0xff]
  %v231 = vld [vmem:[%s1 + $0xa0] sm:$0xff]
  %v232 = vld [vmem:[%s1 + $0xa8] sm:$0xff]
  %v233 = vld [vmem:[%s1 + $0xb0] sm:$0xff]
  %v234 = vld [vmem:[%s1 + $0xb8] sm:$0xff]
  %v235 = vld [vmem:[%s1 + $0xc0] sm:$0xff]
  %v236 = vld [vmem:[%s1 + $0xc8] sm:$0xff]
  %v237 = vld [vmem:[%s1 + $0xd0] sm:$0xff]
  %v238 = vld [vmem:[%s1 + $0xd8] sm:$0xff]
  %v239 = vld [vmem:[%s1 + $0xe0] sm:$0xff]
  %v240 = vld [vmem:[%s1 + $0xe8] sm:$0xff]
  %v241 = vld [vmem:[%s1 + $0xf0] sm:$0xff]
  %v242 = vld [vmem:[%s1 + $0xf8] sm:$0xff]
  %243 = vmatprep.subr.mxu0 0.0
  %244 = vmatpush1.msra.mxu0 %v211
  %245 = vmatprep.subr.mxu0 0.0
  %246 = vmatpush1.msra.mxu0 %v212
  %247 = vmatprep.subr.mxu0 0.0
  %248 = vmatpush1.msra.mxu0 %v213
  %249 = vmatprep.subr.mxu0 0.0
  %250 = vmatpush1.msra.mxu0 %v214
  %251 = vmatprep.subr.mxu0 0.0
  %252 = vmatpush1.msra.mxu0 %v215
  %253 = vmatprep.subr.mxu0 0.0
  %254 = vmatpush1.msra.mxu0 %v216
  %255 = vmatprep.subr.mxu0 0.0
  %256 = vmatpush1.msra.mxu0 %v217
  %257 = vmatprep.subr.mxu0 0.0
  %258 = vmatpush1.msra.mxu0 %v218
  %259 = vmatprep.subr.mxu0 0.0
  %260 = vmatpush1.msra.mxu0 %v219
  %261 = vmatprep.subr.mxu0 0.0
  %262 = vmatpush1.msra.mxu0 %v220
  %263 = vmatprep.subr.mxu0 0.0
  %264 = vmatpush1.msra.mxu0 %v221
  %265 = vmatprep.subr.mxu0 0.0
  %266 = vmatpush1.msra.mxu0 %v222
  %267 = vmatprep.subr.mxu0 0.0
  %268 = vmatpush1.msra.mxu0 %v223
  %269 = vmatprep.subr.mxu0 0.0
  %270 = vmatpush1.msra.mxu0 %v224
  %271 = vmatprep.subr.mxu0 0.0
  %272 = vmatpush1.msra.mxu0 %v225
  %273 = vmatprep.subr.mxu0 0.0
  %274 = vmatpush1.msra.mxu0 %v226
  %275 = vmatprep.subr.mxu0 0.0
  %276 = vmatpush1.msra.mxu0 %v227
  %277 = vmatprep.subr.mxu0 0.0
  %278 = vmatpush1.msra.mxu0 %v228
  %279 = vmatprep.subr.mxu0 0.0
  %280 = vmatpush1.msra.mxu0 %v229
  %281 = vmatprep.subr.mxu0 0.0
  %282 = vmatpush1.msra.mxu0 %v230
  %283 = vmatprep.subr.mxu0 0.0
  %284 = vmatpush1.msra.mxu0 %v231
  %285 = vmatprep.subr.mxu0 0.0
  %286 = vmatpush1.msra.mxu0 %v232
  %287 = vmatprep.subr.mxu0 0.0
  %288 = vmatpush1.msra.mxu0 %v233
  %289 = vmatprep.subr.mxu0 0.0
  %290 = vmatpush1.msra.mxu0 %v234
  %291 = vmatprep.subr.mxu0 0.0
  %292 = vmatpush1.msra.mxu0 %v235
  %293 = vmatprep.subr.mxu0 0.0
  %294 = vmatpush1.msra.mxu0 %v236
  %295 = vmatprep.subr.mxu0 0.0
  %296 = vmatpush1.msra.mxu0 %v237
  %297 = vmatprep.subr.mxu0 0.0
  %298 = vmatpush1.msra.mxu0 %v238
  %299 = vmatprep.subr.mxu0 0.0
  %300 = vmatpush1.msra.mxu0 %v239
  %301 = vmatprep.subr.mxu0 0.0
  %302 = vmatpush1.msra.mxu0 %v240
  %303 = vmatprep.subr.mxu0 0.0
  %304 = vmatpush1.msra.mxu0 %v241
  %305 = vmatprep.subr.mxu0 0.0
  %306 = vmatpush1.msra.mxu0 %v242
  %307 = vmatprep.mubr.f32.mxu0 %v12
  %308 = vmatmul.mubr.f32.gmra.mrb[0].mxu0 %v11
  %v309 = vpop.f32.mrb[0].mxu0
  %v310 = vadd.f32 0.0, %v309
  %v311 = vpop.f32.mrb[0].mxu0
  %312 = vmatprep.mubr.f32.mxu0 %v14
  %313 = vmatmul.mubr.f32.gmra.mrb[0].mxu0 %v13
  %v314 = vpop.f32.mrb[0].mxu0
  %v315 = vadd.f32 0.0, %v314
  %v316 = vpop.f32.mrb[0].mxu0
  %317 = vmatprep.mubr.f32.mxu0 %v16
  %318 = vmatmul.mubr.f32.gmra.mrb[0].mxu0 %v15
  %v319 = vpop.f32.mrb[0].mxu0
  %v320 = vadd.f32 0.0, %v319
  %v321 = vpop.f32.mrb[0].mxu0
  %322 = vmatprep.mubr.f32.mxu0 %v18
  %323 = vmatmul.mubr.f32.gmra.mrb[0].mxu0 %v17
  %v324 = vpop.f32.mrb[0].mxu0
  %v325 = vadd.f32 0.0, %v324
  %v326 = vpop.f32.mrb[0].mxu0
  %327 = vmatprep.mubr.f32.mxu0 %v20
  %328 = vmatmul.mubr.f32.gmra.mrb[0].mxu0 %v19
  %v329 = vpop.f32.mrb[0].mxu0
  %v330 = vadd.f32 0.0, %v329
  %v331 = vpop.f32.mrb[0].mxu0
  %332 = vmatprep.mubr.f32.mxu0 %v22
  %333 = vmatmul.mubr.f32.gmra.mrb[0].mxu0 %v21
  %v334 = vpop.f32.mrb[0].mxu0
  %v335 = vadd.f32 0.0, %v334
  %v336 = vpop.f32.mrb[0].mxu0
  %337 = vmatprep.mubr.f32.mxu0 %v24
  %338 = vmatmul.mubr.f32.gmra.mrb[0].mxu0 %v23
  %v339 = vpop.f32.mrb[0].mxu0
  %v340 = vadd.f32 0.0, %v339
  %v341 = vpop.f32.mrb[0].mxu0
  %342 = vmatprep.mubr.f32.mxu0 %v26
  %343 = vmatmul.mubr.f32.gmra.mrb[0].mxu0 %v25
  %v344 = vpop.f32.mrb[0].mxu0
  %v345 = vadd.f32 0.0, %v344
  %v346 = vpop.f32.mrb[0].mxu0
  %347 = vmatprep.mubr.f32.mxu0 %v28
  %348 = vmatmul.mubr.f32.gmra.mrb[0].mxu0 %v27
  %v349 = vpop.f32.mrb[0].mxu0
  %v350 = vadd.f32 0.0, %v349
  %v351 = vpop.f32.mrb[0].mxu0
  %352 = vmatprep.mubr.f32.mxu0 %v30
  %353 = vmatmul.mubr.f32.gmra.mrb[0].mxu0 %v29
  %v354 = vpop.f32.mrb[0].mxu0
  %v355 = vadd.f32 0.0, %v354
  %v356 = vpop.f32.mrb[0].mxu0
  %357 = vmatprep.mubr.f32.mxu0 %v32
  %358 = vmatmul.mubr.f32.gmra.mrb[0].mxu0 %v31
  %v359 = vpop.f32.mrb[0].mxu0
  %v360 = vadd.f32 0.0, %v359
  %v361 = vpop.f32.mrb[0].mxu0
  %362 = vmatprep.mubr.f32.mxu0 %v34
  %363 = vmatmul.mubr.f32.gmra.mrb[0].mxu0 %v33
  %v364 = vpop.f32.mrb[0].mxu0
  %v365 = vadd.f32 0.0, %v364
  %v366 = vpop.f32.mrb[0].mxu0
  %367 = vmatprep.mubr.f32.mxu0 %v36
  %368 = vmatmul.mubr.f32.gmra.mrb[0].mxu0 %v35
  %v369 = vpop.f32.mrb[0].mxu0
  %v370 = vadd.f32 0.0, %v369
  %v371 = vpop.f32.mrb[0].mxu0
  %372 = vmatprep.mubr.f32.mxu0 %v38
  %373 = vmatmul.mubr.f32.gmra.mrb[0].mxu0 %v37
  %v374 = vpop.f32.mrb[0].mxu0
  %v375 = vadd.f32 0.0, %v374
  %v376 = vpop.f32.mrb[0].mxu0
  %377 = vmatprep.mubr.f32.mxu0 %v40
  %378 = vmatmul.mubr.f32.gmra.mrb[0].mxu0 %v39
  %v379 = vpop.f32.mrb[0].mxu0
  %v380 = vadd.f32 0.0, %v379
  %v381 = vpop.f32.mrb[0].mxu0
  %382 = vmatprep.mubr.f32.mxu0 %v42
  %383 = vmatmul.mubr.f32.gmra.mrb[0].mxu0 %v41
  %v384 = vpop.f32.mrb[0].mxu0
  %v385 = vadd.f32 0.0, %v384
  %v386 = vpop.f32.mrb[0].mxu0
  %387 = vmatprep.mubr.f32.mxu0 %v44
  %388 = vmatmul.mubr.f32.gmra.mrb[0].mxu0 %v43
  %v389 = vpop.f32.mrb[0].mxu0
  %v390 = vadd.f32 0.0, %v389
  %v391 = vpop.f32.mrb[0].mxu0
  %392 = vmatprep.mubr.f32.mxu0 %v46
  %393 = vmatmul.mubr.f32.gmra.mrb[0].mxu0 %v45
  %v394 = vpop.f32.mrb[0].mxu0
  %v395 = vadd.f32 0.0, %v394
  %v396 = vpop.f32.mrb[0].mxu0
  %397 = vmatprep.mubr.f32.mxu0 %v48
  %398 = vmatmul.mubr.f32.gmra.mrb[0].mxu0 %v47
  %v399 = vpop.f32.mrb[0].mxu0
  %v400 = vadd.f32 0.0, %v399
  %v401 = vpop.f32.mrb[0].mxu0
  %402 = vmatprep.mubr.f32.mxu0 %v50
  %403 = vmatmul.mubr.f32.gmra.mrb[0].mxu0 %v49
  %v404 = vpop.f32.mrb[0].mxu0
  %v405 = vadd.f32 0.0, %v404
  %v406 = vpop.f32.mrb[0].mxu0
  %407 = vmatprep.mubr.f32.mxu0 %v52
  %408 = vmatmul.mubr.f32.gmra.mrb[0].mxu0 %v51
  %v409 = vpop.f32.mrb[0].mxu0
  %v410 = vadd.f32 0.0, %v409
  %v411 = vpop.f32.mrb[0].mxu0
  %412 = vmatprep.mubr.f32.mxu0 %v54
  %413 = vmatmul.mubr.f32.gmra.mrb[0].mxu0 %v53
  %v414 = vpop.f32.mrb[0].mxu0
  %v415 = vadd.f32 0.0, %v414
  %v416 = vpop.f32.mrb[0].mxu0
  %417 = vmatprep.mubr.f32.mxu0 %v56
  %418 = vmatmul.mubr.f32.gmra.mrb[0].mxu0 %v55
  %v419 = vpop.f32.mrb[0].mxu0
  %v420 = vadd.f32 0.0, %v419
  %v421 = vpop.f32.mrb[0].mxu0
  %422 = vmatprep.mubr.f32.mxu0 %v58
  %423 = vmatmul.mubr.f32.gmra.mrb[0].mxu0 %v57
  %v424 = vpop.f32.mrb[0].mxu0
  %v425 = vadd.f32 0.0, %v424
  %v426 = vpop.f32.mrb[0].mxu0
  %427 = vmatprep.mubr.f32.mxu0 %v60
  %428 = vmatmul.mubr.f32.gmra.mrb[0].mxu0 %v59
  %v429 = vpop.f32.mrb[0].mxu0
  %v430 = vadd.f32 0.0, %v429
  %v431 = vpop.f32.mrb[0].mxu0
  %432 = vmatprep.mubr.f32.mxu0 %v62
  %433 = vmatmul.mubr.f32.gmra.mrb[0].mxu0 %v61
  %v434 = vpop.f32.mrb[0].mxu0
  %v435 = vadd.f32 0.0, %v434
  %v436 = vpop.f32.mrb[0].mxu0
  %437 = vmatprep.mubr.f32.mxu0 %v64
  %438 = vmatmul.mubr.f32.gmra.mrb[0].mxu0 %v63
  %v439 = vpop.f32.mrb[0].mxu0
  %v440 = vadd.f32 0.0, %v439
  %v441 = vpop.f32.mrb[0].mxu0
  %442 = vmatprep.mubr.f32.mxu0 %v66
  %443 = vmatmul.mubr.f32.gmra.mrb[0].mxu0 %v65
  %v444 = vpop.f32.mrb[0].mxu0
  %v445 = vadd.f32 0.0, %v444
  %v446 = vpop.f32.mrb[0].mxu0
  %447 = vmatprep.mubr.f32.mxu0 %v68
  %448 = vmatmul.mubr.f32.gmra.mrb[0].mxu0 %v67
  %v449 = vpop.f32.mrb[0].mxu0
  %v450 = vadd.f32 0.0, %v449
  %v451 = vpop.f32.mrb[0].mxu0
  %452 = vmatprep.mubr.f32.mxu0 %v70
  %453 = vmatmul.mubr.f32.gmra.mrb[0].mxu0 %v69
  %v454 = vpop.f32.mrb[0].mxu0
  %v455 = vadd.f32 0.0, %v454
  %v456 = vpop.f32.mrb[0].mxu0
  %457 = vmatprep.mubr.f32.mxu0 %v72
  %458 = vmatmul.mubr.f32.gmra.mrb[0].mxu0 %v71
  %v459 = vpop.f32.mrb[0].mxu0
  %v460 = vadd.f32 0.0, %v459
  %v461 = vpop.f32.mrb[0].mxu0
  %462 = vmatprep.mubr.f32.mxu0 %v74
  %463 = vmatmul.mubr.f32.gmra.mrb[0].mxu0 %v73
  %v464 = vpop.f32.mrb[0].mxu0
  %v465 = vadd.f32 0.0, %v464
  %v466 = vpop.f32.mrb[0].mxu0
  %467 = vmatprep.mubr.f32.mxu0 %v76
  %468 = vmatmul.mubr.f32.gmra.mrb[0].mxu0 %v75
  %v469 = vpop.f32.mrb[0].mxu0
  %v470 = vadd.f32 0.0, %v469
  %v471 = vpop.f32.mrb[0].mxu0
  %472 = vmatprep.mubr.f32.mxu0 %v78
  %473 = vmatmul.mubr.f32.gmra.mrb[0].mxu0 %v77
  %v474 = vpop.f32.mrb[0].mxu0
  %v475 = vadd.f32 0.0, %v474
  %v476 = vpop.f32.mrb[0].mxu0
  %477 = vmatprep.mubr.f32.mxu0 %v80
  %478 = vmatmul.mubr.f32.gmra.mrb[0].mxu0 %v79
  %v479 = vpop.f32.mrb[0].mxu0
  %v480 = vadd.f32 0.0, %v479
  %v481 = vpop.f32.mrb[0].mxu0
  %482 = vmatprep.mubr.f32.mxu0 %v82
  %483 = vmatmul.mubr.f32.gmra.mrb[0].mxu0 %v81
  %v484 = vpop.f32.mrb[0].mxu0
  %v485 = vadd.f32 0.0, %v484
  %v486 = vpop.f32.mrb[0].mxu0
  %487 = vmatprep.mubr.f32.mxu0 %v84
  %488 = vmatmul.mubr.f32.gmra.mrb[0].mxu0 %v83
  %v489 = vpop.f32.mrb[0].mxu0
  %v490 = vadd.f32 0.0, %v489
  %v491 = vpop.f32.mrb[0].mxu0
  %492 = vmatprep.mubr.f32.mxu0 %v86
  %493 = vmatmul.mubr.f32.gmra.mrb[0].mxu0 %v85
  %v494 = vpop.f32.mrb[0].mxu0
  %v495 = vadd.f32 0.0, %v494
  %v496 = vpop.f32.mrb[0].mxu0
  %497 = vmatprep.mubr.f32.mxu0 %v88
  %498 = vmatmul.mubr.f32.gmra.mrb[0].mxu0 %v87
  %v499 = vpop.f32.mrb[0].mxu0
  %v500 = vadd.f32 0.0, %v499
  %v501 = vpop.f32.mrb[0].mxu0
  %502 = vmatprep.mubr.f32.mxu0 %v90
  %503 = vmatmul.mubr.f32.gmra.mrb[0].mxu0 %v89
  %v504 = vpop.f32.mrb[0].mxu0
  %v505 = vadd.f32 0.0, %v504
  %v506 = vpop.f32.mrb[0].mxu0
  %507 = vmatprep.mubr.f32.mxu0 %v92
  %508 = vmatmul.mubr.f32.gmra.mrb[0].mxu0 %v91
  %v509 = vpop.f32.mrb[0].mxu0
  %v510 = vadd.f32 0.0, %v509
  %v511 = vpop.f32.mrb[0].mxu0
  %512 = vmatprep.mubr.f32.mxu0 %v94
  %513 = vmatmul.mubr.f32.gmra.mrb[0].mxu0 %v93
  %v514 = vpop.f32.mrb[0].mxu0
  %v515 = vadd.f32 0.0, %v514
  %v516 = vpop.f32.mrb[0].mxu0
  %517 = vmatprep.mubr.f32.mxu0 %v96
  %518 = vmatmul.mubr.f32.gmra.mrb[0].mxu0 %v95
  %v519 = vpop.f32.mrb[0].mxu0
  %v520 = vadd.f32 0.0, %v519
  %v521 = vpop.f32.mrb[0].mxu0
  %522 = vmatprep.mubr.f32.mxu0 %v98
  %523 = vmatmul.mubr.f32.gmra.mrb[0].mxu0 %v97
  %v524 = vpop.f32.mrb[0].mxu0
  %v525 = vadd.f32 0.0, %v524
  %v526 = vpop.f32.mrb[0].mxu0
  %527 = vmatprep.mubr.f32.mxu0 %v100
  %528 = vmatmul.mubr.f32.gmra.mrb[0].mxu0 %v99
  %v529 = vpop.f32.mrb[0].mxu0
  %v530 = vadd.f32 0.0, %v529
  %v531 = vpop.f32.mrb[0].mxu0
  %532 = vmatprep.mubr.f32.mxu0 %v102
  %533 = vmatmul.mubr.f32.gmra.mrb[0].mxu0 %v101
  %v534 = vpop.f32.mrb[0].mxu0
  %v535 = vadd.f32 0.0, %v534
  %v536 = vpop.f32.mrb[0].mxu0
  %537 = vmatprep.mubr.f32.mxu0 %v104
  %538 = vmatmul.mubr.f32.gmra.mrb[0].mxu0 %v103
  %v539 = vpop.f32.mrb[0].mxu0
  %v540 = vadd.f32 0.0, %v539
  %v541 = vpop.f32.mrb[0].mxu0
  %542 = vmatprep.mubr.f32.mxu0 %v106
  %543 = vmatmul.mubr.f32.gmra.mrb[0].mxu0 %v105
  %v544 = vpop.f32.mrb[0].mxu0
  %v545 = vadd.f32 0.0, %v544
  %v546 = vpop.f32.mrb[0].mxu0
  %547 = vmatprep.mubr.f32.mxu0 %v108
  %548 = vmatmul.mubr.f32.gmra.mrb[0].mxu0 %v107
  %v549 = vpop.f32.mrb[0].mxu0
  %v550 = vadd.f32 0.0, %v549
  %v551 = vpop.f32.mrb[0].mxu0
  %552 = vmatprep.mubr.f32.mxu0 %v110
  %553 = vmatmul.mubr.f32.gmra.mrb[0].mxu0 %v109
  %v554 = vpop.f32.mrb[0].mxu0
  %v555 = vadd.f32 0.0, %v554
  %v556 = vpop.f32.mrb[0].mxu0
  %557 = vmatprep.mubr.f32.mxu0 %v112
  %558 = vmatmul.mubr.f32.gmra.mrb[0].mxu0 %v111
  %v559 = vpop.f32.mrb[0].mxu0
  %v560 = vadd.f32 0.0, %v559
  %v561 = vpop.f32.mrb[0].mxu0
  %562 = vmatprep.mubr.f32.mxu0 %v114
  %563 = vmatmul.mubr.f32.gmra.mrb[0].mxu0 %v113
  %v564 = vpop.f32.mrb[0].mxu0
  %v565 = vadd.f32 0.0, %v564
  %v566 = vpop.f32.mrb[0].mxu0
  %567 = vmatprep.mubr.f32.mxu0 %v116
  %568 = vmatmul.mubr.f32.gmra.mrb[0].mxu0 %v115
  %v569 = vpop.f32.mrb[0].mxu0
  %v570 = vadd.f32 0.0, %v569
  %v571 = vpop.f32.mrb[0].mxu0
  %572 = vmatprep.mubr.f32.mxu0 %v118
  %573 = vmatmul.mubr.f32.gmra.mrb[0].mxu0 %v117
  %v574 = vpop.f32.mrb[0].mxu0
  %v575 = vadd.f32 0.0, %v574
  %v576 = vpop.f32.mrb[0].mxu0
  %577 = vmatprep.mubr.f32.mxu0 %v120
  %578 = vmatmul.mubr.f32.gmra.mrb[0].mxu0 %v119
  %v579 = vpop.f32.mrb[0].mxu0
  %v580 = vadd.f32 0.0, %v579
  %v581 = vpop.f32.mrb[0].mxu0
  %582 = vmatprep.mubr.f32.mxu0 %v122
  %583 = vmatmul.mubr.f32.gmra.mrb[0].mxu0 %v121
  %v584 = vpop.f32.mrb[0].mxu0
  %v585 = vadd.f32 0.0, %v584
  %v586 = vpop.f32.mrb[0].mxu0
  %587 = vmatprep.mubr.f32.mxu0 %v124
  %588 = vmatmul.mubr.f32.gmra.mrb[0].mxu0 %v123
  %v589 = vpop.f32.mrb[0].mxu0
  %v590 = vadd.f32 0.0, %v589
  %v591 = vpop.f32.mrb[0].mxu0
  %592 = vmatprep.mubr.f32.mxu0 %v126
  %593 = vmatmul.mubr.f32.gmra.mrb[0].mxu0 %v125
  %v594 = vpop.f32.mrb[0].mxu0
  %v595 = vadd.f32 0.0, %v594
  %v596 = vpop.f32.mrb[0].mxu0
  %597 = vmatprep.mubr.f32.mxu0 %v128
  %598 = vmatmul.mubr.f32.gmra.mrb[0].mxu0 %v127
  %v599 = vpop.f32.mrb[0].mxu0
  %v600 = vadd.f32 0.0, %v599
  %v601 = vpop.f32.mrb[0].mxu0
  %602 = vmatprep.mubr.f32.mxu0 %v130
  %603 = vmatmul.mubr.f32.gmra.mrb[0].mxu0 %v129
  %v604 = vpop.f32.mrb[0].mxu0
  %v605 = vadd.f32 0.0, %v604
  %v606 = vpop.f32.mrb[0].mxu0
  %607 = vmatprep.mubr.f32.mxu0 %v132
  %608 = vmatmul.mubr.f32.gmra.mrb[0].mxu0 %v131
  %v609 = vpop.f32.mrb[0].mxu0
  %v610 = vadd.f32 0.0, %v609
  %v611 = vpop.f32.mrb[0].mxu0
  %612 = vmatprep.mubr.f32.mxu0 %v134
  %613 = vmatmul.mubr.f32.gmra.mrb[0].mxu0 %v133
  %v614 = vpop.f32.mrb[0].mxu0
  %v615 = vadd.f32 0.0, %v614
  %v616 = vpop.f32.mrb[0].mxu0
  %617 = vmatprep.mubr.f32.mxu0 %v136
  %618 = vmatmul.mubr.f32.gmra.mrb[0].mxu0 %v135
  %v619 = vpop.f32.mrb[0].mxu0
  %v620 = vadd.f32 0.0, %v619
  %v621 = vpop.f32.mrb[0].mxu0
  %622 = vmatprep.mubr.f32.mxu0 %v138
  %623 = vmatmul.mubr.f32.gmra.mrb[0].mxu0 %v137
  %v624 = vpop.f32.mrb[0].mxu0
  %v625 = vadd.f32 0.0, %v624
  %v626 = vpop.f32.mrb[0].mxu0
  %627 = vmatprep.mubr.f32.mxu0 %v140
  %628 = vmatmul.mubr.f32.gmra.mrb[0].mxu0 %v139
  %v629 = vpop.f32.mrb[0].mxu0
  %v630 = vadd.f32 0.0, %v629
  %v631 = vpop.f32.mrb[0].mxu0
  %632 = vmatprep.mubr.f32.mxu0 %v142
  %633 = vmatmul.mubr.f32.gmra.mrb[0].mxu0 %v141
  %v634 = vpop.f32.mrb[0].mxu0
  %v635 = vadd.f32 0.0, %v634
  %v636 = vpop.f32.mrb[0].mxu0
  %637 = vmatprep.mubr.f32.mxu0 %v144
  %638 = vmatmul.mubr.f32.gmra.mrb[0].mxu0 %v143
  %v639 = vpop.f32.mrb[0].mxu0
  %v640 = vadd.f32 0.0, %v639
  %v641 = vpop.f32.mrb[0].mxu0
  %642 = vmatprep.mubr.f32.mxu0 %v146
  %643 = vmatmul.mubr.f32.gmra.mrb[0].mxu0 %v145
  %v644 = vpop.f32.mrb[0].mxu0
  %v645 = vadd.f32 0.0, %v644
  %v646 = vpop.f32.mrb[0].mxu0
  %647 = vmatprep.mubr.f32.mxu0 %v148
  %648 = vmatmul.mubr.f32.gmra.mrb[0].mxu0 %v147
  %v649 = vpop.f32.mrb[0].mxu0
  %v650 = vadd.f32 0.0, %v649
  %v651 = vpop.f32.mrb[0].mxu0
  %652 = vmatprep.mubr.f32.mxu0 %v150
  %653 = vmatmul.mubr.f32.gmra.mrb[0].mxu0 %v149
  %v654 = vpop.f32.mrb[0].mxu0
  %v655 = vadd.f32 0.0, %v654
  %v656 = vpop.f32.mrb[0].mxu0
  %657 = vmatprep.mubr.f32.mxu0 %v152
  %658 = vmatmul.mubr.f32.gmra.mrb[0].mxu0 %v151
  %v659 = vpop.f32.mrb[0].mxu0
  %v660 = vadd.f32 0.0, %v659
  %v661 = vpop.f32.mrb[0].mxu0
  %662 = vmatprep.mubr.f32.mxu0 %v154
  %663 = vmatmul.mubr.f32.gmra.mrb[0].mxu0 %v153
  %v664 = vpop.f32.mrb[0].mxu0
  %v665 = vadd.f32 0.0, %v664
  %v666 = vpop.f32.mrb[0].mxu0
  %667 = vmatprep.mubr.f32.mxu0 %v156
  %668 = vmatmul.mubr.f32.gmra.mrb[0].mxu0 %v155
  %v669 = vpop.f32.mrb[0].mxu0
  %v670 = vadd.f32 0.0, %v669
  %v671 = vpop.f32.mrb[0].mxu0
  %672 = vmatprep.mubr.f32.mxu0 %v158
  %673 = vmatmul.mubr.f32.gmra.mrb[0].mxu0 %v157
  %v674 = vpop.f32.mrb[0].mxu0
  %v675 = vadd.f32 0.0, %v674
  %v676 = vpop.f32.mrb[0].mxu0
  %677 = vmatprep.mubr.f32.mxu0 %v160
  %678 = vmatmul.mubr.f32.gmra.mrb[0].mxu0 %v159
  %v679 = vpop.f32.mrb[0].mxu0
  %v680 = vadd.f32 0.0, %v679
  %v681 = vpop.f32.mrb[0].mxu0
  %682 = vmatprep.mubr.f32.mxu0 %v162
  %683 = vmatmul.mubr.f32.gmra.mrb[0].mxu0 %v161
  %v684 = vpop.f32.mrb[0].mxu0
  %v685 = vadd.f32 0.0, %v684
  %v686 = vpop.f32.mrb[0].mxu0
  %687 = vmatprep.mubr.f32.mxu0 %v164
  %688 = vmatmul.mubr.f32.gmra.mrb[0].mxu0 %v163
  %v689 = vpop.f32.mrb[0].mxu0
  %v690 = vadd.f32 0.0, %v689
  %v691 = vpop.f32.mrb[0].mxu0
  %692 = vmatprep.mubr.f32.mxu0 %v166
  %693 = vmatmul.mubr.f32.gmra.mrb[0].mxu0 %v165
  %v694 = vpop.f32.mrb[0].mxu0
  %v695 = vadd.f32 0.0, %v694
  %v696 = vpop.f32.mrb[0].mxu0
  %697 = vmatprep.mubr.f32.mxu0 %v168
  %698 = vmatmul.mubr.f32.gmra.mrb[0].mxu0 %v167
  %v699 = vpop.f32.mrb[0].mxu0
  %v700 = vadd.f32 0.0, %v699
  %v701 = vpop.f32.mrb[0].mxu0
  %702 = vmatprep.mubr.f32.mxu0 %v170
  %703 = vmatmul.mubr.f32.gmra.mrb[0].mxu0 %v169
  %v704 = vpop.f32.mrb[0].mxu0
  %v705 = vadd.f32 0.0, %v704
  %v706 = vpop.f32.mrb[0].mxu0
  %707 = vmatprep.mubr.f32.mxu0 %v172
  %708 = vmatmul.mubr.f32.gmra.mrb[0].mxu0 %v171
  %v709 = vpop.f32.mrb[0].mxu0
  %v710 = vadd.f32 0.0, %v709
  %v711 = vpop.f32.mrb[0].mxu0
  %712 = vmatprep.mubr.f32.mxu0 %v174
  %713 = vmatmul.mubr.f32.gmra.mrb[0].mxu0 %v173
  %v714 = vpop.f32.mrb[0].mxu0
  %v715 = vadd.f32 0.0, %v714
  %v716 = vpop.f32.mrb[0].mxu0
  %717 = vmatprep.mubr.f32.mxu0 %v176
  %718 = vmatmul.mubr.f32.gmra.mrb[0].mxu0 %v175
  %v719 = vpop.f32.mrb[0].mxu0
  %v720 = vadd.f32 0.0, %v719
  %v721 = vpop.f32.mrb[0].mxu0
  %722 = vmatprep.mubr.f32.mxu0 %v178
  %723 = vmatmul.mubr.f32.gmra.mrb[0].mxu0 %v177
  %v724 = vpop.f32.mrb[0].mxu0
  %v725 = vadd.f32 0.0, %v724
  %v726 = vpop.f32.mrb[0].mxu0
  %727 = vmatprep.mubr.f32.mxu0 %v180
  %728 = vmatmul.mubr.f32.gmra.mrb[0].mxu0 %v179
  %v729 = vpop.f32.mrb[0].mxu0
  %v730 = vadd.f32 0.0, %v729
  %v731 = vpop.f32.mrb[0].mxu0
  %732 = vmatprep.mubr.f32.mxu0 %v182
  %733 = vmatmul.mubr.f32.gmra.mrb[0].mxu0 %v181
  %v734 = vpop.f32.mrb[0].mxu0
  %v735 = vadd.f32 0.0, %v734
  %v736 = vpop.f32.mrb[0].mxu0
  %737 = vmatprep.mubr.f32.mxu0 %v184
  %738 = vmatmul.mubr.f32.gmra.mrb[0].mxu0 %v183
  %v739 = vpop.f32.mrb[0].mxu0
  %v740 = vadd.f32 0.0, %v739
  %v741 = vpop.f32.mrb[0].mxu0
  %742 = vmatprep.mubr.f32.mxu0 %v186
  %743 = vmatmul.mubr.f32.gmra.mrb[0].mxu0 %v185
  %v744 = vpop.f32.mrb[0].mxu0
  %v745 = vadd.f32 0.0, %v744
  %v746 = vpop.f32.mrb[0].mxu0
  %747 = vmatprep.mubr.f32.mxu0 %v188
  %748 = vmatmul.mubr.f32.gmra.mrb[0].mxu0 %v187
  %v749 = vpop.f32.mrb[0].mxu0
  %v750 = vadd.f32 0.0, %v749
  %v751 = vpop.f32.mrb[0].mxu0
  %752 = vmatprep.mubr.f32.mxu0 %v190
  %753 = vmatmul.mubr.f32.gmra.mrb[0].mxu0 %v189
  %v754 = vpop.f32.mrb[0].mxu0
  %v755 = vadd.f32 0.0, %v754
  %v756 = vpop.f32.mrb[0].mxu0
  %757 = vmatprep.mubr.f32.mxu0 %v192
  %758 = vmatmul.mubr.f32.gmra.mrb[0].mxu0 %v191
  %v759 = vpop.f32.mrb[0].mxu0
  %v760 = vadd.f32 0.0, %v759
  %v761 = vpop.f32.mrb[0].mxu0
  %762 = vmatprep.mubr.f32.mxu0 %v194
  %763 = vmatmul.mubr.f32.gmra.mrb[0].mxu0 %v193
  %v764 = vpop.f32.mrb[0].mxu0
  %v765 = vadd.f32 0.0, %v764
  %v766 = vpop.f32.mrb[0].mxu0
  %767 = vmatprep.mubr.f32.mxu0 %v196
  %768 = vmatmul.mubr.f32.gmra.mrb[0].mxu0 %v195
  %v769 = vpop.f32.mrb[0].mxu0
  %v770 = vadd.f32 0.0, %v769
  %v771 = vpop.f32.mrb[0].mxu0
  %772 = vmatprep.mubr.f32.mxu0 %v198
  %773 = vmatmul.mubr.f32.gmra.mrb[0].mxu0 %v197
  %v774 = vpop.f32.mrb[0].mxu0
  %v775 = vadd.f32 0.0, %v774
  %v776 = vpop.f32.mrb[0].mxu0
  %777 = vmatprep.mubr.f32.mxu0 %v200
  %778 = vmatmul.mubr.f32.gmra.mrb[0].mxu0 %v199
  %v779 = vpop.f32.mrb[0].mxu0
  %v780 = vadd.f32 0.0, %v779
  %v781 = vpop.f32.mrb[0].mxu0
  %782 = vmatprep.mubr.f32.mxu0 %v202
  %783 = vmatmul.mubr.f32.gmra.mrb[0].mxu0 %v201
  %v784 = vpop.f32.mrb[0].mxu0
  %v785 = vadd.f32 0.0, %v784
  %v786 = vpop.f32.mrb[0].mxu0
  %787 = vmatprep.mubr.f32.mxu0 %v204
  %788 = vmatmul.mubr.f32.gmra.mrb[0].mxu0 %v203
  %v789 = vpop.f32.mrb[0].mxu0
  %v790 = vadd.f32 0.0, %v789
  %v791 = vpop.f32.mrb[0].mxu0
  %792 = vmatprep.mubr.f32.mxu0 %v206
  %793 = vmatmul.mubr.f32.gmra.mrb[0].mxu0 %v205
  %v794 = vpop.f32.mrb[0].mxu0
  %v795 = vadd.f32 0.0, %v794
  %v796 = vpop.f32.mrb[0].mxu0
  %797 = vmatprep.mubr.f32.mxu0 %v208
  %798 = vmatmul.mubr.f32.gmra.mrb[0].mxu0 %v207
  %v799 = vpop.f32.mrb[0].mxu0
  %v800 = vadd.f32 0.0, %v799
  %v801 = vpop.f32.mrb[0].mxu0
  %802 = vmatprep.mubr.f32.mxu0 %v210
  %803 = vmatmul.mubr.f32.gmra.mrb[0].mxu0 %v209
  %v804 = vpop.f32.mrb[0].mxu0
  %v805 = vadd.f32 0.0, %v804
  %v806 = vpop.f32.mrb[0].mxu0
  %807 = vdwg.mxu0
  %v808 = vmax.f32 %v310, 0.0
  %v809 = vmax.f32 %v315, 0.0
  %v810 = vmax.f32 %v320, 0.0
  %v811 = vmax.f32 %v325, 0.0
  %v812 = vmax.f32 %v330, 0.0
  %v813 = vmax.f32 %v335, 0.0
  %v814 = vmax.f32 %v340, 0.0
  %v815 = vmax.f32 %v345, 0.0
  %v816 = vmax.f32 %v350, 0.0
  %v817 = vmax.f32 %v355, 0.0
  %v818 = vmax.f32 %v360, 0.0
  %v819 = vmax.f32 %v365, 0.0
  %v820 = vmax.f32 %v370, 0.0
  %v821 = vmax.f32 %v375, 0.0
  %v822 = vmax.f32 %v380, 0.0
  %v823 = vmax.f32 %v385, 0.0
  %v824 = vmax.f32 %v390, 0.0
  %v825 = vmax.f32 %v395, 0.0
  %v826 = vmax.f32 %v400, 0.0
  %v827 = vmax.f32 %v405, 0.0
  %v828 = vmax.f32 %v410, 0.0
  %v829 = vmax.f32 %v415, 0.0
  %v830 = vmax.f32 %v420, 0.0
  %v831 = vmax.f32 %v425, 0.0
  %v832 = vmax.f32 %v430, 0.0
  %v833 = vmax.f32 %v435, 0.0
  %v834 = vmax.f32 %v440, 0.0
  %v835 = vmax.f32 %v445, 0.0
  %v836 = vmax.f32 %v450, 0.0
  %v837 = vmax.f32 %v455, 0.0
  %v838 = vmax.f32 %v460, 0.0
  %v839 = vmax.f32 %v465, 0.0
  %v840 = vmax.f32 %v470, 0.0
  %v841 = vmax.f32 %v475, 0.0
  %v842 = vmax.f32 %v480, 0.0
  %v843 = vmax.f32 %v485, 0.0
  %v844 = vmax.f32 %v490, 0.0
  %v845 = vmax.f32 %v495, 0.0
  %v846 = vmax.f32 %v500, 0.0
  %v847 = vmax.f32 %v505, 0.0
  %v848 = vmax.f32 %v510, 0.0
  %v849 = vmax.f32 %v515, 0.0
  %v850 = vmax.f32 %v520, 0.0
  %v851 = vmax.f32 %v525, 0.0
  %v852 = vmax.f32 %v530, 0.0
  %v853 = vmax.f32 %v535, 0.0
  %v854 = vmax.f32 %v540, 0.0
  %v855 = vmax.f32 %v545, 0.0
  %v856 = vmax.f32 %v550, 0.0
  %v857 = vmax.f32 %v555, 0.0
  %v858 = vmax.f32 %v560, 0.0
  %v859 = vmax.f32 %v565, 0.0
  %v860 = vmax.f32 %v570, 0.0
  %v861 = vmax.f32 %v575, 0.0
  %v862 = vmax.f32 %v580, 0.0
  %v863 = vmax.f32 %v585, 0.0
  %v864 = vmax.f32 %v590, 0.0
  %v865 = vmax.f32 %v595, 0.0
  %v866 = vmax.f32 %v600, 0.0
  %v867 = vmax.f32 %v605, 0.0
  %v868 = vmax.f32 %v610, 0.0
  %v869 = vmax.f32 %v615, 0.0
  %v870 = vmax.f32 %v620, 0.0
  %v871 = vmax.f32 %v625, 0.0
  %v872 = vmax.f32 %v630, 0.0
  %v873 = vmax.f32 %v635, 0.0
  %v874 = vmax.f32 %v640, 0.0
  %v875 = vmax.f32 %v645, 0.0
  %v876 = vmax.f32 %v650, 0.0
  %v877 = vmax.f32 %v655, 0.0
  %v878 = vmax.f32 %v660, 0.0
  %v879 = vmax.f32 %v665, 0.0
  %v880 = vmax.f32 %v670, 0.0
  %v881 = vmax.f32 %v675, 0.0
  %v882 = vmax.f32 %v680, 0.0
  %v883 = vmax.f32 %v685, 0.0
  %v884 = vmax.f32 %v690, 0.0
  %v885 = vmax.f32 %v695, 0.0
  %v886 = vmax.f32 %v700, 0.0
  %v887 = vmax.f32 %v705, 0.0
  %v888 = vmax.f32 %v710, 0.0
  %v889 = vmax.f32 %v715, 0.0
  %v890 = vmax.f32 %v720, 0.0
  %v891 = vmax.f32 %v725, 0.0
  %v892 = vmax.f32 %v730, 0.0
  %v893 = vmax.f32 %v735, 0.0
  %v894 = vmax.f32 %v740, 0.0
  %v895 = vmax.f32 %v745, 0.0
  %v896 = vmax.f32 %v750, 0.0
  %v897 = vmax.f32 %v755, 0.0
  %v898 = vmax.f32 %v760, 0.0
  %v899 = vmax.f32 %v765, 0.0
  %v900 = vmax.f32 %v770, 0.0
  %v901 = vmax.f32 %v775, 0.0
  %v902 = vmax.f32 %v780, 0.0
  %v903 = vmax.f32 %v785, 0.0
  %v904 = vmax.f32 %v790, 0.0
  %v905 = vmax.f32 %v795, 0.0
  %v906 = vmax.f32 %v800, 0.0
  %v907 = vmax.f32 %v805, 0.0
  %vm908 = vcmask 130048
  %909 = vst.msk [vmem:[%s2] sm:$0xff] %vm908, %v808
  %910 = vst.msk [vmem:[%s2 + $0x8] sm:$0xff] %vm908, %v809
  %911 = vst.msk [vmem:[%s2 + $0x10] sm:$0xff] %vm908, %v810
  %912 = vst.msk [vmem:[%s2 + $0x18] sm:$0xff] %vm908, %v811
  %913 = vst.msk [vmem:[%s2 + $0x20] sm:$0xff] %vm908, %v812
  %914 = vst.msk [vmem:[%s2 + $0x28] sm:$0xff] %vm908, %v813
  %915 = vst.msk [vmem:[%s2 + $0x30] sm:$0xff] %vm908, %v814
  %916 = vst.msk [vmem:[%s2 + $0x38] sm:$0xff] %vm908, %v815
  %917 = vst.msk [vmem:[%s2 + $0x40] sm:$0xff] %vm908, %v816
  %918 = vst.msk [vmem:[%s2 + $0x48] sm:$0xff] %vm908, %v817
  %919 = vst.msk [vmem:[%s2 + $0x50] sm:$0xff] %vm908, %v818
  %920 = vst.msk [vmem:[%s2 + $0x58] sm:$0xff] %vm908, %v819
  %921 = vst.msk [vmem:[%s2 + $0x60] sm:$0xff] %vm908, %v820
  %922 = vst.msk [vmem:[%s2 + $0x68] sm:$0xff] %vm908, %v821
  %923 = vst.msk [vmem:[%s2 + $0x70] sm:$0xff] %vm908, %v822
  %924 = vst.msk [vmem:[%s2 + $0x78] sm:$0xff] %vm908, %v823
  %925 = vst.msk [vmem:[%s2 + $0x80] sm:$0xff] %vm908, %v824
  %926 = vst.msk [vmem:[%s2 + $0x88] sm:$0xff] %vm908, %v825
  %927 = vst.msk [vmem:[%s2 + $0x90] sm:$0xff] %vm908, %v826
  %928 = vst.msk [vmem:[%s2 + $0x98] sm:$0xff] %vm908, %v827
  %929 = vst.msk [vmem:[%s2 + $0xa0] sm:$0xff] %vm908, %v828
  %930 = vst.msk [vmem:[%s2 + $0xa8] sm:$0xff] %vm908, %v829
  %931 = vst.msk [vmem:[%s2 + $0xb0] sm:$0xff] %vm908, %v830
  %932 = vst.msk [vmem:[%s2 + $0xb8] sm:$0xff] %vm908, %v831
  %933 = vst.msk [vmem:[%s2 + $0xc0] sm:$0xff] %vm908, %v832
  %934 = vst.msk [vmem:[%s2 + $0xc8] sm:$0xff] %vm908, %v833
  %935 = vst.msk [vmem:[%s2 + $0xd0] sm:$0xff] %vm908, %v834
  %936 = vst.msk [vmem:[%s2 + $0xd8] sm:$0xff] %vm908, %v835
  %937 = vst.msk [vmem:[%s2 + $0xe0] sm:$0xff] %vm908, %v836
  %938 = vst.msk [vmem:[%s2 + $0xe8] sm:$0xff] %vm908, %v837
  %939 = vst.msk [vmem:[%s2 + $0xf0] sm:$0xff] %vm908, %v838
  %940 = vst.msk [vmem:[%s2 + $0xf8] sm:$0xff] %vm908, %v839
  %941 = vst.msk [vmem:[%s2 + $0x100] sm:$0xff] %vm908, %v840
  %942 = vst.msk [vmem:[%s2 + $0x108] sm:$0xff] %vm908, %v841
  %943 = vst.msk [vmem:[%s2 + $0x110] sm:$0xff] %vm908, %v842
  %944 = vst.msk [vmem:[%s2 + $0x118] sm:$0xff] %vm908, %v843
  %945 = vst.msk [vmem:[%s2 + $0x120] sm:$0xff] %vm908, %v844
  %946 = vst.msk [vmem:[%s2 + $0x128] sm:$0xff] %vm908, %v845
  %947 = vst.msk [vmem:[%s2 + $0x130] sm:$0xff] %vm908, %v846
  %948 = vst.msk [vmem:[%s2 + $0x138] sm:$0xff] %vm908, %v847
  %949 = vst.msk [vmem:[%s2 + $0x140] sm:$0xff] %vm908, %v848
  %950 = vst.msk [vmem:[%s2 + $0x148] sm:$0xff] %vm908, %v849
  %951 = vst.msk [vmem:[%s2 + $0x150] sm:$0xff] %vm908, %v850
  %952 = vst.msk [vmem:[%s2 + $0x158] sm:$0xff] %vm908, %v851
  %953 = vst.msk [vmem:[%s2 + $0x160] sm:$0xff] %vm908, %v852
  %954 = vst.msk [vmem:[%s2 + $0x168] sm:$0xff] %vm908, %v853
  %955 = vst.msk [vmem:[%s2 + $0x170] sm:$0xff] %vm908, %v854
  %956 = vst.msk [vmem:[%s2 + $0x178] sm:$0xff] %vm908, %v855
  %957 = vst.msk [vmem:[%s2 + $0x180] sm:$0xff] %vm908, %v856
  %958 = vst.msk [vmem:[%s2 + $0x188] sm:$0xff] %vm908, %v857
  %959 = vst.msk [vmem:[%s2 + $0x190] sm:$0xff] %vm908, %v858
  %960 = vst.msk [vmem:[%s2 + $0x198] sm:$0xff] %vm908, %v859
  %961 = vst.msk [vmem:[%s2 + $0x1a0] sm:$0xff] %vm908, %v860
  %962 = vst.msk [vmem:[%s2 + $0x1a8] sm:$0xff] %vm908, %v861
  %963 = vst.msk [vmem:[%s2 + $0x1b0] sm:$0xff] %vm908, %v862
  %964 = vst.msk [vmem:[%s2 + $0x1b8] sm:$0xff] %vm908, %v863
  %965 = vst.msk [vmem:[%s2 + $0x1c0] sm:$0xff] %vm908, %v864
  %966 = vst.msk [vmem:[%s2 + $0x1c8] sm:$0xff] %vm908, %v865
  %967 = vst.msk [vmem:[%s2 + $0x1d0] sm:$0xff] %vm908, %v866
  %968 = vst.msk [vmem:[%s2 + $0x1d8] sm:$0xff] %vm908, %v867
  %969 = vst.msk [vmem:[%s2 + $0x1e0] sm:$0xff] %vm908, %v868
  %970 = vst.msk [vmem:[%s2 + $0x1e8] sm:$0xff] %vm908, %v869
  %971 = vst.msk [vmem:[%s2 + $0x1f0] sm:$0xff] %vm908, %v870
  %972 = vst.msk [vmem:[%s2 + $0x1f8] sm:$0xff] %vm908, %v871
  %973 = vst.msk [vmem:[%s2 + $0x200] sm:$0xff] %vm908, %v872
  %974 = vst.msk [vmem:[%s2 + $0x208] sm:$0xff] %vm908, %v873
  %975 = vst.msk [vmem:[%s2 + $0x210] sm:$0xff] %vm908, %v874
  %976 = vst.msk [vmem:[%s2 + $0x218] sm:$0xff] %vm908, %v875
  %977 = vst.msk [vmem:[%s2 + $0x220] sm:$0xff] %vm908, %v876
  %978 = vst.msk [vmem:[%s2 + $0x228] sm:$0xff] %vm908, %v877
  %979 = vst.msk [vmem:[%s2 + $0x230] sm:$0xff] %vm908, %v878
  %980 = vst.msk [vmem:[%s2 + $0x238] sm:$0xff] %vm908, %v879
  %981 = vst.msk [vmem:[%s2 + $0x240] sm:$0xff] %vm908, %v880
  %982 = vst.msk [vmem:[%s2 + $0x248] sm:$0xff] %vm908, %v881
  %983 = vst.msk [vmem:[%s2 + $0x250] sm:$0xff] %vm908, %v882
  %984 = vst.msk [vmem:[%s2 + $0x258] sm:$0xff] %vm908, %v883
  %985 = vst.msk [vmem:[%s2 + $0x260] sm:$0xff] %vm908, %v884
  %986 = vst.msk [vmem:[%s2 + $0x268] sm:$0xff] %vm908, %v885
  %987 = vst.msk [vmem:[%s2 + $0x270] sm:$0xff] %vm908, %v886
  %988 = vst.msk [vmem:[%s2 + $0x278] sm:$0xff] %vm908, %v887
  %989 = vst.msk [vmem:[%s2 + $0x280] sm:$0xff] %vm908, %v888
  %990 = vst.msk [vmem:[%s2 + $0x288] sm:$0xff] %vm908, %v889
  %991 = vst.msk [vmem:[%s2 + $0x290] sm:$0xff] %vm908, %v890
  %992 = vst.msk [vmem:[%s2 + $0x298] sm:$0xff] %vm908, %v891
  %993 = vst.msk [vmem:[%s2 + $0x2a0] sm:$0xff] %vm908, %v892
  %994 = vst.msk [vmem:[%s2 + $0x2a8] sm:$0xff] %vm908, %v893
  %995 = vst.msk [vmem:[%s2 + $0x2b0] sm:$0xff] %vm908, %v894
  %996 = vst.msk [vmem:[%s2 + $0x2b8] sm:$0xff] %vm908, %v895
  %997 = vst.msk [vmem:[%s2 + $0x2c0] sm:$0xff] %vm908, %v896
  %998 = vst.msk [vmem:[%s2 + $0x2c8] sm:$0xff] %vm908, %v897
  %999 = vst.msk [vmem:[%s2 + $0x2d0] sm:$0xff] %vm908, %v898
  %1000 = vst.msk [vmem:[%s2 + $0x2d8] sm:$0xff] %vm908, %v899
  %1001 = vst.msk [vmem:[%s2 + $0x2e0] sm:$0xff] %vm908, %v900
  %1002 = vst.msk [vmem:[%s2 + $0x2e8] sm:$0xff] %vm908, %v901
  %1003 = vst.msk [vmem:[%s2 + $0x2f0] sm:$0xff] %vm908, %v902
  %1004 = vst.msk [vmem:[%s2 + $0x2f8] sm:$0xff] %vm908, %v903
  %1005 = vst.msk [vmem:[%s2 + $0x300] sm:$0xff] %vm908, %v904
  %1006 = vst.msk [vmem:[%s2 + $0x308] sm:$0xff] %vm908, %v905
  %1007 = vst.msk [vmem:[%s2 + $0x310] sm:$0xff] %vm908, %v906
  %1008 = vst.msk [vmem:[%s2 + $0x318] sm:$0xff] %vm908, %v907
  // Predicated region
  $region10: #{vectorized_action_q_forward.4} parent=0 // pred_check
    _
  $region11: #{vectorized_action_q_forward.4} parent=0 // pred_check_branch
    %1010 = sbr.rel (0) target = $region13
  $region12: #{vectorized_action_q_forward.4} parent=0 // pred_region
    _
  $region13: #{vectorized_action_q_forward.4} parent=0 // pred_fallthru
    _
  // Predicated region
  $region14: #{vectorized_action_q_forward.4} parent=0 // pred_check
    _
  $region15: #{vectorized_action_q_forward.4} parent=0 // pred_check_branch
    %1012 = sbr.rel (0) target = $region17
  $region16: #{vectorized_action_q_forward.4} parent=0 // pred_region
    _
  $region17: #{vectorized_action_q_forward.4} parent=0 // pred_fallthru
    _

// kernel: vectorized_action_q_forward.5
$region0: #{vectorized_action_q_forward.5}
  #allocation0 [shape = 'u32[]', space=smem, size = 0x4, offset = 0x4, fixed_abs, tag = 'smem constant byte address 0x4 - core index']
  #allocation1 [shape = 'u32[144,128]{1,0:T(1,128)}', space=vmem, size = 0x12000, scoped, tag = 'internal scratch']
  %s0 = inlined_call_operand.vmem [shape: f32[162,256], index: 0, kind: input, shape index: {}]
  %s1 = inlined_call_operand.vmem [shape: f32[256,32], index: 1, kind: input, shape index: {}]
  %s2 = inlined_call_operand.vmem [shape: f32[162,32], index: 2, kind: output, shape index: {}]
  %s3 = sld [smem:[#allocation0]]
  $region18: #{vectorized_action_q_forward.5} parent=0
    _
  %s5 = ssub.s32 1, %s3
  %s6 = scalar_select 0, %s5, %s3
  // Predicated region
  $region2: #{vectorized_action_q_forward.5} parent=0 // pred_check
    _
  $region3: #{vectorized_action_q_forward.5} parent=0 // pred_check_branch
    %8 = sbr.rel (0) target = $region5
  $region4: #{vectorized_action_q_forward.5} parent=0 // pred_region
    _
  $region5: #{vectorized_action_q_forward.5} parent=0 // pred_fallthru
    _
  // Predicated region
  $region6: #{vectorized_action_q_forward.5} parent=0 // pred_check
    _
  $region7: #{vectorized_action_q_forward.5} parent=0 // pred_check_branch
    %10 = sbr.rel (0) target = $region9
  $region8: #{vectorized_action_q_forward.5} parent=0 // pred_region
    _
  $region9: #{vectorized_action_q_forward.5} parent=0 // pred_fallthru
    _
  %v11 = vld [vmem:[%s0] sm:$0xff]
  %v12 = vld [vmem:[%s0 + $0x8] sm:$0xff]
  %v13 = vld [vmem:[%s0 + $0x10] sm:$0xff]
  %v14 = vld [vmem:[%s0 + $0x18] sm:$0xff]
  %v15 = vld [vmem:[%s0 + $0x20] sm:$0xff]
  %v16 = vld [vmem:[%s0 + $0x28] sm:$0xff]
  %v17 = vld [vmem:[%s0 + $0x30] sm:$0xff]
  %v18 = vld [vmem:[%s0 + $0x38] sm:$0xff]
  %v19 = vld [vmem:[%s0 + $0x40] sm:$0xff]
  %v20 = vld [vmem:[%s0 + $0x48] sm:$0xff]
  %v21 = vld [vmem:[%s0 + $0x50] sm:$0xff]
  %v22 = vld [vmem:[%s0 + $0x58] sm:$0xff]
  %v23 = vld [vmem:[%s0 + $0x60] sm:$0xff]
  %v24 = vld [vmem:[%s0 + $0x68] sm:$0xff]
  %v25 = vld [vmem:[%s0 + $0x70] sm:$0xff]
  %v26 = vld [vmem:[%s0 + $0x78] sm:$0xff]
  %v27 = vld [vmem:[%s0 + $0x80] sm:$0xff]
  %v28 = vld [vmem:[%s0 + $0x88] sm:$0xff]
  %v29 = vld [vmem:[%s0 + $0x90] sm:$0xff]
  %v30 = vld [vmem:[%s0 + $0x98] sm:$0xff]
  %v31 = vld [vmem:[%s0 + $0xa0] sm:$0xff]
  %v32 = vld [vmem:[%s0 + $0xa8] sm:$0xff]
  %v33 = vld [vmem:[%s0 + $0xb0] sm:$0xff]
  %v34 = vld [vmem:[%s0 + $0xb8] sm:$0xff]
  %v35 = vld [vmem:[%s0 + $0xc0] sm:$0xff]
  %v36 = vld [vmem:[%s0 + $0xc8] sm:$0xff]
  %v37 = vld [vmem:[%s0 + $0xd0] sm:$0xff]
  %v38 = vld [vmem:[%s0 + $0xd8] sm:$0xff]
  %v39 = vld [vmem:[%s0 + $0xe0] sm:$0xff]
  %v40 = vld [vmem:[%s0 + $0xe8] sm:$0xff]
  %v41 = vld [vmem:[%s0 + $0xf0] sm:$0xff]
  %v42 = vld [vmem:[%s0 + $0xf8] sm:$0xff]
  %v43 = vld [vmem:[%s0 + $0x100] sm:$0xff]
  %v44 = vld [vmem:[%s0 + $0x108] sm:$0xff]
  %v45 = vld [vmem:[%s0 + $0x110] sm:$0xff]
  %v46 = vld [vmem:[%s0 + $0x118] sm:$0xff]
  %v47 = vld [vmem:[%s0 + $0x120] sm:$0xff]
  %v48 = vld [vmem:[%s0 + $0x128] sm:$0xff]
  %v49 = vld [vmem:[%s0 + $0x130] sm:$0xff]
  %v50 = vld [vmem:[%s0 + $0x138] sm:$0xff]
  %v51 = vld [vmem:[%s0 + $0x140] sm:$0x3]
  %v52 = vld [vmem:[%s0 + $0x148] sm:$0x3]
  %v53 = vld [vmem:[%s1] sm:$0xff]
  %v54 = vld [vmem:[%s1 + $0x8] sm:$0xff]
  %v55 = vld [vmem:[%s1 + $0x10] sm:$0xff]
  %v56 = vld [vmem:[%s1 + $0x18] sm:$0xff]
  %v57 = vld [vmem:[%s1 + $0x20] sm:$0xff]
  %v58 = vld [vmem:[%s1 + $0x28] sm:$0xff]
  %v59 = vld [vmem:[%s1 + $0x30] sm:$0xff]
  %v60 = vld [vmem:[%s1 + $0x38] sm:$0xff]
  %v61 = vld [vmem:[%s1 + $0x40] sm:$0xff]
  %v62 = vld [vmem:[%s1 + $0x48] sm:$0xff]
  %v63 = vld [vmem:[%s1 + $0x50] sm:$0xff]
  %v64 = vld [vmem:[%s1 + $0x58] sm:$0xff]
  %v65 = vld [vmem:[%s1 + $0x60] sm:$0xff]
  %v66 = vld [vmem:[%s1 + $0x68] sm:$0xff]
  %v67 = vld [vmem:[%s1 + $0x70] sm:$0xff]
  %v68 = vld [vmem:[%s1 + $0x78] sm:$0xff]
  %v69 = vld [vmem:[%s1 + $0x80] sm:$0xff]
  %v70 = vld [vmem:[%s1 + $0x88] sm:$0xff]
  %v71 = vld [vmem:[%s1 + $0x90] sm:$0xff]
  %v72 = vld [vmem:[%s1 + $0x98] sm:$0xff]
  %v73 = vld [vmem:[%s1 + $0xa0] sm:$0xff]
  %v74 = vld [vmem:[%s1 + $0xa8] sm:$0xff]
  %v75 = vld [vmem:[%s1 + $0xb0] sm:$0xff]
  %v76 = vld [vmem:[%s1 + $0xb8] sm:$0xff]
  %v77 = vld [vmem:[%s1 + $0xc0] sm:$0xff]
  %v78 = vld [vmem:[%s1 + $0xc8] sm:$0xff]
  %v79 = vld [vmem:[%s1 + $0xd0] sm:$0xff]
  %v80 = vld [vmem:[%s1 + $0xd8] sm:$0xff]
  %v81 = vld [vmem:[%s1 + $0xe0] sm:$0xff]
  %v82 = vld [vmem:[%s1 + $0xe8] sm:$0xff]
  %v83 = vld [vmem:[%s1 + $0xf0] sm:$0xff]
  %v84 = vld [vmem:[%s1 + $0xf8] sm:$0xff]
  %85 = vmatprep.subr.mxu0 0.0
  %86 = vmatpush1.msra.mxu0 %v53
  %87 = vmatprep.subr.mxu0 0.0
  %88 = vmatpush1.msra.mxu0 %v54
  %89 = vmatprep.subr.mxu0 0.0
  %90 = vmatpush1.msra.mxu0 %v55
  %91 = vmatprep.subr.mxu0 0.0
  %92 = vmatpush1.msra.mxu0 %v56
  %93 = vmatprep.subr.mxu0 0.0
  %94 = vmatpush1.msra.mxu0 %v57
  %95 = vmatprep.subr.mxu0 0.0
  %96 = vmatpush1.msra.mxu0 %v58
  %97 = vmatprep.subr.mxu0 0.0
  %98 = vmatpush1.msra.mxu0 %v59
  %99 = vmatprep.subr.mxu0 0.0
  %100 = vmatpush1.msra.mxu0 %v60
  %101 = vmatprep.subr.mxu0 0.0
  %102 = vmatpush1.msra.mxu0 %v61
  %103 = vmatprep.subr.mxu0 0.0
  %104 = vmatpush1.msra.mxu0 %v62
  %105 = vmatprep.subr.mxu0 0.0
  %106 = vmatpush1.msra.mxu0 %v63
  %107 = vmatprep.subr.mxu0 0.0
  %108 = vmatpush1.msra.mxu0 %v64
  %109 = vmatprep.subr.mxu0 0.0
  %110 = vmatpush1.msra.mxu0 %v65
  %111 = vmatprep.subr.mxu0 0.0
  %112 = vmatpush1.msra.mxu0 %v66
  %113 = vmatprep.subr.mxu0 0.0
  %114 = vmatpush1.msra.mxu0 %v67
  %115 = vmatprep.subr.mxu0 0.0
  %116 = vmatpush1.msra.mxu0 %v68
  %117 = vmatprep.subr.mxu0 0.0
  %118 = vmatpush1.msra.mxu0 %v69
  %119 = vmatprep.subr.mxu0 0.0
  %120 = vmatpush1.msra.mxu0 %v70
  %121 = vmatprep.subr.mxu0 0.0
  %122 = vmatpush1.msra.mxu0 %v71
  %123 = vmatprep.subr.mxu0 0.0
  %124 = vmatpush1.msra.mxu0 %v72
  %125 = vmatprep.subr.mxu0 0.0
  %126 = vmatpush1.msra.mxu0 %v73
  %127 = vmatprep.subr.mxu0 0.0
  %128 = vmatpush1.msra.mxu0 %v74
  %129 = vmatprep.subr.mxu0 0.0
  %130 = vmatpush1.msra.mxu0 %v75
  %131 = vmatprep.subr.mxu0 0.0
  %132 = vmatpush1.msra.mxu0 %v76
  %133 = vmatprep.subr.mxu0 0.0
  %134 = vmatpush1.msra.mxu0 %v77
  %135 = vmatprep.subr.mxu0 0.0
  %136 = vmatpush1.msra.mxu0 %v78
  %137 = vmatprep.subr.mxu0 0.0
  %138 = vmatpush1.msra.mxu0 %v79
  %139 = vmatprep.subr.mxu0 0.0
  %140 = vmatpush1.msra.mxu0 %v80
  %141 = vmatprep.subr.mxu0 0.0
  %142 = vmatpush1.msra.mxu0 %v81
  %143 = vmatprep.subr.mxu0 0.0
  %144 = vmatpush1.msra.mxu0 %v82
  %145 = vmatprep.subr.mxu0 0.0
  %146 = vmatpush1.msra.mxu0 %v83
  %147 = vmatprep.subr.mxu0 0.0
  %148 = vmatpush1.msra.mxu0 %v84
  %149 = vmatprep.mubr.f32.mxu0 %v12
  %150 = vmatmul.mubr.f32.gmra.mrb[0].mxu0 %v11
  %v151 = vpop.f32.mrb[0].mxu0
  %v152 = vadd.f32 0.0, %v151
  %v153 = vpop.f32.mrb[0].mxu0
  %154 = vmatprep.mubr.f32.mxu0 %v14
  %155 = vmatmul.mubr.f32.gmra.mrb[0].mxu0 %v13
  %v156 = vpop.f32.mrb[0].mxu0
  %v157 = vadd.f32 0.0, %v156
  %v158 = vpop.f32.mrb[0].mxu0
  %159 = vmatprep.mubr.f32.mxu0 %v16
  %160 = vmatmul.mubr.f32.gmra.mrb[0].mxu0 %v15
  %v161 = vpop.f32.mrb[0].mxu0
  %v162 = vadd.f32 0.0, %v161
  %v163 = vpop.f32.mrb[0].mxu0
  %164 = vmatprep.mubr.f32.mxu0 %v18
  %165 = vmatmul.mubr.f32.gmra.mrb[0].mxu0 %v17
  %v166 = vpop.f32.mrb[0].mxu0
  %v167 = vadd.f32 0.0, %v166
  %v168 = vpop.f32.mrb[0].mxu0
  %169 = vmatprep.mubr.f32.mxu0 %v20
  %170 = vmatmul.mubr.f32.gmra.mrb[0].mxu0 %v19
  %v171 = vpop.f32.mrb[0].mxu0
  %v172 = vadd.f32 0.0, %v171
  %v173 = vpop.f32.mrb[0].mxu0
  %174 = vmatprep.mubr.f32.mxu0 %v22
  %175 = vmatmul.mubr.f32.gmra.mrb[0].mxu0 %v21
  %v176 = vpop.f32.mrb[0].mxu0
  %v177 = vadd.f32 0.0, %v176
  %v178 = vpop.f32.mrb[0].mxu0
  %179 = vmatprep.mubr.f32.mxu0 %v24
  %180 = vmatmul.mubr.f32.gmra.mrb[0].mxu0 %v23
  %v181 = vpop.f32.mrb[0].mxu0
  %v182 = vadd.f32 0.0, %v181
  %v183 = vpop.f32.mrb[0].mxu0
  %184 = vmatprep.mubr.f32.mxu0 %v26
  %185 = vmatmul.mubr.f32.gmra.mrb[0].mxu0 %v25
  %v186 = vpop.f32.mrb[0].mxu0
  %v187 = vadd.f32 0.0, %v186
  %v188 = vpop.f32.mrb[0].mxu0
  %189 = vmatprep.mubr.f32.mxu0 %v28
  %190 = vmatmul.mubr.f32.gmra.mrb[0].mxu0 %v27
  %v191 = vpop.f32.mrb[0].mxu0
  %v192 = vadd.f32 0.0, %v191
  %v193 = vpop.f32.mrb[0].mxu0
  %194 = vmatprep.mubr.f32.mxu0 %v30
  %195 = vmatmul.mubr.f32.gmra.mrb[0].mxu0 %v29
  %v196 = vpop.f32.mrb[0].mxu0
  %v197 = vadd.f32 0.0, %v196
  %v198 = vpop.f32.mrb[0].mxu0
  %199 = vmatprep.mubr.f32.mxu0 %v32
  %200 = vmatmul.mubr.f32.gmra.mrb[0].mxu0 %v31
  %v201 = vpop.f32.mrb[0].mxu0
  %v202 = vadd.f32 0.0, %v201
  %v203 = vpop.f32.mrb[0].mxu0
  %204 = vmatprep.mubr.f32.mxu0 %v34
  %205 = vmatmul.mubr.f32.gmra.mrb[0].mxu0 %v33
  %v206 = vpop.f32.mrb[0].mxu0
  %v207 = vadd.f32 0.0, %v206
  %v208 = vpop.f32.mrb[0].mxu0
  %209 = vmatprep.mubr.f32.mxu0 %v36
  %210 = vmatmul.mubr.f32.gmra.mrb[0].mxu0 %v35
  %v211 = vpop.f32.mrb[0].mxu0
  %v212 = vadd.f32 0.0, %v211
  %v213 = vpop.f32.mrb[0].mxu0
  %214 = vmatprep.mubr.f32.mxu0 %v38
  %215 = vmatmul.mubr.f32.gmra.mrb[0].mxu0 %v37
  %v216 = vpop.f32.mrb[0].mxu0
  %v217 = vadd.f32 0.0, %v216
  %v218 = vpop.f32.mrb[0].mxu0
  %219 = vmatprep.mubr.f32.mxu0 %v40
  %220 = vmatmul.mubr.f32.gmra.mrb[0].mxu0 %v39
  %v221 = vpop.f32.mrb[0].mxu0
  %v222 = vadd.f32 0.0, %v221
  %v223 = vpop.f32.mrb[0].mxu0
  %224 = vmatprep.mubr.f32.mxu0 %v42
  %225 = vmatmul.mubr.f32.gmra.mrb[0].mxu0 %v41
  %v226 = vpop.f32.mrb[0].mxu0
  %v227 = vadd.f32 0.0, %v226
  %v228 = vpop.f32.mrb[0].mxu0
  %229 = vmatprep.mubr.f32.mxu0 %v44
  %230 = vmatmul.mubr.f32.gmra.mrb[0].mxu0 %v43
  %v231 = vpop.f32.mrb[0].mxu0
  %v232 = vadd.f32 0.0, %v231
  %v233 = vpop.f32.mrb[0].mxu0
  %234 = vmatprep.mubr.f32.mxu0 %v46
  %235 = vmatmul.mubr.f32.gmra.mrb[0].mxu0 %v45
  %v236 = vpop.f32.mrb[0].mxu0
  %v237 = vadd.f32 0.0, %v236
  %v238 = vpop.f32.mrb[0].mxu0
  %239 = vmatprep.mubr.f32.mxu0 %v48
  %240 = vmatmul.mubr.f32.gmra.mrb[0].mxu0 %v47
  %v241 = vpop.f32.mrb[0].mxu0
  %v242 = vadd.f32 0.0, %v241
  %v243 = vpop.f32.mrb[0].mxu0
  %244 = vmatprep.mubr.f32.mxu0 %v50
  %245 = vmatmul.mubr.f32.gmra.mrb[0].mxu0 %v49
  %v246 = vpop.f32.mrb[0].mxu0
  %v247 = vadd.f32 0.0, %v246
  %v248 = vpop.f32.mrb[0].mxu0
  %249 = vmatprep.mubr.f32.mxu0 %v52
  %250 = vmatmul.mubr.f32.gmra.mrb[0].mxu0 %v51
  %v251 = vpop.f32.mrb[0].mxu0
  %v252 = vadd.f32 0.0, %v251
  %v253 = vpop.f32.mrb[0].mxu0
  %254 = vdwg.mxu0
  %v255 = vmax.f32 %v152, 0.0
  %v256 = vmax.f32 %v157, 0.0
  %v257 = vmax.f32 %v162, 0.0
  %v258 = vmax.f32 %v167, 0.0
  %v259 = vmax.f32 %v172, 0.0
  %v260 = vmax.f32 %v177, 0.0
  %v261 = vmax.f32 %v182, 0.0
  %v262 = vmax.f32 %v187, 0.0
  %v263 = vmax.f32 %v192, 0.0
  %v264 = vmax.f32 %v197, 0.0
  %v265 = vmax.f32 %v202, 0.0
  %v266 = vmax.f32 %v207, 0.0
  %v267 = vmax.f32 %v212, 0.0
  %v268 = vmax.f32 %v217, 0.0
  %v269 = vmax.f32 %v222, 0.0
  %v270 = vmax.f32 %v227, 0.0
  %v271 = vmax.f32 %v232, 0.0
  %v272 = vmax.f32 %v237, 0.0
  %v273 = vmax.f32 %v242, 0.0
  %v274 = vmax.f32 %v247, 0.0
  %v275 = vmax.f32 %v252, 0.0
  %vm276 = vcmask 261120
  %277 = vst.msk [vmem:[%s2] sm:$0xff] %vm276, %v255
  %278 = vst.msk [vmem:[%s2 + $0x8] sm:$0xff] %vm276, %v256
  %279 = vst.msk [vmem:[%s2 + $0x10] sm:$0xff] %vm276, %v257
  %280 = vst.msk [vmem:[%s2 + $0x18] sm:$0xff] %vm276, %v258
  %281 = vst.msk [vmem:[%s2 + $0x20] sm:$0xff] %vm276, %v259
  %282 = vst.msk [vmem:[%s2 + $0x28] sm:$0xff] %vm276, %v260
  %283 = vst.msk [vmem:[%s2 + $0x30] sm:$0xff] %vm276, %v261
  %284 = vst.msk [vmem:[%s2 + $0x38] sm:$0xff] %vm276, %v262
  %285 = vst.msk [vmem:[%s2 + $0x40] sm:$0xff] %vm276, %v263
  %286 = vst.msk [vmem:[%s2 + $0x48] sm:$0xff] %vm276, %v264
  %287 = vst.msk [vmem:[%s2 + $0x50] sm:$0xff] %vm276, %v265
  %288 = vst.msk [vmem:[%s2 + $0x58] sm:$0xff] %vm276, %v266
  %289 = vst.msk [vmem:[%s2 + $0x60] sm:$0xff] %vm276, %v267
  %290 = vst.msk [vmem:[%s2 + $0x68] sm:$0xff] %vm276, %v268
  %291 = vst.msk [vmem:[%s2 + $0x70] sm:$0xff] %vm276, %v269
  %292 = vst.msk [vmem:[%s2 + $0x78] sm:$0xff] %vm276, %v270
  %293 = vst.msk [vmem:[%s2 + $0x80] sm:$0xff] %vm276, %v271
  %294 = vst.msk [vmem:[%s2 + $0x88] sm:$0xff] %vm276, %v272
  %295 = vst.msk [vmem:[%s2 + $0x90] sm:$0xff] %vm276, %v273
  %296 = vst.msk [vmem:[%s2 + $0x98] sm:$0xff] %vm276, %v274
  %vm297 = vcmask 254976
  %298 = vst.msk [vmem:[%s2 + $0xa0] sm:$0x3] %vm297, %v275
  // Predicated region
  $region10: #{vectorized_action_q_forward.5} parent=0 // pred_check
    _
  $region11: #{vectorized_action_q_forward.5} parent=0 // pred_check_branch
    %300 = sbr.rel (0) target = $region13
  $region12: #{vectorized_action_q_forward.5} parent=0 // pred_region
    _
  $region13: #{vectorized_action_q_forward.5} parent=0 // pred_fallthru
    _
  // Predicated region
  $region14: #{vectorized_action_q_forward.5} parent=0 // pred_check
    _
  $region15: #{vectorized_action_q_forward.5} parent=0 // pred_check_branch
    %302 = sbr.rel (0) target = $region17
  $region16: #{vectorized_action_q_forward.5} parent=0 // pred_region
    _
  $region17: #{vectorized_action_q_forward.5} parent=0 // pred_fallthru
    _

// kernel: vectorized_action_q_forward.6
$region0: #{vectorized_action_q_forward.6}
  #allocation0 [shape = 'u32[]', space=smem, size = 0x4, offset = 0x4, fixed_abs, tag = 'smem constant byte address 0x4 - core index']
  #allocation1 [shape = 'u32[144,128]{1,0:T(1,128)}', space=vmem, size = 0x12000, scoped, tag = 'internal scratch']
  %s0 = inlined_call_operand.vmem [shape: f32[98,288], index: 0, kind: input, shape index: {}]
  %s1 = inlined_call_operand.vmem [shape: f32[288,32], index: 1, kind: input, shape index: {}]
  %s2 = inlined_call_operand.vmem [shape: f32[98,32], index: 2, kind: output, shape index: {}]
  %s3 = sld [smem:[#allocation0]]
  $region18: #{vectorized_action_q_forward.6} parent=0
    _
  %s5 = ssub.s32 1, %s3
  %s6 = scalar_select 0, %s5, %s3
  // Predicated region
  $region2: #{vectorized_action_q_forward.6} parent=0 // pred_check
    _
  $region3: #{vectorized_action_q_forward.6} parent=0 // pred_check_branch
    %8 = sbr.rel (0) target = $region5
  $region4: #{vectorized_action_q_forward.6} parent=0 // pred_region
    _
  $region5: #{vectorized_action_q_forward.6} parent=0 // pred_fallthru
    _
  // Predicated region
  $region6: #{vectorized_action_q_forward.6} parent=0 // pred_check
    _
  $region7: #{vectorized_action_q_forward.6} parent=0 // pred_check_branch
    %10 = sbr.rel (0) target = $region9
  $region8: #{vectorized_action_q_forward.6} parent=0 // pred_region
    _
  $region9: #{vectorized_action_q_forward.6} parent=0 // pred_fallthru
    _
  %v11 = vld [vmem:[%s0] sm:$0xff]
  %v12 = vld [vmem:[%s0 + $0x8] sm:$0xff]
  %v13 = vld [vmem:[%s0 + $0x10] sm:$0xff]
  %v14 = vld [vmem:[%s0 + $0x18] sm:$0xff]
  %v15 = vld [vmem:[%s0 + $0x20] sm:$0xff]
  %v16 = vld [vmem:[%s0 + $0x28] sm:$0xff]
  %v17 = vld [vmem:[%s0 + $0x30] sm:$0xff]
  %v18 = vld [vmem:[%s0 + $0x38] sm:$0xff]
  %v19 = vld [vmem:[%s0 + $0x40] sm:$0xff]
  %v20 = vld [vmem:[%s0 + $0x48] sm:$0xff]
  %v21 = vld [vmem:[%s0 + $0x50] sm:$0xff]
  %v22 = vld [vmem:[%s0 + $0x58] sm:$0xff]
  %v23 = vld [vmem:[%s0 + $0x60] sm:$0xff]
  %v24 = vld [vmem:[%s0 + $0x68] sm:$0xff]
  %v25 = vld [vmem:[%s0 + $0x70] sm:$0xff]
  %v26 = vld [vmem:[%s0 + $0x78] sm:$0xff]
  %v27 = vld [vmem:[%s0 + $0x80] sm:$0xff]
  %v28 = vld [vmem:[%s0 + $0x88] sm:$0xff]
  %v29 = vld [vmem:[%s0 + $0x90] sm:$0xff]
  %v30 = vld [vmem:[%s0 + $0x98] sm:$0xff]
  %v31 = vld [vmem:[%s0 + $0xa0] sm:$0xff]
  %v32 = vld [vmem:[%s0 + $0xa8] sm:$0xff]
  %v33 = vld [vmem:[%s0 + $0xb0] sm:$0xff]
  %v34 = vld [vmem:[%s0 + $0xb8] sm:$0xff]
  %v35 = vld [vmem:[%s0 + $0xc0] sm:$0xff]
  %v36 = vld [vmem:[%s0 + $0xc8] sm:$0xff]
  %v37 = vld [vmem:[%s0 + $0xd0] sm:$0xff]
  %v38 = vld [vmem:[%s0 + $0xd8] sm:$0xff]
  %v39 = vld [vmem:[%s0 + $0xe0] sm:$0xff]
  %v40 = vld [vmem:[%s0 + $0xe8] sm:$0xff]
  %v41 = vld [vmem:[%s0 + $0xf0] sm:$0xff]
  %v42 = vld [vmem:[%s0 + $0xf8] sm:$0xff]
  %v43 = vld [vmem:[%s0 + $0x100] sm:$0xff]
  %v44 = vld [vmem:[%s0 + $0x108] sm:$0xff]
  %v45 = vld [vmem:[%s0 + $0x110] sm:$0xff]
  %v46 = vld [vmem:[%s0 + $0x118] sm:$0xff]
  %v47 = vld [vmem:[%s0 + $0x120] sm:$0x3]
  %v48 = vld [vmem:[%s0 + $0x128] sm:$0x3]
  %v49 = vld [vmem:[%s0 + $0x130] sm:$0x3]
  %v50 = vld [vmem:[%s1] sm:$0xff]
  %v51 = vld [vmem:[%s1 + $0x8] sm:$0xff]
  %v52 = vld [vmem:[%s1 + $0x10] sm:$0xff]
  %v53 = vld [vmem:[%s1 + $0x18] sm:$0xff]
  %v54 = vld [vmem:[%s1 + $0x20] sm:$0xff]
  %v55 = vld [vmem:[%s1 + $0x28] sm:$0xff]
  %v56 = vld [vmem:[%s1 + $0x30] sm:$0xff]
  %v57 = vld [vmem:[%s1 + $0x38] sm:$0xff]
  %v58 = vld [vmem:[%s1 + $0x40] sm:$0xff]
  %v59 = vld [vmem:[%s1 + $0x48] sm:$0xff]
  %v60 = vld [vmem:[%s1 + $0x50] sm:$0xff]
  %v61 = vld [vmem:[%s1 + $0x58] sm:$0xff]
  %v62 = vld [vmem:[%s1 + $0x60] sm:$0xff]
  %v63 = vld [vmem:[%s1 + $0x68] sm:$0xff]
  %v64 = vld [vmem:[%s1 + $0x70] sm:$0xff]
  %v65 = vld [vmem:[%s1 + $0x78] sm:$0xff]
  %v66 = vld [vmem:[%s1 + $0x80] sm:$0xff]
  %v67 = vld [vmem:[%s1 + $0x88] sm:$0xff]
  %v68 = vld [vmem:[%s1 + $0x90] sm:$0xff]
  %v69 = vld [vmem:[%s1 + $0x98] sm:$0xff]
  %v70 = vld [vmem:[%s1 + $0xa0] sm:$0xff]
  %v71 = vld [vmem:[%s1 + $0xa8] sm:$0xff]
  %v72 = vld [vmem:[%s1 + $0xb0] sm:$0xff]
  %v73 = vld [vmem:[%s1 + $0xb8] sm:$0xff]
  %v74 = vld [vmem:[%s1 + $0xc0] sm:$0xff]
  %v75 = vld [vmem:[%s1 + $0xc8] sm:$0xff]
  %v76 = vld [vmem:[%s1 + $0xd0] sm:$0xff]
  %v77 = vld [vmem:[%s1 + $0xd8] sm:$0xff]
  %v78 = vld [vmem:[%s1 + $0xe0] sm:$0xff]
  %v79 = vld [vmem:[%s1 + $0xe8] sm:$0xff]
  %v80 = vld [vmem:[%s1 + $0xf0] sm:$0xff]
  %v81 = vld [vmem:[%s1 + $0xf8] sm:$0xff]
  %v82 = vld [vmem:[%s1 + $0x100] sm:$0xff]
  %v83 = vld [vmem:[%s1 + $0x108] sm:$0xff]
  %v84 = vld [vmem:[%s1 + $0x110] sm:$0xff]
  %v85 = vld [vmem:[%s1 + $0x118] sm:$0xff]
  %vm86 = vcmask 261120
  %v88 = vsel %vm86, %v13, 0
  %v91 = vsel %vm86, %v16, 0
  %v94 = vsel %vm86, %v19, 0
  %v97 = vsel %vm86, %v22, 0
  %v100 = vsel %vm86, %v25, 0
  %v103 = vsel %vm86, %v28, 0
  %v106 = vsel %vm86, %v31, 0
  %v109 = vsel %vm86, %v34, 0
  %v112 = vsel %vm86, %v37, 0
  %v115 = vsel %vm86, %v40, 0
  %v118 = vsel %vm86, %v43, 0
  %v121 = vsel %vm86, %v46, 0
  %v124 = vsel %vm86, %v49, 0
  %126 = vmatprep.subr.mxu0 0.0
  %127 = vmatpush1.msra.mxu0 %v50
  %128 = vmatprep.subr.mxu0 0.0
  %129 = vmatpush1.msra.mxu0 %v51
  %130 = vmatprep.subr.mxu0 0.0
  %131 = vmatpush1.msra.mxu0 %v52
  %132 = vmatprep.subr.mxu0 0.0
  %133 = vmatpush1.msra.mxu0 %v53
  %134 = vmatprep.subr.mxu0 0.0
  %135 = vmatpush1.msra.mxu0 %v54
  %136 = vmatprep.subr.mxu0 0.0
  %137 = vmatpush1.msra.mxu0 %v55
  %138 = vmatprep.subr.mxu0 0.0
  %139 = vmatpush1.msra.mxu0 %v56
  %140 = vmatprep.subr.mxu0 0.0
  %141 = vmatpush1.msra.mxu0 %v57
  %142 = vmatprep.subr.mxu0 0.0
  %143 = vmatpush1.msra.mxu0 %v58
  %144 = vmatprep.subr.mxu0 0.0
  %145 = vmatpush1.msra.mxu0 %v59
  %146 = vmatprep.subr.mxu0 0.0
  %147 = vmatpush1.msra.mxu0 %v60
  %148 = vmatprep.subr.mxu0 0.0
  %149 = vmatpush1.msra.mxu0 %v61
  %150 = vmatprep.subr.mxu0 0.0
  %151 = vmatpush1.msra.mxu0 %v62
  %152 = vmatprep.subr.mxu0 0.0
  %153 = vmatpush1.msra.mxu0 %v63
  %154 = vmatprep.subr.mxu0 0.0
  %155 = vmatpush1.msra.mxu0 %v64
  %156 = vmatprep.subr.mxu0 0.0
  %157 = vmatpush1.msra.mxu0 %v65
  %158 = vmatprep.subr.mxu0 0.0
  %159 = vmatpush1.msra.mxu0 %v66
  %160 = vmatprep.subr.mxu0 0.0
  %161 = vmatpush1.msra.mxu0 %v67
  %162 = vmatprep.subr.mxu0 0.0
  %163 = vmatpush1.msra.mxu0 %v68
  %164 = vmatprep.subr.mxu0 0.0
  %165 = vmatpush1.msra.mxu0 %v69
  %166 = vmatprep.subr.mxu0 0.0
  %167 = vmatpush1.msra.mxu0 %v70
  %168 = vmatprep.subr.mxu0 0.0
  %169 = vmatpush1.msra.mxu0 %v71
  %170 = vmatprep.subr.mxu0 0.0
  %171 = vmatpush1.msra.mxu0 %v72
  %172 = vmatprep.subr.mxu0 0.0
  %173 = vmatpush1.msra.mxu0 %v73
  %174 = vmatprep.subr.mxu0 0.0
  %175 = vmatpush1.msra.mxu0 %v74
  %176 = vmatprep.subr.mxu0 0.0
  %177 = vmatpush1.msra.mxu0 %v75
  %178 = vmatprep.subr.mxu0 0.0
  %179 = vmatpush1.msra.mxu0 %v76
  %180 = vmatprep.subr.mxu0 0.0
  %181 = vmatpush1.msra.mxu0 %v77
  %182 = vmatprep.subr.mxu0 0.0
  %183 = vmatpush1.msra.mxu0 %v78
  %184 = vmatprep.subr.mxu0 0.0
  %185 = vmatpush1.msra.mxu0 %v79
  %186 = vmatprep.subr.mxu0 0.0
  %187 = vmatpush1.msra.mxu0 %v80
  %188 = vmatprep.subr.mxu0 0.0
  %189 = vmatpush1.msra.mxu0 %v81
  %190 = vmatprep.mubr.f32.mxu0 %v12
  %191 = vmatmul.mubr.f32.gmra.mrb[0].mxu0 %v11
  %v192 = vpop.f32.mrb[0].mxu0
  %v193 = vadd.f32 0.0, %v192
  %v194 = vpop.f32.mrb[0].mxu0
  %195 = vmatprep.mubr.f32.mxu0 %v15
  %196 = vmatmul.mubr.f32.gmra.mrb[0].mxu0 %v14
  %v197 = vpop.f32.mrb[0].mxu0
  %v198 = vadd.f32 0.0, %v197
  %v199 = vpop.f32.mrb[0].mxu0
  %200 = vmatprep.mubr.f32.mxu0 %v18
  %201 = vmatmul.mubr.f32.gmra.mrb[0].mxu0 %v17
  %v202 = vpop.f32.mrb[0].mxu0
  %v203 = vadd.f32 0.0, %v202
  %v204 = vpop.f32.mrb[0].mxu0
  %205 = vmatprep.mubr.f32.mxu0 %v21
  %206 = vmatmul.mubr.f32.gmra.mrb[0].mxu0 %v20
  %v207 = vpop.f32.mrb[0].mxu0
  %v208 = vadd.f32 0.0, %v207
  %v209 = vpop.f32.mrb[0].mxu0
  %210 = vmatprep.mubr.f32.mxu0 %v24
  %211 = vmatmul.mubr.f32.gmra.mrb[0].mxu0 %v23
  %v212 = vpop.f32.mrb[0].mxu0
  %v213 = vadd.f32 0.0, %v212
  %v214 = vpop.f32.mrb[0].mxu0
  %215 = vmatprep.mubr.f32.mxu0 %v27
  %216 = vmatmul.mubr.f32.gmra.mrb[0].mxu0 %v26
  %v217 = vpop.f32.mrb[0].mxu0
  %v218 = vadd.f32 0.0, %v217
  %v219 = vpop.f32.mrb[0].mxu0
  %220 = vmatprep.mubr.f32.mxu0 %v30
  %221 = vmatmul.mubr.f32.gmra.mrb[0].mxu0 %v29
  %v222 = vpop.f32.mrb[0].mxu0
  %v223 = vadd.f32 0.0, %v222
  %v224 = vpop.f32.mrb[0].mxu0
  %225 = vmatprep.mubr.f32.mxu0 %v33
  %226 = vmatmul.mubr.f32.gmra.mrb[0].mxu0 %v32
  %v227 = vpop.f32.mrb[0].mxu0
  %v228 = vadd.f32 0.0, %v227
  %v229 = vpop.f32.mrb[0].mxu0
  %230 = vmatprep.mubr.f32.mxu0 %v36
  %231 = vmatmul.mubr.f32.gmra.mrb[0].mxu0 %v35
  %v232 = vpop.f32.mrb[0].mxu0
  %v233 = vadd.f32 0.0, %v232
  %v234 = vpop.f32.mrb[0].mxu0
  %235 = vmatprep.mubr.f32.mxu0 %v39
  %236 = vmatmul.mubr.f32.gmra.mrb[0].mxu0 %v38
  %v237 = vpop.f32.mrb[0].mxu0
  %v238 = vadd.f32 0.0, %v237
  %v239 = vpop.f32.mrb[0].mxu0
  %240 = vmatprep.mubr.f32.mxu0 %v42
  %241 = vmatmul.mubr.f32.gmra.mrb[0].mxu0 %v41
  %v242 = vpop.f32.mrb[0].mxu0
  %v243 = vadd.f32 0.0, %v242
  %v244 = vpop.f32.mrb[0].mxu0
  %245 = vmatprep.mubr.f32.mxu0 %v45
  %246 = vmatmul.mubr.f32.gmra.mrb[0].mxu0 %v44
  %v247 = vpop.f32.mrb[0].mxu0
  %v248 = vadd.f32 0.0, %v247
  %v249 = vpop.f32.mrb[0].mxu0
  %250 = vmatprep.mubr.f32.mxu0 %v48
  %251 = vmatmul.mubr.f32.gmra.mrb[0].mxu0 %v47
  %v252 = vpop.f32.mrb[0].mxu0
  %v253 = vadd.f32 0.0, %v252
  %v254 = vpop.f32.mrb[0].mxu0
  %255 = vdwg.mxu0
  %256 = vmatprep.subr.mxu0 0.0
  %257 = vmatpush1.msra.mxu0 %v82
  %258 = vmatprep.subr.mxu0 0.0
  %259 = vmatpush1.msra.mxu0 %v83
  %260 = vmatprep.subr.mxu0 0.0
  %261 = vmatpush1.msra.mxu0 %v84
  %262 = vmatprep.subr.mxu0 0.0
  %263 = vmatpush1.msra.mxu0 %v85
  %264 = vmatprep.subr.mxu0 0.0
  %265 = vmatpush1.msra.mxu0 0.0
  %266 = vmatprep.subr.mxu0 0.0
  %267 = vmatpush1.msra.mxu0 0.0
  %268 = vmatprep.subr.mxu0 0.0
  %269 = vmatpush1.msra.mxu0 0.0
  %270 = vmatprep.subr.mxu0 0.0
  %271 = vmatpush1.msra.mxu0 0.0
  %272 = vmatprep.subr.mxu0 0.0
  %273 = vmatpush1.msra.mxu0 0.0
  %274 = vmatprep.subr.mxu0 0.0
  %275 = vmatpush1.msra.mxu0 0.0
  %276 = vmatprep.subr.mxu0 0.0
  %277 = vmatpush1.msra.mxu0 0.0
  %278 = vmatprep.subr.mxu0 0.0
  %279 = vmatpush1.msra.mxu0 0.0
  %280 = vmatprep.subr.mxu0 0.0
  %281 = vmatpush1.msra.mxu0 0.0
  %282 = vmatprep.subr.mxu0 0.0
  %283 = vmatpush1.msra.mxu0 0.0
  %284 = vmatprep.subr.mxu0 0.0
  %285 = vmatpush1.msra.mxu0 0.0
  %286 = vmatprep.subr.mxu0 0.0
  %287 = vmatpush1.msra.mxu0 0.0
  %288 = vmatprep.subr.mxu0 0.0
  %289 = vmatpush1.msra.mxu0 0.0
  %290 = vmatprep.subr.mxu0 0.0
  %291 = vmatpush1.msra.mxu0 0.0
  %292 = vmatprep.subr.mxu0 0.0
  %293 = vmatpush1.msra.mxu0 0.0
  %294 = vmatprep.subr.mxu0 0.0
  %295 = vmatpush1.msra.mxu0 0.0
  %296 = vmatprep.subr.mxu0 0.0
  %297 = vmatpush1.msra.mxu0 0.0
  %298 = vmatprep.subr.mxu0 0.0
  %299 = vmatpush1.msra.mxu0 0.0
  %300 = vmatprep.subr.mxu0 0.0
  %301 = vmatpush1.msra.mxu0 0.0
  %302 = vmatprep.subr.mxu0 0.0
  %303 = vmatpush1.msra.mxu0 0.0
  %304 = vmatprep.subr.mxu0 0.0
  %305 = vmatpush1.msra.mxu0 0.0
  %306 = vmatprep.subr.mxu0 0.0
  %307 = vmatpush1.msra.mxu0 0.0
  %308 = vmatprep.subr.mxu0 0.0
  %309 = vmatpush1.msra.mxu0 0.0
  %310 = vmatprep.subr.mxu0 0.0
  %311 = vmatpush1.msra.mxu0 0.0
  %312 = vmatprep.subr.mxu0 0.0
  %313 = vmatpush1.msra.mxu0 0.0
  %314 = vmatprep.subr.mxu0 0.0
  %315 = vmatpush1.msra.mxu0 0.0
  %316 = vmatprep.subr.mxu0 0.0
  %317 = vmatpush1.msra.mxu0 0.0
  %318 = vmatprep.subr.mxu0 0.0
  %319 = vmatpush1.msra.mxu0 0.0
  %320 = vmatprep.mubr.f32.mxu0 0.0
  %321 = vmatmul.mubr.f32.gmra.mrb[0].mxu0 %v88
  %v322 = vpop.f32.mrb[0].mxu0
  %v323 = vadd.f32 %v193, %v322
  %v324 = vpop.f32.mrb[0].mxu0
  %325 = vmatprep.mubr.f32.mxu0 0.0
  %326 = vmatmul.mubr.f32.gmra.mrb[0].mxu0 %v91
  %v327 = vpop.f32.mrb[0].mxu0
  %v328 = vadd.f32 %v198, %v327
  %v329 = vpop.f32.mrb[0].mxu0
  %330 = vmatprep.mubr.f32.mxu0 0.0
  %331 = vmatmul.mubr.f32.gmra.mrb[0].mxu0 %v94
  %v332 = vpop.f32.mrb[0].mxu0
  %v333 = vadd.f32 %v203, %v332
  %v334 = vpop.f32.mrb[0].mxu0
  %335 = vmatprep.mubr.f32.mxu0 0.0
  %336 = vmatmul.mubr.f32.gmra.mrb[0].mxu0 %v97
  %v337 = vpop.f32.mrb[0].mxu0
  %v338 = vadd.f32 %v208, %v337
  %v339 = vpop.f32.mrb[0].mxu0
  %340 = vmatprep.mubr.f32.mxu0 0.0
  %341 = vmatmul.mubr.f32.gmra.mrb[0].mxu0 %v100
  %v342 = vpop.f32.mrb[0].mxu0
  %v343 = vadd.f32 %v213, %v342
  %v344 = vpop.f32.mrb[0].mxu0
  %345 = vmatprep.mubr.f32.mxu0 0.0
  %346 = vmatmul.mubr.f32.gmra.mrb[0].mxu0 %v103
  %v347 = vpop.f32.mrb[0].mxu0
  %v348 = vadd.f32 %v218, %v347
  %v349 = vpop.f32.mrb[0].mxu0
  %350 = vmatprep.mubr.f32.mxu0 0.0
  %351 = vmatmul.mubr.f32.gmra.mrb[0].mxu0 %v106
  %v352 = vpop.f32.mrb[0].mxu0
  %v353 = vadd.f32 %v223, %v352
  %v354 = vpop.f32.mrb[0].mxu0
  %355 = vmatprep.mubr.f32.mxu0 0.0
  %356 = vmatmul.mubr.f32.gmra.mrb[0].mxu0 %v109
  %v357 = vpop.f32.mrb[0].mxu0
  %v358 = vadd.f32 %v228, %v357
  %v359 = vpop.f32.mrb[0].mxu0
  %360 = vmatprep.mubr.f32.mxu0 0.0
  %361 = vmatmul.mubr.f32.gmra.mrb[0].mxu0 %v112
  %v362 = vpop.f32.mrb[0].mxu0
  %v363 = vadd.f32 %v233, %v362
  %v364 = vpop.f32.mrb[0].mxu0
  %365 = vmatprep.mubr.f32.mxu0 0.0
  %366 = vmatmul.mubr.f32.gmra.mrb[0].mxu0 %v115
  %v367 = vpop.f32.mrb[0].mxu0
  %v368 = vadd.f32 %v238, %v367
  %v369 = vpop.f32.mrb[0].mxu0
  %370 = vmatprep.mubr.f32.mxu0 0.0
  %371 = vmatmul.mubr.f32.gmra.mrb[0].mxu0 %v118
  %v372 = vpop.f32.mrb[0].mxu0
  %v373 = vadd.f32 %v243, %v372
  %v374 = vpop.f32.mrb[0].mxu0
  %375 = vmatprep.mubr.f32.mxu0 0.0
  %376 = vmatmul.mubr.f32.gmra.mrb[0].mxu0 %v121
  %v377 = vpop.f32.mrb[0].mxu0
  %v378 = vadd.f32 %v248, %v377
  %v379 = vpop.f32.mrb[0].mxu0
  %380 = vmatprep.mubr.f32.mxu0 0.0
  %381 = vmatmul.mubr.f32.gmra.mrb[0].mxu0 %v124
  %v382 = vpop.f32.mrb[0].mxu0
  %v383 = vadd.f32 %v253, %v382
  %v384 = vpop.f32.mrb[0].mxu0
  %385 = vdwg.mxu0
  %v386 = vmax.f32 %v323, 0.0
  %v387 = vmax.f32 %v328, 0.0
  %v388 = vmax.f32 %v333, 0.0
  %v389 = vmax.f32 %v338, 0.0
  %v390 = vmax.f32 %v343, 0.0
  %v391 = vmax.f32 %v348, 0.0
  %v392 = vmax.f32 %v353, 0.0
  %v393 = vmax.f32 %v358, 0.0
  %v394 = vmax.f32 %v363, 0.0
  %v395 = vmax.f32 %v368, 0.0
  %v396 = vmax.f32 %v373, 0.0
  %v397 = vmax.f32 %v378, 0.0
  %v398 = vmax.f32 %v383, 0.0
  %399 = vst.msk [vmem:[%s2] sm:$0xff] %vm86, %v386
  %400 = vst.msk [vmem:[%s2 + $0x8] sm:$0xff] %vm86, %v387
  %401 = vst.msk [vmem:[%s2 + $0x10] sm:$0xff] %vm86, %v388
  %402 = vst.msk [vmem:[%s2 + $0x18] sm:$0xff] %vm86, %v389
  %403 = vst.msk [vmem:[%s2 + $0x20] sm:$0xff] %vm86, %v390
  %404 = vst.msk [vmem:[%s2 + $0x28] sm:$0xff] %vm86, %v391
  %405 = vst.msk [vmem:[%s2 + $0x30] sm:$0xff] %vm86, %v392
  %406 = vst.msk [vmem:[%s2 + $0x38] sm:$0xff] %vm86, %v393
  %407 = vst.msk [vmem:[%s2 + $0x40] sm:$0xff] %vm86, %v394
  %408 = vst.msk [vmem:[%s2 + $0x48] sm:$0xff] %vm86, %v395
  %409 = vst.msk [vmem:[%s2 + $0x50] sm:$0xff] %vm86, %v396
  %410 = vst.msk [vmem:[%s2 + $0x58] sm:$0xff] %vm86, %v397
  %vm411 = vcmask 254976
  %412 = vst.msk [vmem:[%s2 + $0x60] sm:$0x3] %vm411, %v398
  // Predicated region
  $region10: #{vectorized_action_q_forward.6} parent=0 // pred_check
    _
  $region11: #{vectorized_action_q_forward.6} parent=0 // pred_check_branch
    %414 = sbr.rel (0) target = $region13
  $region12: #{vectorized_action_q_forward.6} parent=0 // pred_region
    _
  $region13: #{vectorized_action_q_forward.6} parent=0 // pred_fallthru
    _
  // Predicated region
  $region14: #{vectorized_action_q_forward.6} parent=0 // pred_check
    _
  $region15: #{vectorized_action_q_forward.6} parent=0 // pred_check_branch
    %416 = sbr.rel (0) target = $region17
  $region16: #{vectorized_action_q_forward.6} parent=0 // pred_region
    _
  $region17: #{vectorized_action_q_forward.6} parent=0 // pred_fallthru
    _

// kernel: vectorized_action_q_forward.7
$region0: #{vectorized_action_q_forward.7}
  #allocation0 [shape = 'u32[]', space=smem, size = 0x4, offset = 0x4, fixed_abs, tag = 'smem constant byte address 0x4 - core index']
  #allocation1 [shape = 'u32[144,128]{1,0:T(1,128)}', space=vmem, size = 0x12000, scoped, tag = 'internal scratch']
  %s0 = inlined_call_operand.vmem [shape: f32[2,1568], index: 0, kind: input, shape index: {}]
  %s1 = inlined_call_operand.vmem [shape: f32[1568,256], index: 1, kind: input, shape index: {}]
  %s2 = inlined_call_operand.vmem [shape: f32[256,6], index: 2, kind: input, shape index: {}]
  %s3 = inlined_call_operand.vmem [shape: f32[2,256], index: 3, kind: output, shape index: {0}]
  %s4 = inlined_call_operand.hbm [shape: f32[2,256], index: 4, kind: output, shape index: {1}]
  %s5 = inlined_call_operand.hbm [shape: f32[2,6], index: 5, kind: output, shape index: {2}]
  %6 = xla_tuple %s3, %s4, %s5
  %s7 = sld [smem:[#allocation0]]
  $region38: #{vectorized_action_q_forward.7} parent=0
    _
  %s9 = ssub.s32 1, %s7
  %s10 = scalar_select 0, %s9, %s7
  $region1: #{vectorized_action_q_forward.7} parent=0
    #allocation2 [shape = 'u8[2048]{0}', space=vmem, size = 0x800, scoped, tag = 'output window, operand 1, single buffered']
    #allocation3 [shape = 's32[1]{0}', space=sflag, size = 0x4, scoped, tag = 'scoped memory for vectorized_action_q_forward.7']
    #allocation4 [shape = 'u8[1024]{0}', space=vmem, size = 0x400, scoped, tag = 'output window, operand 2, single buffered']
    #allocation5 [shape = 's32[1]{0}', space=sflag, size = 0x4, scoped, tag = 'scoped memory for vectorized_action_q_forward.7']
    %11 = vsyncpa [#allocation3], 0
    %12 = vsyncpa [#allocation5], 0
    // Predicated region
    $region2: #{vectorized_action_q_forward.7} parent=1 // pred_check
      _
    $region3: #{vectorized_action_q_forward.7} parent=1 // pred_check_branch
      %14 = sbr.rel (0) target = $region5
    $region4: #{vectorized_action_q_forward.7} parent=1 // pred_region
      _
    $region5: #{vectorized_action_q_forward.7} parent=1 // pred_fallthru
      _
    // Predicated region
    $region6: #{vectorized_action_q_forward.7} parent=1 // pred_check
      _
    $region7: #{vectorized_action_q_forward.7} parent=1 // pred_check_branch
      %16 = sbr.rel (0) target = $region9
    $region8: #{vectorized_action_q_forward.7} parent=1 // pred_region
      _
    $region9: #{vectorized_action_q_forward.7} parent=1 // pred_fallthru
      _
    // Predicated region
    $region10: #{vectorized_action_q_forward.7} parent=1 // pred_check
      _
    $region11: #{vectorized_action_q_forward.7} parent=1 // pred_check_branch
      %18 = sbr.rel (0) target = $region13
    $region12: #{vectorized_action_q_forward.7} parent=1 // pred_region
      _
    $region13: #{vectorized_action_q_forward.7} parent=1 // pred_fallthru
      _
    %v19 = vld [vmem:[%s0] sm:$0xff]
    %v20 = vld [vmem:[%s0 + $0x8] sm:$0xff]
    %v21 = vld [vmem:[%s0 + $0x10] sm:$0xff]
    %v22 = vld [vmem:[%s0 + $0x18] sm:$0x3]
    %v23 = vld [vmem:[%s1] sm:$0xff]
    %v24 = vld [vmem:[%s1 + $0x8] sm:$0xff]
    %v25 = vld [vmem:[%s1 + $0x10] sm:$0xff]
    %v26 = vld [vmem:[%s1 + $0x18] sm:$0xff]
    %v27 = vld [vmem:[%s1 + $0x20] sm:$0xff]
    %v28 = vld [vmem:[%s1 + $0x28] sm:$0xff]
    %v29 = vld [vmem:[%s1 + $0x30] sm:$0xff]
    %v30 = vld [vmem:[%s1 + $0x38] sm:$0xff]
    %v31 = vld [vmem:[%s1 + $0x40] sm:$0xff]
    %v32 = vld [vmem:[%s1 + $0x48] sm:$0xff]
    %v33 = vld [vmem:[%s1 + $0x50] sm:$0xff]
    %v34 = vld [vmem:[%s1 + $0x58] sm:$0xff]
    %v35 = vld [vmem:[%s1 + $0x60] sm:$0xff]
    %v36 = vld [vmem:[%s1 + $0x68] sm:$0xff]
    %v37 = vld [vmem:[%s1 + $0x70] sm:$0xff]
    %v38 = vld [vmem:[%s1 + $0x78] sm:$0xff]
    %v39 = vld [vmem:[%s1 + $0x80] sm:$0xff]
    %v40 = vld [vmem:[%s1 + $0x88] sm:$0xff]
    %v41 = vld [vmem:[%s1 + $0x90] sm:$0xff]
    %v42 = vld [vmem:[%s1 + $0x98] sm:$0xff]
    %v43 = vld [vmem:[%s1 + $0xa0] sm:$0xff]
    %v44 = vld [vmem:[%s1 + $0xa8] sm:$0xff]
    %v45 = vld [vmem:[%s1 + $0xb0] sm:$0xff]
    %v46 = vld [vmem:[%s1 + $0xb8] sm:$0xff]
    %v47 = vld [vmem:[%s1 + $0xc0] sm:$0xff]
    %v48 = vld [vmem:[%s1 + $0xc8] sm:$0xff]
    %v49 = vld [vmem:[%s1 + $0xd0] sm:$0xff]
    %v50 = vld [vmem:[%s1 + $0xd8] sm:$0xff]
    %v51 = vld [vmem:[%s1 + $0xe0] sm:$0xff]
    %v52 = vld [vmem:[%s1 + $0xe8] sm:$0xff]
    %v53 = vld [vmem:[%s1 + $0xf0] sm:$0xff]
    %v54 = vld [vmem:[%s1 + $0xf8] sm:$0xff]
    %v55 = vld [vmem:[%s1 + $0x100] sm:$0xff]
    %v56 = vld [vmem:[%s1 + $0x108] sm:$0xff]
    %v57 = vld [vmem:[%s1 + $0x110] sm:$0xff]
    %v58 = vld [vmem:[%s1 + $0x118] sm:$0xff]
    %v59 = vld [vmem:[%s1 + $0x120] sm:$0xff]
    %v60 = vld [vmem:[%s1 + $0x128] sm:$0xff]
    %v61 = vld [vmem:[%s1 + $0x130] sm:$0xff]
    %v62 = vld [vmem:[%s1 + $0x138] sm:$0xff]
    %v63 = vld [vmem:[%s1 + $0x140] sm:$0xff]
    %v64 = vld [vmem:[%s1 + $0x148] sm:$0xff]
    %v65 = vld [vmem:[%s1 + $0x150] sm:$0xff]
    %v66 = vld [vmem:[%s1 + $0x158] sm:$0xff]
    %v67 = vld [vmem:[%s1 + $0x160] sm:$0xff]
    %v68 = vld [vmem:[%s1 + $0x168] sm:$0xff]
    %v69 = vld [vmem:[%s1 + $0x170] sm:$0xff]
    %v70 = vld [vmem:[%s1 + $0x178] sm:$0xff]
    %v71 = vld [vmem:[%s1 + $0x180] sm:$0xff]
    %v72 = vld [vmem:[%s1 + $0x188] sm:$0xff]
    %v73 = vld [vmem:[%s1 + $0x190] sm:$0xff]
    %v74 = vld [vmem:[%s1 + $0x198] sm:$0xff]
    %v75 = vld [vmem:[%s1 + $0x1a0] sm:$0xff]
    %v76 = vld [vmem:[%s1 + $0x1a8] sm:$0xff]
    %v77 = vld [vmem:[%s1 + $0x1b0] sm:$0xff]
    %v78 = vld [vmem:[%s1 + $0x1b8] sm:$0xff]
    %v79 = vld [vmem:[%s1 + $0x1c0] sm:$0xff]
    %v80 = vld [vmem:[%s1 + $0x1c8] sm:$0xff]
    %v81 = vld [vmem:[%s1 + $0x1d0] sm:$0xff]
    %v82 = vld [vmem:[%s1 + $0x1d8] sm:$0xff]
    %v83 = vld [vmem:[%s1 + $0x1e0] sm:$0xff]
    %v84 = vld [vmem:[%s1 + $0x1e8] sm:$0xff]
    %v85 = vld [vmem:[%s1 + $0x1f0] sm:$0xff]
    %v86 = vld [vmem:[%s1 + $0x1f8] sm:$0xff]
    %v87 = vld [vmem:[%s1 + $0x200] sm:$0xff]
    %v88 = vld [vmem:[%s1 + $0x208] sm:$0xff]
    %v89 = vld [vmem:[%s1 + $0x210] sm:$0xff]
    %v90 = vld [vmem:[%s1 + $0x218] sm:$0xff]
    %v91 = vld [vmem:[%s1 + $0x220] sm:$0xff]
    %v92 = vld [vmem:[%s1 + $0x228] sm:$0xff]
    %v93 = vld [vmem:[%s1 + $0x230] sm:$0xff]
    %v94 = vld [vmem:[%s1 + $0x238] sm:$0xff]
    %v95 = vld [vmem:[%s1 + $0x240] sm:$0xff]
    %v96 = vld [vmem:[%s1 + $0x248] sm:$0xff]
    %v97 = vld [vmem:[%s1 + $0x250] sm:$0xff]
    %v98 = vld [vmem:[%s1 + $0x258] sm:$0xff]
    %v99 = vld [vmem:[%s1 + $0x260] sm:$0xff]
    %v100 = vld [vmem:[%s1 + $0x268] sm:$0xff]
    %v101 = vld [vmem:[%s1 + $0x270] sm:$0xff]
    %v102 = vld [vmem:[%s1 + $0x278] sm:$0xff]
    %v103 = vld [vmem:[%s1 + $0x280] sm:$0xff]
    %v104 = vld [vmem:[%s1 + $0x288] sm:$0xff]
    %v105 = vld [vmem:[%s1 + $0x290] sm:$0xff]
    %v106 = vld [vmem:[%s1 + $0x298] sm:$0xff]
    %v107 = vld [vmem:[%s1 + $0x2a0] sm:$0xff]
    %v108 = vld [vmem:[%s1 + $0x2a8] sm:$0xff]
    %v109 = vld [vmem:[%s1 + $0x2b0] sm:$0xff]
    %v110 = vld [vmem:[%s1 + $0x2b8] sm:$0xff]
    %v111 = vld [vmem:[%s1 + $0x2c0] sm:$0xff]
    %v112 = vld [vmem:[%s1 + $0x2c8] sm:$0xff]
    %v113 = vld [vmem:[%s1 + $0x2d0] sm:$0xff]
    %v114 = vld [vmem:[%s1 + $0x2d8] sm:$0xff]
    %v115 = vld [vmem:[%s1 + $0x2e0] sm:$0xff]
    %v116 = vld [vmem:[%s1 + $0x2e8] sm:$0xff]
    %v117 = vld [vmem:[%s1 + $0x2f0] sm:$0xff]
    %v118 = vld [vmem:[%s1 + $0x2f8] sm:$0xff]
    %v119 = vld [vmem:[%s1 + $0x300] sm:$0xff]
    %v120 = vld [vmem:[%s1 + $0x308] sm:$0xff]
    %v121 = vld [vmem:[%s1 + $0x310] sm:$0xff]
    %v122 = vld [vmem:[%s1 + $0x318] sm:$0xff]
    %v123 = vld [vmem:[%s1 + $0x320] sm:$0xff]
    %v124 = vld [vmem:[%s1 + $0x328] sm:$0xff]
    %v125 = vld [vmem:[%s1 + $0x330] sm:$0xff]
    %v126 = vld [vmem:[%s1 + $0x338] sm:$0xff]
    %v127 = vld [vmem:[%s1 + $0x340] sm:$0xff]
    %v128 = vld [vmem:[%s1 + $0x348] sm:$0xff]
    %v129 = vld [vmem:[%s1 + $0x350] sm:$0xff]
    %v130 = vld [vmem:[%s1 + $0x358] sm:$0xff]
    %v131 = vld [vmem:[%s1 + $0x360] sm:$0xff]
    %v132 = vld [vmem:[%s1 + $0x368] sm:$0xff]
    %v133 = vld [vmem:[%s1 + $0x370] sm:$0xff]
    %v134 = vld [vmem:[%s1 + $0x378] sm:$0xff]
    %v135 = vld [vmem:[%s1 + $0x380] sm:$0xff]
    %v136 = vld [vmem:[%s1 + $0x388] sm:$0xff]
    %v137 = vld [vmem:[%s1 + $0x390] sm:$0xff]
    %v138 = vld [vmem:[%s1 + $0x398] sm:$0xff]
    %v139 = vld [vmem:[%s1 + $0x3a0] sm:$0xff]
    %v140 = vld [vmem:[%s1 + $0x3a8] sm:$0xff]
    %v141 = vld [vmem:[%s1 + $0x3b0] sm:$0xff]
    %v142 = vld [vmem:[%s1 + $0x3b8] sm:$0xff]
    %v143 = vld [vmem:[%s1 + $0x3c0] sm:$0xff]
    %v144 = vld [vmem:[%s1 + $0x3c8] sm:$0xff]
    %v145 = vld [vmem:[%s1 + $0x3d0] sm:$0xff]
    %v146 = vld [vmem:[%s1 + $0x3d8] sm:$0xff]
    %v147 = vld [vmem:[%s1 + $0x3e0] sm:$0xff]
    %v148 = vld [vmem:[%s1 + $0x3e8] sm:$0xff]
    %v149 = vld [vmem:[%s1 + $0x3f0] sm:$0xff]
    %v150 = vld [vmem:[%s1 + $0x3f8] sm:$0xff]
    %v151 = vld [vmem:[%s1 + $0x400] sm:$0xff]
    %v152 = vld [vmem:[%s1 + $0x408] sm:$0xff]
    %v153 = vld [vmem:[%s1 + $0x410] sm:$0xff]
    %v154 = vld [vmem:[%s1 + $0x418] sm:$0xff]
    %v155 = vld [vmem:[%s1 + $0x420] sm:$0xff]
    %v156 = vld [vmem:[%s1 + $0x428] sm:$0xff]
    %v157 = vld [vmem:[%s1 + $0x430] sm:$0xff]
    %v158 = vld [vmem:[%s1 + $0x438] sm:$0xff]
    %v159 = vld [vmem:[%s1 + $0x440] sm:$0xff]
    %v160 = vld [vmem:[%s1 + $0x448] sm:$0xff]
    %v161 = vld [vmem:[%s1 + $0x450] sm:$0xff]
    %v162 = vld [vmem:[%s1 + $0x458] sm:$0xff]
    %v163 = vld [vmem:[%s1 + $0x460] sm:$0xff]
    %v164 = vld [vmem:[%s1 + $0x468] sm:$0xff]
    %v165 = vld [vmem:[%s1 + $0x470] sm:$0xff]
    %v166 = vld [vmem:[%s1 + $0x478] sm:$0xff]
    %v167 = vld [vmem:[%s1 + $0x480] sm:$0xff]
    %v168 = vld [vmem:[%s1 + $0x488] sm:$0xff]
    %v169 = vld [vmem:[%s1 + $0x490] sm:$0xff]
    %v170 = vld [vmem:[%s1 + $0x498] sm:$0xff]
    %v171 = vld [vmem:[%s1 + $0x4a0] sm:$0xff]
    %v172 = vld [vmem:[%s1 + $0x4a8] sm:$0xff]
    %v173 = vld [vmem:[%s1 + $0x4b0] sm:$0xff]
    %v174 = vld [vmem:[%s1 + $0x4b8] sm:$0xff]
    %v175 = vld [vmem:[%s1 + $0x4c0] sm:$0xff]
    %v176 = vld [vmem:[%s1 + $0x4c8] sm:$0xff]
    %v177 = vld [vmem:[%s1 + $0x4d0] sm:$0xff]
    %v178 = vld [vmem:[%s1 + $0x4d8] sm:$0xff]
    %v179 = vld [vmem:[%s1 + $0x4e0] sm:$0xff]
    %v180 = vld [vmem:[%s1 + $0x4e8] sm:$0xff]
    %v181 = vld [vmem:[%s1 + $0x4f0] sm:$0xff]
    %v182 = vld [vmem:[%s1 + $0x4f8] sm:$0xff]
    %v183 = vld [vmem:[%s1 + $0x500] sm:$0xff]
    %v184 = vld [vmem:[%s1 + $0x508] sm:$0xff]
    %v185 = vld [vmem:[%s1 + $0x510] sm:$0xff]
    %v186 = vld [vmem:[%s1 + $0x518] sm:$0xff]
    %v187 = vld [vmem:[%s1 + $0x520] sm:$0xff]
    %v188 = vld [vmem:[%s1 + $0x528] sm:$0xff]
    %v189 = vld [vmem:[%s1 + $0x530] sm:$0xff]
    %v190 = vld [vmem:[%s1 + $0x538] sm:$0xff]
    %v191 = vld [vmem:[%s1 + $0x540] sm:$0xff]
    %v192 = vld [vmem:[%s1 + $0x548] sm:$0xff]
    %v193 = vld [vmem:[%s1 + $0x550] sm:$0xff]
    %v194 = vld [vmem:[%s1 + $0x558] sm:$0xff]
    %v195 = vld [vmem:[%s1 + $0x560] sm:$0xff]
    %v196 = vld [vmem:[%s1 + $0x568] sm:$0xff]
    %v197 = vld [vmem:[%s1 + $0x570] sm:$0xff]
    %v198 = vld [vmem:[%s1 + $0x578] sm:$0xff]
    %v199 = vld [vmem:[%s1 + $0x580] sm:$0xff]
    %v200 = vld [vmem:[%s1 + $0x588] sm:$0xff]
    %v201 = vld [vmem:[%s1 + $0x590] sm:$0xff]
    %v202 = vld [vmem:[%s1 + $0x598] sm:$0xff]
    %v203 = vld [vmem:[%s1 + $0x5a0] sm:$0xff]
    %v204 = vld [vmem:[%s1 + $0x5a8] sm:$0xff]
    %v205 = vld [vmem:[%s1 + $0x5b0] sm:$0xff]
    %v206 = vld [vmem:[%s1 + $0x5b8] sm:$0xff]
    %v207 = vld [vmem:[%s1 + $0x5c0] sm:$0xff]
    %v208 = vld [vmem:[%s1 + $0x5c8] sm:$0xff]
    %v209 = vld [vmem:[%s1 + $0x5d0] sm:$0xff]
    %v210 = vld [vmem:[%s1 + $0x5d8] sm:$0xff]
    %v211 = vld [vmem:[%s1 + $0x5e0] sm:$0xff]
    %v212 = vld [vmem:[%s1 + $0x5e8] sm:$0xff]
    %v213 = vld [vmem:[%s1 + $0x5f0] sm:$0xff]
    %v214 = vld [vmem:[%s1 + $0x5f8] sm:$0xff]
    %v215 = vld [vmem:[%s1 + $0x600] sm:$0xff]
    %v216 = vld [vmem:[%s1 + $0x608] sm:$0xff]
    %v217 = vld [vmem:[%s1 + $0x610] sm:$0xff]
    %v218 = vld [vmem:[%s1 + $0x618] sm:$0xff]
    %v219 = vld [vmem:[%s1 + $0x620] sm:$0xff]
    %v220 = vld [vmem:[%s1 + $0x628] sm:$0xff]
    %v221 = vld [vmem:[%s1 + $0x630] sm:$0xff]
    %v222 = vld [vmem:[%s1 + $0x638] sm:$0xff]
    %v223 = vld [vmem:[%s1 + $0x640] sm:$0xff]
    %v224 = vld [vmem:[%s1 + $0x648] sm:$0xff]
    %v225 = vld [vmem:[%s1 + $0x650] sm:$0xff]
    %v226 = vld [vmem:[%s1 + $0x658] sm:$0xff]
    %v227 = vld [vmem:[%s1 + $0x660] sm:$0xff]
    %v228 = vld [vmem:[%s1 + $0x668] sm:$0xff]
    %v229 = vld [vmem:[%s1 + $0x670] sm:$0xff]
    %v230 = vld [vmem:[%s1 + $0x678] sm:$0xff]
    %v231 = vld [vmem:[%s1 + $0x680] sm:$0xff]
    %v232 = vld [vmem:[%s1 + $0x688] sm:$0xff]
    %v233 = vld [vmem:[%s1 + $0x690] sm:$0xff]
    %v234 = vld [vmem:[%s1 + $0x698] sm:$0xff]
    %v235 = vld [vmem:[%s1 + $0x6a0] sm:$0xff]
    %v236 = vld [vmem:[%s1 + $0x6a8] sm:$0xff]
    %v237 = vld [vmem:[%s1 + $0x6b0] sm:$0xff]
    %v238 = vld [vmem:[%s1 + $0x6b8] sm:$0xff]
    %v239 = vld [vmem:[%s1 + $0x6c0] sm:$0xff]
    %v240 = vld [vmem:[%s1 + $0x6c8] sm:$0xff]
    %v241 = vld [vmem:[%s1 + $0x6d0] sm:$0xff]
    %v242 = vld [vmem:[%s1 + $0x6d8] sm:$0xff]
    %v243 = vld [vmem:[%s1 + $0x6e0] sm:$0xff]
    %v244 = vld [vmem:[%s1 + $0x6e8] sm:$0xff]
    %v245 = vld [vmem:[%s1 + $0x6f0] sm:$0xff]
    %v246 = vld [vmem:[%s1 + $0x6f8] sm:$0xff]
    %v247 = vld [vmem:[%s1 + $0x700] sm:$0xff]
    %v248 = vld [vmem:[%s1 + $0x708] sm:$0xff]
    %v249 = vld [vmem:[%s1 + $0x710] sm:$0xff]
    %v250 = vld [vmem:[%s1 + $0x718] sm:$0xff]
    %v251 = vld [vmem:[%s1 + $0x720] sm:$0xff]
    %v252 = vld [vmem:[%s1 + $0x728] sm:$0xff]
    %v253 = vld [vmem:[%s1 + $0x730] sm:$0xff]
    %v254 = vld [vmem:[%s1 + $0x738] sm:$0xff]
    %v255 = vld [vmem:[%s1 + $0x740] sm:$0xff]
    %v256 = vld [vmem:[%s1 + $0x748] sm:$0xff]
    %v257 = vld [vmem:[%s1 + $0x750] sm:$0xff]
    %v258 = vld [vmem:[%s1 + $0x758] sm:$0xff]
    %v259 = vld [vmem:[%s1 + $0x760] sm:$0xff]
    %v260 = vld [vmem:[%s1 + $0x768] sm:$0xff]
    %v261 = vld [vmem:[%s1 + $0x770] sm:$0xff]
    %v262 = vld [vmem:[%s1 + $0x778] sm:$0xff]
    %v263 = vld [vmem:[%s1 + $0x780] sm:$0xff]
    %v264 = vld [vmem:[%s1 + $0x788] sm:$0xff]
    %v265 = vld [vmem:[%s1 + $0x790] sm:$0xff]
    %v266 = vld [vmem:[%s1 + $0x798] sm:$0xff]
    %v267 = vld [vmem:[%s1 + $0x7a0] sm:$0xff]
    %v268 = vld [vmem:[%s1 + $0x7a8] sm:$0xff]
    %v269 = vld [vmem:[%s1 + $0x7b0] sm:$0xff]
    %v270 = vld [vmem:[%s1 + $0x7b8] sm:$0xff]
    %v271 = vld [vmem:[%s1 + $0x7c0] sm:$0xff]
    %v272 = vld [vmem:[%s1 + $0x7c8] sm:$0xff]
    %v273 = vld [vmem:[%s1 + $0x7d0] sm:$0xff]
    %v274 = vld [vmem:[%s1 + $0x7d8] sm:$0xff]
    %v275 = vld [vmem:[%s1 + $0x7e0] sm:$0xff]
    %v276 = vld [vmem:[%s1 + $0x7e8] sm:$0xff]
    %v277 = vld [vmem:[%s1 + $0x7f0] sm:$0xff]
    %v278 = vld [vmem:[%s1 + $0x7f8] sm:$0xff]
    %v279 = vld [vmem:[%s1 + $0x800] sm:$0xff]
    %v280 = vld [vmem:[%s1 + $0x808] sm:$0xff]
    %v281 = vld [vmem:[%s1 + $0x810] sm:$0xff]
    %v282 = vld [vmem:[%s1 + $0x818] sm:$0xff]
    %v283 = vld [vmem:[%s1 + $0x820] sm:$0xff]
    %v284 = vld [vmem:[%s1 + $0x828] sm:$0xff]
    %v285 = vld [vmem:[%s1 + $0x830] sm:$0xff]
    %v286 = vld [vmem:[%s1 + $0x838] sm:$0xff]
    %v287 = vld [vmem:[%s1 + $0x840] sm:$0xff]
    %v288 = vld [vmem:[%s1 + $0x848] sm:$0xff]
    %v289 = vld [vmem:[%s1 + $0x850] sm:$0xff]
    %v290 = vld [vmem:[%s1 + $0x858] sm:$0xff]
    %v291 = vld [vmem:[%s1 + $0x860] sm:$0xff]
    %v292 = vld [vmem:[%s1 + $0x868] sm:$0xff]
    %v293 = vld [vmem:[%s1 + $0x870] sm:$0xff]
    %v294 = vld [vmem:[%s1 + $0x878] sm:$0xff]
    %v295 = vld [vmem:[%s1 + $0x880] sm:$0xff]
    %v296 = vld [vmem:[%s1 + $0x888] sm:$0xff]
    %v297 = vld [vmem:[%s1 + $0x890] sm:$0xff]
    %v298 = vld [vmem:[%s1 + $0x898] sm:$0xff]
    %v299 = vld [vmem:[%s1 + $0x8a0] sm:$0xff]
    %v300 = vld [vmem:[%s1 + $0x8a8] sm:$0xff]
    %v301 = vld [vmem:[%s1 + $0x8b0] sm:$0xff]
    %v302 = vld [vmem:[%s1 + $0x8b8] sm:$0xff]
    %v303 = vld [vmem:[%s1 + $0x8c0] sm:$0xff]
    %v304 = vld [vmem:[%s1 + $0x8c8] sm:$0xff]
    %v305 = vld [vmem:[%s1 + $0x8d0] sm:$0xff]
    %v306 = vld [vmem:[%s1 + $0x8d8] sm:$0xff]
    %v307 = vld [vmem:[%s1 + $0x8e0] sm:$0xff]
    %v308 = vld [vmem:[%s1 + $0x8e8] sm:$0xff]
    %v309 = vld [vmem:[%s1 + $0x8f0] sm:$0xff]
    %v310 = vld [vmem:[%s1 + $0x8f8] sm:$0xff]
    %v311 = vld [vmem:[%s1 + $0x900] sm:$0xff]
    %v312 = vld [vmem:[%s1 + $0x908] sm:$0xff]
    %v313 = vld [vmem:[%s1 + $0x910] sm:$0xff]
    %v314 = vld [vmem:[%s1 + $0x918] sm:$0xff]
    %v315 = vld [vmem:[%s1 + $0x920] sm:$0xff]
    %v316 = vld [vmem:[%s1 + $0x928] sm:$0xff]
    %v317 = vld [vmem:[%s1 + $0x930] sm:$0xff]
    %v318 = vld [vmem:[%s1 + $0x938] sm:$0xff]
    %v319 = vld [vmem:[%s1 + $0x940] sm:$0xff]
    %v320 = vld [vmem:[%s1 + $0x948] sm:$0xff]
    %v321 = vld [vmem:[%s1 + $0x950] sm:$0xff]
    %v322 = vld [vmem:[%s1 + $0x958] sm:$0xff]
    %v323 = vld [vmem:[%s1 + $0x960] sm:$0xff]
    %v324 = vld [vmem:[%s1 + $0x968] sm:$0xff]
    %v325 = vld [vmem:[%s1 + $0x970] sm:$0xff]
    %v326 = vld [vmem:[%s1 + $0x978] sm:$0xff]
    %v327 = vld [vmem:[%s1 + $0x980] sm:$0xff]
    %v328 = vld [vmem:[%s1 + $0x988] sm:$0xff]
    %v329 = vld [vmem:[%s1 + $0x990] sm:$0xff]
    %v330 = vld [vmem:[%s1 + $0x998] sm:$0xff]
    %v331 = vld [vmem:[%s1 + $0x9a0] sm:$0xff]
    %v332 = vld [vmem:[%s1 + $0x9a8] sm:$0xff]
    %v333 = vld [vmem:[%s1 + $0x9b0] sm:$0xff]
    %v334 = vld [vmem:[%s1 + $0x9b8] sm:$0xff]
    %v335 = vld [vmem:[%s1 + $0x9c0] sm:$0xff]
    %v336 = vld [vmem:[%s1 + $0x9c8] sm:$0xff]
    %v337 = vld [vmem:[%s1 + $0x9d0] sm:$0xff]
    %v338 = vld [vmem:[%s1 + $0x9d8] sm:$0xff]
    %v339 = vld [vmem:[%s1 + $0x9e0] sm:$0xff]
    %v340 = vld [vmem:[%s1 + $0x9e8] sm:$0xff]
    %v341 = vld [vmem:[%s1 + $0x9f0] sm:$0xff]
    %v342 = vld [vmem:[%s1 + $0x9f8] sm:$0xff]
    %v343 = vld [vmem:[%s1 + $0xa00] sm:$0xff]
    %v344 = vld [vmem:[%s1 + $0xa08] sm:$0xff]
    %v345 = vld [vmem:[%s1 + $0xa10] sm:$0xff]
    %v346 = vld [vmem:[%s1 + $0xa18] sm:$0xff]
    %v347 = vld [vmem:[%s1 + $0xa20] sm:$0xff]
    %v348 = vld [vmem:[%s1 + $0xa28] sm:$0xff]
    %v349 = vld [vmem:[%s1 + $0xa30] sm:$0xff]
    %v350 = vld [vmem:[%s1 + $0xa38] sm:$0xff]
    %v351 = vld [vmem:[%s1 + $0xa40] sm:$0xff]
    %v352 = vld [vmem:[%s1 + $0xa48] sm:$0xff]
    %v353 = vld [vmem:[%s1 + $0xa50] sm:$0xff]
    %v354 = vld [vmem:[%s1 + $0xa58] sm:$0xff]
    %v355 = vld [vmem:[%s1 + $0xa60] sm:$0xff]
    %v356 = vld [vmem:[%s1 + $0xa68] sm:$0xff]
    %v357 = vld [vmem:[%s1 + $0xa70] sm:$0xff]
    %v358 = vld [vmem:[%s1 + $0xa78] sm:$0xff]
    %v359 = vld [vmem:[%s1 + $0xa80] sm:$0xff]
    %v360 = vld [vmem:[%s1 + $0xa88] sm:$0xff]
    %v361 = vld [vmem:[%s1 + $0xa90] sm:$0xff]
    %v362 = vld [vmem:[%s1 + $0xa98] sm:$0xff]
    %v363 = vld [vmem:[%s1 + $0xaa0] sm:$0xff]
    %v364 = vld [vmem:[%s1 + $0xaa8] sm:$0xff]
    %v365 = vld [vmem:[%s1 + $0xab0] sm:$0xff]
    %v366 = vld [vmem:[%s1 + $0xab8] sm:$0xff]
    %v367 = vld [vmem:[%s1 + $0xac0] sm:$0xff]
    %v368 = vld [vmem:[%s1 + $0xac8] sm:$0xff]
    %v369 = vld [vmem:[%s1 + $0xad0] sm:$0xff]
    %v370 = vld [vmem:[%s1 + $0xad8] sm:$0xff]
    %v371 = vld [vmem:[%s1 + $0xae0] sm:$0xff]
    %v372 = vld [vmem:[%s1 + $0xae8] sm:$0xff]
    %v373 = vld [vmem:[%s1 + $0xaf0] sm:$0xff]
    %v374 = vld [vmem:[%s1 + $0xaf8] sm:$0xff]
    %v375 = vld [vmem:[%s1 + $0xb00] sm:$0xff]
    %v376 = vld [vmem:[%s1 + $0xb08] sm:$0xff]
    %v377 = vld [vmem:[%s1 + $0xb10] sm:$0xff]
    %v378 = vld [vmem:[%s1 + $0xb18] sm:$0xff]
    %v379 = vld [vmem:[%s1 + $0xb20] sm:$0xff]
    %v380 = vld [vmem:[%s1 + $0xb28] sm:$0xff]
    %v381 = vld [vmem:[%s1 + $0xb30] sm:$0xff]
    %v382 = vld [vmem:[%s1 + $0xb38] sm:$0xff]
    %v383 = vld [vmem:[%s1 + $0xb40] sm:$0xff]
    %v384 = vld [vmem:[%s1 + $0xb48] sm:$0xff]
    %v385 = vld [vmem:[%s1 + $0xb50] sm:$0xff]
    %v386 = vld [vmem:[%s1 + $0xb58] sm:$0xff]
    %v387 = vld [vmem:[%s1 + $0xb60] sm:$0xff]
    %v388 = vld [vmem:[%s1 + $0xb68] sm:$0xff]
    %v389 = vld [vmem:[%s1 + $0xb70] sm:$0xff]
    %v390 = vld [vmem:[%s1 + $0xb78] sm:$0xff]
    %v391 = vld [vmem:[%s1 + $0xb80] sm:$0xff]
    %v392 = vld [vmem:[%s1 + $0xb88] sm:$0xff]
    %v393 = vld [vmem:[%s1 + $0xb90] sm:$0xff]
    %v394 = vld [vmem:[%s1 + $0xb98] sm:$0xff]
    %v395 = vld [vmem:[%s1 + $0xba0] sm:$0xff]
    %v396 = vld [vmem:[%s1 + $0xba8] sm:$0xff]
    %v397 = vld [vmem:[%s1 + $0xbb0] sm:$0xff]
    %v398 = vld [vmem:[%s1 + $0xbb8] sm:$0xff]
    %v399 = vld [vmem:[%s1 + $0xbc0] sm:$0xff]
    %v400 = vld [vmem:[%s1 + $0xbc8] sm:$0xff]
    %v401 = vld [vmem:[%s1 + $0xbd0] sm:$0xff]
    %v402 = vld [vmem:[%s1 + $0xbd8] sm:$0xff]
    %v403 = vld [vmem:[%s1 + $0xbe0] sm:$0xff]
    %v404 = vld [vmem:[%s1 + $0xbe8] sm:$0xff]
    %v405 = vld [vmem:[%s1 + $0xbf0] sm:$0xff]
    %v406 = vld [vmem:[%s1 + $0xbf8] sm:$0xff]
    %v407 = vld [vmem:[%s1 + $0xc00] sm:$0xff]
    %v408 = vld [vmem:[%s1 + $0xc08] sm:$0xff]
    %v409 = vld [vmem:[%s1 + $0xc10] sm:$0xff]
    %v410 = vld [vmem:[%s1 + $0xc18] sm:$0xff]
    %v411 = vld [vmem:[%s1 + $0xc20] sm:$0xff]
    %v412 = vld [vmem:[%s1 + $0xc28] sm:$0xff]
    %v413 = vld [vmem:[%s1 + $0xc30] sm:$0xff]
    %v414 = vld [vmem:[%s1 + $0xc38] sm:$0xff]
    %v419 = vcombine.high %v19, %v19
    %v421 = vunpack.c.l.s4 1983009808
    %v422 = vunpack.c.0.s8 %v421
    %v423 = vlaneseq
    %v424 = vshrl.u32 %v423, 7
    %v425 = vsub.s32 %v422, %v424
    %v426 = vrot.slane %v19, %v425
    %v428 = vunpack.c.l.s4 1983009808
    %v429 = vunpack.c.0.s8 %v428
    %v430 = vlaneseq
    %v431 = vshrl.u32 %v430, 7
    %v432 = vsub.s32 %v429, %v431
    %v433 = vrot.slane %v419, %v432
    %v434 = vcombine.high %v426, %v426
    %v435 = vcombine.high %v433, %v433
    %v436 = vcombine.high %v20, %v20
    %v438 = vunpack.c.l.s4 1983009808
    %v439 = vunpack.c.0.s8 %v438
    %v440 = vlaneseq
    %v441 = vshrl.u32 %v440, 7
    %v442 = vsub.s32 %v439, %v441
    %v443 = vrot.slane %v20, %v442
    %v445 = vunpack.c.l.s4 1983009808
    %v446 = vunpack.c.0.s8 %v445
    %v447 = vlaneseq
    %v448 = vshrl.u32 %v447, 7
    %v449 = vsub.s32 %v446, %v448
    %v450 = vrot.slane %v436, %v449
    %v451 = vcombine.high %v443, %v443
    %v452 = vcombine.high %v450, %v450
    %v453 = vcombine.high %v21, %v21
    %v455 = vunpack.c.l.s4 1983009808
    %v456 = vunpack.c.0.s8 %v455
    %v457 = vlaneseq
    %v458 = vshrl.u32 %v457, 7
    %v459 = vsub.s32 %v456, %v458
    %v460 = vrot.slane %v21, %v459
    %v462 = vunpack.c.l.s4 1983009808
    %v463 = vunpack.c.0.s8 %v462
    %v464 = vlaneseq
    %v465 = vshrl.u32 %v464, 7
    %v466 = vsub.s32 %v463, %v465
    %v467 = vrot.slane %v453, %v466
    %v468 = vcombine.high %v460, %v460
    %v469 = vcombine.high %v467, %v467
    %v471 = vunpack.c.l.s4 1983009808
    %v472 = vunpack.c.0.s8 %v471
    %v473 = vlaneseq
    %v474 = vshrl.u32 %v473, 7
    %v475 = vsub.s32 %v472, %v474
    %v476 = vrot.slane %v22, %v475
    %vm489 = vcmask 261120
    %v490 = vsel %vm489, %v476, 0
    %492 = vmatprep.subr.mxu0 %v24
    %493 = vmatpush1.msra.mxu0 %v23
    %494 = vmatprep.subr.mxu0 %v26
    %495 = vmatpush1.msra.mxu0 %v25
    %496 = vmatprep.subr.mxu0 %v28
    %497 = vmatpush1.msra.mxu0 %v27
    %498 = vmatprep.subr.mxu0 %v30
    %499 = vmatpush1.msra.mxu0 %v29
    %500 = vmatprep.subr.mxu0 %v32
    %501 = vmatpush1.msra.mxu0 %v31
    %502 = vmatprep.subr.mxu0 %v34
    %503 = vmatpush1.msra.mxu0 %v33
    %504 = vmatprep.subr.mxu0 %v36
    %505 = vmatpush1.msra.mxu0 %v35
    %506 = vmatprep.subr.mxu0 %v38
    %507 = vmatpush1.msra.mxu0 %v37
    %508 = vmatprep.subr.mxu0 %v40
    %509 = vmatpush1.msra.mxu0 %v39
    %510 = vmatprep.subr.mxu0 %v42
    %511 = vmatpush1.msra.mxu0 %v41
    %512 = vmatprep.subr.mxu0 %v44
    %513 = vmatpush1.msra.mxu0 %v43
    %514 = vmatprep.subr.mxu0 %v46
    %515 = vmatpush1.msra.mxu0 %v45
    %516 = vmatprep.subr.mxu0 %v48
    %517 = vmatpush1.msra.mxu0 %v47
    %518 = vmatprep.subr.mxu0 %v50
    %519 = vmatpush1.msra.mxu0 %v49
    %520 = vmatprep.subr.mxu0 %v52
    %521 = vmatpush1.msra.mxu0 %v51
    %522 = vmatprep.subr.mxu0 %v54
    %523 = vmatpush1.msra.mxu0 %v53
    %524 = vmatprep.subr.mxu0 %v56
    %525 = vmatpush1.msra.mxu0 %v55
    %526 = vmatprep.subr.mxu0 %v58
    %527 = vmatpush1.msra.mxu0 %v57
    %528 = vmatprep.subr.mxu0 %v60
    %529 = vmatpush1.msra.mxu0 %v59
    %530 = vmatprep.subr.mxu0 %v62
    %531 = vmatpush1.msra.mxu0 %v61
    %532 = vmatprep.subr.mxu0 %v64
    %533 = vmatpush1.msra.mxu0 %v63
    %534 = vmatprep.subr.mxu0 %v66
    %535 = vmatpush1.msra.mxu0 %v65
    %536 = vmatprep.subr.mxu0 %v68
    %537 = vmatpush1.msra.mxu0 %v67
    %538 = vmatprep.subr.mxu0 %v70
    %539 = vmatpush1.msra.mxu0 %v69
    %540 = vmatprep.subr.mxu0 %v72
    %541 = vmatpush1.msra.mxu0 %v71
    %542 = vmatprep.subr.mxu0 %v74
    %543 = vmatpush1.msra.mxu0 %v73
    %544 = vmatprep.subr.mxu0 %v76
    %545 = vmatpush1.msra.mxu0 %v75
    %546 = vmatprep.subr.mxu0 %v78
    %547 = vmatpush1.msra.mxu0 %v77
    %548 = vmatprep.subr.mxu0 %v80
    %549 = vmatpush1.msra.mxu0 %v79
    %550 = vmatprep.subr.mxu0 %v82
    %551 = vmatpush1.msra.mxu0 %v81
    %552 = vmatprep.subr.mxu0 %v84
    %553 = vmatpush1.msra.mxu0 %v83
    %554 = vmatprep.subr.mxu0 %v86
    %555 = vmatpush1.msra.mxu0 %v85
    %556 = vmatprep.mubr.f32.mxu0 %v434
    %557 = vmatmul.mubr.f32.gmra.mrb[0].mxu0 %v426
    %v558 = vpop.f32.mrb[0].mxu0
    %v559 = vadd.f32 0.0, %v558
    %v560 = vpop.f32.mrb[0].mxu0
    %v561 = vadd.f32 0.0, %v560
    %562 = vdwg.mxu0
    %563 = vmatprep.subr.mxu0 %v88
    %564 = vmatpush1.msra.mxu0 %v87
    %565 = vmatprep.subr.mxu0 %v90
    %566 = vmatpush1.msra.mxu0 %v89
    %567 = vmatprep.subr.mxu0 %v92
    %568 = vmatpush1.msra.mxu0 %v91
    %569 = vmatprep.subr.mxu0 %v94
    %570 = vmatpush1.msra.mxu0 %v93
    %571 = vmatprep.subr.mxu0 %v96
    %572 = vmatpush1.msra.mxu0 %v95
    %573 = vmatprep.subr.mxu0 %v98
    %574 = vmatpush1.msra.mxu0 %v97
    %575 = vmatprep.subr.mxu0 %v100
    %576 = vmatpush1.msra.mxu0 %v99
    %577 = vmatprep.subr.mxu0 %v102
    %578 = vmatpush1.msra.mxu0 %v101
    %579 = vmatprep.subr.mxu0 %v104
    %580 = vmatpush1.msra.mxu0 %v103
    %581 = vmatprep.subr.mxu0 %v106
    %582 = vmatpush1.msra.mxu0 %v105
    %583 = vmatprep.subr.mxu0 %v108
    %584 = vmatpush1.msra.mxu0 %v107
    %585 = vmatprep.subr.mxu0 %v110
    %586 = vmatpush1.msra.mxu0 %v109
    %587 = vmatprep.subr.mxu0 %v112
    %588 = vmatpush1.msra.mxu0 %v111
    %589 = vmatprep.subr.mxu0 %v114
    %590 = vmatpush1.msra.mxu0 %v113
    %591 = vmatprep.subr.mxu0 %v116
    %592 = vmatpush1.msra.mxu0 %v115
    %593 = vmatprep.subr.mxu0 %v118
    %594 = vmatpush1.msra.mxu0 %v117
    %595 = vmatprep.subr.mxu0 %v120
    %596 = vmatpush1.msra.mxu0 %v119
    %597 = vmatprep.subr.mxu0 %v122
    %598 = vmatpush1.msra.mxu0 %v121
    %599 = vmatprep.subr.mxu0 %v124
    %600 = vmatpush1.msra.mxu0 %v123
    %601 = vmatprep.subr.mxu0 %v126
    %602 = vmatpush1.msra.mxu0 %v125
    %603 = vmatprep.subr.mxu0 %v128
    %604 = vmatpush1.msra.mxu0 %v127
    %605 = vmatprep.subr.mxu0 %v130
    %606 = vmatpush1.msra.mxu0 %v129
    %607 = vmatprep.subr.mxu0 %v132
    %608 = vmatpush1.msra.mxu0 %v131
    %609 = vmatprep.subr.mxu0 %v134
    %610 = vmatpush1.msra.mxu0 %v133
    %611 = vmatprep.subr.mxu0 %v136
    %612 = vmatpush1.msra.mxu0 %v135
    %613 = vmatprep.subr.mxu0 %v138
    %614 = vmatpush1.msra.mxu0 %v137
    %615 = vmatprep.subr.mxu0 %v140
    %616 = vmatpush1.msra.mxu0 %v139
    %617 = vmatprep.subr.mxu0 %v142
    %618 = vmatpush1.msra.mxu0 %v141
    %619 = vmatprep.subr.mxu0 %v144
    %620 = vmatpush1.msra.mxu0 %v143
    %621 = vmatprep.subr.mxu0 %v146
    %622 = vmatpush1.msra.mxu0 %v145
    %623 = vmatprep.subr.mxu0 %v148
    %624 = vmatpush1.msra.mxu0 %v147
    %625 = vmatprep.subr.mxu0 %v150
    %626 = vmatpush1.msra.mxu0 %v149
    %627 = vmatprep.mubr.f32.mxu0 %v435
    %628 = vmatmul.mubr.f32.gmra.mrb[0].mxu0 %v433
    %v629 = vpop.f32.mrb[0].mxu0
    %v630 = vadd.f32 %v559, %v629
    %v631 = vpop.f32.mrb[0].mxu0
    %v632 = vadd.f32 %v561, %v631
    %633 = vdwg.mxu0
    %634 = vmatprep.subr.mxu0 %v152
    %635 = vmatpush1.msra.mxu0 %v151
    %636 = vmatprep.subr.mxu0 %v154
    %637 = vmatpush1.msra.mxu0 %v153
    %638 = vmatprep.subr.mxu0 %v156
    %639 = vmatpush1.msra.mxu0 %v155
    %640 = vmatprep.subr.mxu0 %v158
    %641 = vmatpush1.msra.mxu0 %v157
    %642 = vmatprep.subr.mxu0 %v160
    %643 = vmatpush1.msra.mxu0 %v159
    %644 = vmatprep.subr.mxu0 %v162
    %645 = vmatpush1.msra.mxu0 %v161
    %646 = vmatprep.subr.mxu0 %v164
    %647 = vmatpush1.msra.mxu0 %v163
    %648 = vmatprep.subr.mxu0 %v166
    %649 = vmatpush1.msra.mxu0 %v165
    %650 = vmatprep.subr.mxu0 %v168
    %651 = vmatpush1.msra.mxu0 %v167
    %652 = vmatprep.subr.mxu0 %v170
    %653 = vmatpush1.msra.mxu0 %v169
    %654 = vmatprep.subr.mxu0 %v172
    %655 = vmatpush1.msra.mxu0 %v171
    %656 = vmatprep.subr.mxu0 %v174
    %657 = vmatpush1.msra.mxu0 %v173
    %658 = vmatprep.subr.mxu0 %v176
    %659 = vmatpush1.msra.mxu0 %v175
    %660 = vmatprep.subr.mxu0 %v178
    %661 = vmatpush1.msra.mxu0 %v177
    %662 = vmatprep.subr.mxu0 %v180
    %663 = vmatpush1.msra.mxu0 %v179
    %664 = vmatprep.subr.mxu0 %v182
    %665 = vmatpush1.msra.mxu0 %v181
    %666 = vmatprep.subr.mxu0 %v184
    %667 = vmatpush1.msra.mxu0 %v183
    %668 = vmatprep.subr.mxu0 %v186
    %669 = vmatpush1.msra.mxu0 %v185
    %670 = vmatprep.subr.mxu0 %v188
    %671 = vmatpush1.msra.mxu0 %v187
    %672 = vmatprep.subr.mxu0 %v190
    %673 = vmatpush1.msra.mxu0 %v189
    %674 = vmatprep.subr.mxu0 %v192
    %675 = vmatpush1.msra.mxu0 %v191
    %676 = vmatprep.subr.mxu0 %v194
    %677 = vmatpush1.msra.mxu0 %v193
    %678 = vmatprep.subr.mxu0 %v196
    %679 = vmatpush1.msra.mxu0 %v195
    %680 = vmatprep.subr.mxu0 %v198
    %681 = vmatpush1.msra.mxu0 %v197
    %682 = vmatprep.subr.mxu0 %v200
    %683 = vmatpush1.msra.mxu0 %v199
    %684 = vmatprep.subr.mxu0 %v202
    %685 = vmatpush1.msra.mxu0 %v201
    %686 = vmatprep.subr.mxu0 %v204
    %687 = vmatpush1.msra.mxu0 %v203
    %688 = vmatprep.subr.mxu0 %v206
    %689 = vmatpush1.msra.mxu0 %v205
    %690 = vmatprep.subr.mxu0 %v208
    %691 = vmatpush1.msra.mxu0 %v207
    %692 = vmatprep.subr.mxu0 %v210
    %693 = vmatpush1.msra.mxu0 %v209
    %694 = vmatprep.subr.mxu0 %v212
    %695 = vmatpush1.msra.mxu0 %v211
    %696 = vmatprep.subr.mxu0 %v214
    %697 = vmatpush1.msra.mxu0 %v213
    %698 = vmatprep.mubr.f32.mxu0 %v451
    %699 = vmatmul.mubr.f32.gmra.mrb[0].mxu0 %v443
    %v700 = vpop.f32.mrb[0].mxu0
    %v701 = vadd.f32 %v630, %v700
    %v702 = vpop.f32.mrb[0].mxu0
    %v703 = vadd.f32 %v632, %v702
    %704 = vdwg.mxu0
    %705 = vmatprep.subr.mxu0 %v216
    %706 = vmatpush1.msra.mxu0 %v215
    %707 = vmatprep.subr.mxu0 %v218
    %708 = vmatpush1.msra.mxu0 %v217
    %709 = vmatprep.subr.mxu0 %v220
    %710 = vmatpush1.msra.mxu0 %v219
    %711 = vmatprep.subr.mxu0 %v222
    %712 = vmatpush1.msra.mxu0 %v221
    %713 = vmatprep.subr.mxu0 %v224
    %714 = vmatpush1.msra.mxu0 %v223
    %715 = vmatprep.subr.mxu0 %v226
    %716 = vmatpush1.msra.mxu0 %v225
    %717 = vmatprep.subr.mxu0 %v228
    %718 = vmatpush1.msra.mxu0 %v227
    %719 = vmatprep.subr.mxu0 %v230
    %720 = vmatpush1.msra.mxu0 %v229
    %721 = vmatprep.subr.mxu0 %v232
    %722 = vmatpush1.msra.mxu0 %v231
    %723 = vmatprep.subr.mxu0 %v234
    %724 = vmatpush1.msra.mxu0 %v233
    %725 = vmatprep.subr.mxu0 %v236
    %726 = vmatpush1.msra.mxu0 %v235
    %727 = vmatprep.subr.mxu0 %v238
    %728 = vmatpush1.msra.mxu0 %v237
    %729 = vmatprep.subr.mxu0 %v240
    %730 = vmatpush1.msra.mxu0 %v239
    %731 = vmatprep.subr.mxu0 %v242
    %732 = vmatpush1.msra.mxu0 %v241
    %733 = vmatprep.subr.mxu0 %v244
    %734 = vmatpush1.msra.mxu0 %v243
    %735 = vmatprep.subr.mxu0 %v246
    %736 = vmatpush1.msra.mxu0 %v245
    %737 = vmatprep.subr.mxu0 %v248
    %738 = vmatpush1.msra.mxu0 %v247
    %739 = vmatprep.subr.mxu0 %v250
    %740 = vmatpush1.msra.mxu0 %v249
    %741 = vmatprep.subr.mxu0 %v252
    %742 = vmatpush1.msra.mxu0 %v251
    %743 = vmatprep.subr.mxu0 %v254
    %744 = vmatpush1.msra.mxu0 %v253
    %745 = vmatprep.subr.mxu0 %v256
    %746 = vmatpush1.msra.mxu0 %v255
    %747 = vmatprep.subr.mxu0 %v258
    %748 = vmatpush1.msra.mxu0 %v257
    %749 = vmatprep.subr.mxu0 %v260
    %750 = vmatpush1.msra.mxu0 %v259
    %751 = vmatprep.subr.mxu0 %v262
    %752 = vmatpush1.msra.mxu0 %v261
    %753 = vmatprep.subr.mxu0 %v264
    %754 = vmatpush1.msra.mxu0 %v263
    %755 = vmatprep.subr.mxu0 %v266
    %756 = vmatpush1.msra.mxu0 %v265
    %757 = vmatprep.subr.mxu0 %v268
    %758 = vmatpush1.msra.mxu0 %v267
    %759 = vmatprep.subr.mxu0 %v270
    %760 = vmatpush1.msra.mxu0 %v269
    %761 = vmatprep.subr.mxu0 %v272
    %762 = vmatpush1.msra.mxu0 %v271
    %763 = vmatprep.subr.mxu0 %v274
    %764 = vmatpush1.msra.mxu0 %v273
    %765 = vmatprep.subr.mxu0 %v276
    %766 = vmatpush1.msra.mxu0 %v275
    %767 = vmatprep.subr.mxu0 %v278
    %768 = vmatpush1.msra.mxu0 %v277
    %769 = vmatprep.mubr.f32.mxu0 %v452
    %770 = vmatmul.mubr.f32.gmra.mrb[0].mxu0 %v450
    %v771 = vpop.f32.mrb[0].mxu0
    %v772 = vadd.f32 %v701, %v771
    %v773 = vpop.f32.mrb[0].mxu0
    %v774 = vadd.f32 %v703, %v773
    %775 = vdwg.mxu0
    %776 = vmatprep.subr.mxu0 %v280
    %777 = vmatpush1.msra.mxu0 %v279
    %778 = vmatprep.subr.mxu0 %v282
    %779 = vmatpush1.msra.mxu0 %v281
    %780 = vmatprep.subr.mxu0 %v284
    %781 = vmatpush1.msra.mxu0 %v283
    %782 = vmatprep.subr.mxu0 %v286
    %783 = vmatpush1.msra.mxu0 %v285
    %784 = vmatprep.subr.mxu0 %v288
    %785 = vmatpush1.msra.mxu0 %v287
    %786 = vmatprep.subr.mxu0 %v290
    %787 = vmatpush1.msra.mxu0 %v289
    %788 = vmatprep.subr.mxu0 %v292
    %789 = vmatpush1.msra.mxu0 %v291
    %790 = vmatprep.subr.mxu0 %v294
    %791 = vmatpush1.msra.mxu0 %v293
    %792 = vmatprep.subr.mxu0 %v296
    %793 = vmatpush1.msra.mxu0 %v295
    %794 = vmatprep.subr.mxu0 %v298
    %795 = vmatpush1.msra.mxu0 %v297
    %796 = vmatprep.subr.mxu0 %v300
    %797 = vmatpush1.msra.mxu0 %v299
    %798 = vmatprep.subr.mxu0 %v302
    %799 = vmatpush1.msra.mxu0 %v301
    %800 = vmatprep.subr.mxu0 %v304
    %801 = vmatpush1.msra.mxu0 %v303
    %802 = vmatprep.subr.mxu0 %v306
    %803 = vmatpush1.msra.mxu0 %v305
    %804 = vmatprep.subr.mxu0 %v308
    %805 = vmatpush1.msra.mxu0 %v307
    %806 = vmatprep.subr.mxu0 %v310
    %807 = vmatpush1.msra.mxu0 %v309
    %808 = vmatprep.subr.mxu0 %v312
    %809 = vmatpush1.msra.mxu0 %v311
    %810 = vmatprep.subr.mxu0 %v314
    %811 = vmatpush1.msra.mxu0 %v313
    %812 = vmatprep.subr.mxu0 %v316
    %813 = vmatpush1.msra.mxu0 %v315
    %814 = vmatprep.subr.mxu0 %v318
    %815 = vmatpush1.msra.mxu0 %v317
    %816 = vmatprep.subr.mxu0 %v320
    %817 = vmatpush1.msra.mxu0 %v319
    %818 = vmatprep.subr.mxu0 %v322
    %819 = vmatpush1.msra.mxu0 %v321
    %820 = vmatprep.subr.mxu0 %v324
    %821 = vmatpush1.msra.mxu0 %v323
    %822 = vmatprep.subr.mxu0 %v326
    %823 = vmatpush1.msra.mxu0 %v325
    %824 = vmatprep.subr.mxu0 %v328
    %825 = vmatpush1.msra.mxu0 %v327
    %826 = vmatprep.subr.mxu0 %v330
    %827 = vmatpush1.msra.mxu0 %v329
    %828 = vmatprep.subr.mxu0 %v332
    %829 = vmatpush1.msra.mxu0 %v331
    %830 = vmatprep.subr.mxu0 %v334
    %831 = vmatpush1.msra.mxu0 %v333
    %832 = vmatprep.subr.mxu0 %v336
    %833 = vmatpush1.msra.mxu0 %v335
    %834 = vmatprep.subr.mxu0 %v338
    %835 = vmatpush1.msra.mxu0 %v337
    %836 = vmatprep.subr.mxu0 %v340
    %837 = vmatpush1.msra.mxu0 %v339
    %838 = vmatprep.subr.mxu0 %v342
    %839 = vmatpush1.msra.mxu0 %v341
    %840 = vmatprep.mubr.f32.mxu0 %v468
    %841 = vmatmul.mubr.f32.gmra.mrb[0].mxu0 %v460
    %v842 = vpop.f32.mrb[0].mxu0
    %v843 = vadd.f32 %v772, %v842
    %v844 = vpop.f32.mrb[0].mxu0
    %v845 = vadd.f32 %v774, %v844
    %846 = vdwg.mxu0
    %847 = vmatprep.subr.mxu0 %v344
    %848 = vmatpush1.msra.mxu0 %v343
    %849 = vmatprep.subr.mxu0 %v346
    %850 = vmatpush1.msra.mxu0 %v345
    %851 = vmatprep.subr.mxu0 %v348
    %852 = vmatpush1.msra.mxu0 %v347
    %853 = vmatprep.subr.mxu0 %v350
    %854 = vmatpush1.msra.mxu0 %v349
    %855 = vmatprep.subr.mxu0 %v352
    %856 = vmatpush1.msra.mxu0 %v351
    %857 = vmatprep.subr.mxu0 %v354
    %858 = vmatpush1.msra.mxu0 %v353
    %859 = vmatprep.subr.mxu0 %v356
    %860 = vmatpush1.msra.mxu0 %v355
    %861 = vmatprep.subr.mxu0 %v358
    %862 = vmatpush1.msra.mxu0 %v357
    %863 = vmatprep.subr.mxu0 %v360
    %864 = vmatpush1.msra.mxu0 %v359
    %865 = vmatprep.subr.mxu0 %v362
    %866 = vmatpush1.msra.mxu0 %v361
    %867 = vmatprep.subr.mxu0 %v364
    %868 = vmatpush1.msra.mxu0 %v363
    %869 = vmatprep.subr.mxu0 %v366
    %870 = vmatpush1.msra.mxu0 %v365
    %871 = vmatprep.subr.mxu0 %v368
    %872 = vmatpush1.msra.mxu0 %v367
    %873 = vmatprep.subr.mxu0 %v370
    %874 = vmatpush1.msra.mxu0 %v369
    %875 = vmatprep.subr.mxu0 %v372
    %876 = vmatpush1.msra.mxu0 %v371
    %877 = vmatprep.subr.mxu0 %v374
    %878 = vmatpush1.msra.mxu0 %v373
    %879 = vmatprep.subr.mxu0 %v376
    %880 = vmatpush1.msra.mxu0 %v375
    %881 = vmatprep.subr.mxu0 %v378
    %882 = vmatpush1.msra.mxu0 %v377
    %883 = vmatprep.subr.mxu0 %v380
    %884 = vmatpush1.msra.mxu0 %v379
    %885 = vmatprep.subr.mxu0 %v382
    %886 = vmatpush1.msra.mxu0 %v381
    %887 = vmatprep.subr.mxu0 %v384
    %888 = vmatpush1.msra.mxu0 %v383
    %889 = vmatprep.subr.mxu0 %v386
    %890 = vmatpush1.msra.mxu0 %v385
    %891 = vmatprep.subr.mxu0 %v388
    %892 = vmatpush1.msra.mxu0 %v387
    %893 = vmatprep.subr.mxu0 %v390
    %894 = vmatpush1.msra.mxu0 %v389
    %895 = vmatprep.subr.mxu0 %v392
    %896 = vmatpush1.msra.mxu0 %v391
    %897 = vmatprep.subr.mxu0 %v394
    %898 = vmatpush1.msra.mxu0 %v393
    %899 = vmatprep.subr.mxu0 %v396
    %900 = vmatpush1.msra.mxu0 %v395
    %901 = vmatprep.subr.mxu0 %v398
    %902 = vmatpush1.msra.mxu0 %v397
    %903 = vmatprep.subr.mxu0 %v400
    %904 = vmatpush1.msra.mxu0 %v399
    %905 = vmatprep.subr.mxu0 %v402
    %906 = vmatpush1.msra.mxu0 %v401
    %907 = vmatprep.subr.mxu0 %v404
    %908 = vmatpush1.msra.mxu0 %v403
    %909 = vmatprep.subr.mxu0 %v406
    %910 = vmatpush1.msra.mxu0 %v405
    %911 = vmatprep.mubr.f32.mxu0 %v469
    %912 = vmatmul.mubr.f32.gmra.mrb[0].mxu0 %v467
    %v913 = vpop.f32.mrb[0].mxu0
    %v914 = vadd.f32 %v843, %v913
    %v915 = vpop.f32.mrb[0].mxu0
    %v916 = vadd.f32 %v845, %v915
    %917 = vdwg.mxu0
    %918 = vmatprep.subr.mxu0 %v408
    %919 = vmatpush1.msra.mxu0 %v407
    %920 = vmatprep.subr.mxu0 %v410
    %921 = vmatpush1.msra.mxu0 %v409
    %922 = vmatprep.subr.mxu0 %v412
    %923 = vmatpush1.msra.mxu0 %v411
    %924 = vmatprep.subr.mxu0 %v414
    %925 = vmatpush1.msra.mxu0 %v413
    %926 = vmatprep.subr.mxu0 0.0
    %927 = vmatpush1.msra.mxu0 0.0
    %928 = vmatprep.subr.mxu0 0.0
    %929 = vmatpush1.msra.mxu0 0.0
    %930 = vmatprep.subr.mxu0 0.0
    %931 = vmatpush1.msra.mxu0 0.0
    %932 = vmatprep.subr.mxu0 0.0
    %933 = vmatpush1.msra.mxu0 0.0
    %934 = vmatprep.subr.mxu0 0.0
    %935 = vmatpush1.msra.mxu0 0.0
    %936 = vmatprep.subr.mxu0 0.0
    %937 = vmatpush1.msra.mxu0 0.0
    %938 = vmatprep.subr.mxu0 0.0
    %939 = vmatpush1.msra.mxu0 0.0
    %940 = vmatprep.subr.mxu0 0.0
    %941 = vmatpush1.msra.mxu0 0.0
    %942 = vmatprep.subr.mxu0 0.0
    %943 = vmatpush1.msra.mxu0 0.0
    %944 = vmatprep.subr.mxu0 0.0
    %945 = vmatpush1.msra.mxu0 0.0
    %946 = vmatprep.subr.mxu0 0.0
    %947 = vmatpush1.msra.mxu0 0.0
    %948 = vmatprep.subr.mxu0 0.0
    %949 = vmatpush1.msra.mxu0 0.0
    %950 = vmatprep.subr.mxu0 0.0
    %951 = vmatpush1.msra.mxu0 0.0
    %952 = vmatprep.subr.mxu0 0.0
    %953 = vmatpush1.msra.mxu0 0.0
    %954 = vmatprep.subr.mxu0 0.0
    %955 = vmatpush1.msra.mxu0 0.0
    %956 = vmatprep.subr.mxu0 0.0
    %957 = vmatpush1.msra.mxu0 0.0
    %958 = vmatprep.subr.mxu0 0.0
    %959 = vmatpush1.msra.mxu0 0.0
    %960 = vmatprep.subr.mxu0 0.0
    %961 = vmatpush1.msra.mxu0 0.0
    %962 = vmatprep.subr.mxu0 0.0
    %963 = vmatpush1.msra.mxu0 0.0
    %964 = vmatprep.subr.mxu0 0.0
    %965 = vmatpush1.msra.mxu0 0.0
    %966 = vmatprep.subr.mxu0 0.0
    %967 = vmatpush1.msra.mxu0 0.0
    %968 = vmatprep.subr.mxu0 0.0
    %969 = vmatpush1.msra.mxu0 0.0
    %970 = vmatprep.subr.mxu0 0.0
    %971 = vmatpush1.msra.mxu0 0.0
    %972 = vmatprep.subr.mxu0 0.0
    %973 = vmatpush1.msra.mxu0 0.0
    %974 = vmatprep.subr.mxu0 0.0
    %975 = vmatpush1.msra.mxu0 0.0
    %976 = vmatprep.subr.mxu0 0.0
    %977 = vmatpush1.msra.mxu0 0.0
    %978 = vmatprep.subr.mxu0 0.0
    %979 = vmatpush1.msra.mxu0 0.0
    %980 = vmatprep.subr.mxu0 0.0
    %981 = vmatpush1.msra.mxu0 0.0
    %982 = vmatprep.mubr.f32.mxu0 0.0
    %983 = vmatmul.mubr.f32.gmra.mrb[0].mxu0 %v490
    %v984 = vpop.f32.mrb[0].mxu0
    %v985 = vadd.f32 %v914, %v984
    %v986 = vpop.f32.mrb[0].mxu0
    %v987 = vadd.f32 %v916, %v986
    %988 = vdwg.mxu0
    %v989 = vmax.f32 %v985, 0.0
    %v990 = vmax.f32 %v987, 0.0
    %v993 = vcombine.low %v989, %v990
    %v995 = vunpack.c.l.s4 1983009808
    %v996 = vunpack.c.0.s8 %v995
    %v997 = vlaneseq
    %v998 = vshrl.u32 %v997, 7
    %v999 = vsub.s32 %v996, %v998
    %v1000 = vrot.slane %v993, %v999
    %1002 = vst [vmem:[%s3] sm:$0xf] %v1000
    %1003 = vst [vmem:[#allocation2] sm:$0xf] %v1000
    %v1004 = vld [vmem:[%s2] sm:$0xff]
    %v1005 = vld [vmem:[%s2 + $0x8] sm:$0xff]
    %v1006 = vld [vmem:[%s2 + $0x10] sm:$0xff]
    %v1007 = vld [vmem:[%s2 + $0x18] sm:$0xff]
    %v1008 = vld [vmem:[%s2 + $0x20] sm:$0xff]
    %v1009 = vld [vmem:[%s2 + $0x28] sm:$0xff]
    %v1010 = vld [vmem:[%s2 + $0x30] sm:$0xff]
    %v1011 = vld [vmem:[%s2 + $0x38] sm:$0xff]
    %v1012 = vld [vmem:[%s2 + $0x40] sm:$0xff]
    %v1013 = vld [vmem:[%s2 + $0x48] sm:$0xff]
    %v1014 = vld [vmem:[%s2 + $0x50] sm:$0xff]
    %v1015 = vld [vmem:[%s2 + $0x58] sm:$0xff]
    %v1016 = vld [vmem:[%s2 + $0x60] sm:$0xff]
    %v1017 = vld [vmem:[%s2 + $0x68] sm:$0xff]
    %v1018 = vld [vmem:[%s2 + $0x70] sm:$0xff]
    %v1019 = vld [vmem:[%s2 + $0x78] sm:$0xff]
    %v1020 = vld [vmem:[%s2 + $0x80] sm:$0xff]
    %v1021 = vld [vmem:[%s2 + $0x88] sm:$0xff]
    %v1022 = vld [vmem:[%s2 + $0x90] sm:$0xff]
    %v1023 = vld [vmem:[%s2 + $0x98] sm:$0xff]
    %v1024 = vld [vmem:[%s2 + $0xa0] sm:$0xff]
    %v1025 = vld [vmem:[%s2 + $0xa8] sm:$0xff]
    %v1026 = vld [vmem:[%s2 + $0xb0] sm:$0xff]
    %v1027 = vld [vmem:[%s2 + $0xb8] sm:$0xff]
    %v1028 = vld [vmem:[%s2 + $0xc0] sm:$0xff]
    %v1029 = vld [vmem:[%s2 + $0xc8] sm:$0xff]
    %v1030 = vld [vmem:[%s2 + $0xd0] sm:$0xff]
    %v1031 = vld [vmem:[%s2 + $0xd8] sm:$0xff]
    %v1032 = vld [vmem:[%s2 + $0xe0] sm:$0xff]
    %v1033 = vld [vmem:[%s2 + $0xe8] sm:$0xff]
    %v1034 = vld [vmem:[%s2 + $0xf0] sm:$0xff]
    %v1035 = vld [vmem:[%s2 + $0xf8] sm:$0xff]
    %1036 = vmatprep.subr.mxu0 0.0
    %1037 = vmatpush1.msra.mxu0 %v1004
    %1038 = vmatprep.subr.mxu0 0.0
    %1039 = vmatpush1.msra.mxu0 %v1005
    %1040 = vmatprep.subr.mxu0 0.0
    %1041 = vmatpush1.msra.mxu0 %v1006
    %1042 = vmatprep.subr.mxu0 0.0
    %1043 = vmatpush1.msra.mxu0 %v1007
    %1044 = vmatprep.subr.mxu0 0.0
    %1045 = vmatpush1.msra.mxu0 %v1008
    %1046 = vmatprep.subr.mxu0 0.0
    %1047 = vmatpush1.msra.mxu0 %v1009
    %1048 = vmatprep.subr.mxu0 0.0
    %1049 = vmatpush1.msra.mxu0 %v1010
    %1050 = vmatprep.subr.mxu0 0.0
    %1051 = vmatpush1.msra.mxu0 %v1011
    %1052 = vmatprep.subr.mxu0 0.0
    %1053 = vmatpush1.msra.mxu0 %v1012
    %1054 = vmatprep.subr.mxu0 0.0
    %1055 = vmatpush1.msra.mxu0 %v1013
    %1056 = vmatprep.subr.mxu0 0.0
    %1057 = vmatpush1.msra.mxu0 %v1014
    %1058 = vmatprep.subr.mxu0 0.0
    %1059 = vmatpush1.msra.mxu0 %v1015
    %1060 = vmatprep.subr.mxu0 0.0
    %1061 = vmatpush1.msra.mxu0 %v1016
    %1062 = vmatprep.subr.mxu0 0.0
    %1063 = vmatpush1.msra.mxu0 %v1017
    %1064 = vmatprep.subr.mxu0 0.0
    %1065 = vmatpush1.msra.mxu0 %v1018
    %1066 = vmatprep.subr.mxu0 0.0
    %1067 = vmatpush1.msra.mxu0 %v1019
    %1068 = vmatprep.subr.mxu0 0.0
    %1069 = vmatpush1.msra.mxu0 %v1020
    %1070 = vmatprep.subr.mxu0 0.0
    %1071 = vmatpush1.msra.mxu0 %v1021
    %1072 = vmatprep.subr.mxu0 0.0
    %1073 = vmatpush1.msra.mxu0 %v1022
    %1074 = vmatprep.subr.mxu0 0.0
    %1075 = vmatpush1.msra.mxu0 %v1023
    %1076 = vmatprep.subr.mxu0 0.0
    %1077 = vmatpush1.msra.mxu0 %v1024
    %1078 = vmatprep.subr.mxu0 0.0
    %1079 = vmatpush1.msra.mxu0 %v1025
    %1080 = vmatprep.subr.mxu0 0.0
    %1081 = vmatpush1.msra.mxu0 %v1026
    %1082 = vmatprep.subr.mxu0 0.0
    %1083 = vmatpush1.msra.mxu0 %v1027
    %1084 = vmatprep.subr.mxu0 0.0
    %1085 = vmatpush1.msra.mxu0 %v1028
    %1086 = vmatprep.subr.mxu0 0.0
    %1087 = vmatpush1.msra.mxu0 %v1029
    %1088 = vmatprep.subr.mxu0 0.0
    %1089 = vmatpush1.msra.mxu0 %v1030
    %1090 = vmatprep.subr.mxu0 0.0
    %1091 = vmatpush1.msra.mxu0 %v1031
    %1092 = vmatprep.subr.mxu0 0.0
    %1093 = vmatpush1.msra.mxu0 %v1032
    %1094 = vmatprep.subr.mxu0 0.0
    %1095 = vmatpush1.msra.mxu0 %v1033
    %1096 = vmatprep.subr.mxu0 0.0
    %1097 = vmatpush1.msra.mxu0 %v1034
    %1098 = vmatprep.subr.mxu0 0.0
    %1099 = vmatpush1.msra.mxu0 %v1035
    %1100 = vmatprep.mubr.f32.mxu0 %v990
    %1101 = vmatmul.mubr.f32.gmra.mrb[0].mxu0 %v989
    %v1102 = vpop.f32.mrb[0].mxu0
    %v1103 = vadd.f32 0.0, %v1102
    %v1104 = vpop.f32.mrb[0].mxu0
    %1105 = vdwg.mxu0
    %vm1106 = vcmask 41984
    %1107 = vst.msk [vmem:[#allocation4] sm:$0x3] %vm1106, %v1103
    // Predicated region
    $region14: #{vectorized_action_q_forward.7} parent=1 // pred_check
      _
    $region15: #{vectorized_action_q_forward.7} parent=1 // pred_check_branch
      %1109 = sbr.rel (0) target = $region17
    $region16: #{vectorized_action_q_forward.7} parent=1 // pred_region
      _
    $region17: #{vectorized_action_q_forward.7} parent=1 // pred_fallthru
      _
    // Predicated region
    $region18: #{vectorized_action_q_forward.7} parent=1 // pred_check
      _
    $region19: #{vectorized_action_q_forward.7} parent=1 // pred_check_branch
      %1111 = sbr.rel (0) target = $region21
    $region20: #{vectorized_action_q_forward.7} parent=1 // pred_region
      %s1113 = ssub.s32 64, 64
      %1114 = vsyncadd [#allocation3], %s1113
      %s1116 = sshll.u32 [#allocation2], 4
      %s1117 = int_to_ptr.vmem [resolvable:$true] %s1116
      %1119 = dma.vmem_to_hbm [thread:$0]  %s1117, 64, %s4, [#allocation3]
    $region21: #{vectorized_action_q_forward.7} parent=1 // pred_fallthru
      _
    // Predicated region
    $region22: #{vectorized_action_q_forward.7} parent=1 // pred_check
      _
    $region23: #{vectorized_action_q_forward.7} parent=1 // pred_check_branch
      %1121 = sbr.rel (0) target = $region25
    $region24: #{vectorized_action_q_forward.7} parent=1 // pred_region
      %s1123 = ssub.s32 32, 32
      %1124 = vsyncadd [#allocation5], %s1123
      %s1126 = sshll.u32 [#allocation4], 4
      %s1127 = int_to_ptr.vmem [resolvable:$true] %s1126
      %1129 = dma.vmem_to_hbm [thread:$0]  %s1127, 32, %s5, [#allocation5]
    $region25: #{vectorized_action_q_forward.7} parent=1 // pred_fallthru
      _
    // Predicated region
    $region26: #{vectorized_action_q_forward.7} parent=1 // pred_check
      _
    $region27: #{vectorized_action_q_forward.7} parent=1 // pred_check_branch
      %1131 = sbr.rel (0) target = $region29
    $region28: #{vectorized_action_q_forward.7} parent=1 // pred_region
      _
    $region29: #{vectorized_action_q_forward.7} parent=1 // pred_fallthru
      _
    // Predicated region
    $region30: #{vectorized_action_q_forward.7} parent=1 // pred_check
      _
    $region31: #{vectorized_action_q_forward.7} parent=1 // pred_check_branch
      %1133 = sbr.rel (0) target = $region33
    $region32: #{vectorized_action_q_forward.7} parent=1 // pred_region
      %1134 = dma.done [#allocation3], 64
    $region33: #{vectorized_action_q_forward.7} parent=1 // pred_fallthru
      _
    // Predicated region
    $region34: #{vectorized_action_q_forward.7} parent=1 // pred_check
      _
    $region35: #{vectorized_action_q_forward.7} parent=1 // pred_check_branch
      %1136 = sbr.rel (0) target = $region37
    $region36: #{vectorized_action_q_forward.7} parent=1 // pred_region
      %1137 = dma.done [#allocation5], 32
    $region37: #{vectorized_action_q_forward.7} parent=1 // pred_fallthru
      _
    %1138 = vsyncpa [#allocation3], 1
    %1139 = vsyncpa [#allocation5], 1

</llo_original>
